<compile_context>
chip_gen: v6e
topology: v6e:2x2x1
jax: 0.10.0
libtpu: 0.0.40
codegen_flags: <defaults>
</compile_context>

<pallas_src>
import math
import functools

import jax
import jax.numpy as jnp
from jax import lax
from jax.experimental import pallas as pl
from jax.experimental.pallas import tpu as pltpu


def _layernorm(x, gamma, beta, eps=1e-5):
    # x: (S, F) f32, gamma/beta: (1, F) f32
    mean = jnp.mean(x, axis=-1, keepdims=True)
    var = jnp.mean(jnp.square(x - mean), axis=-1, keepdims=True)
    return (x - mean) * lax.rsqrt(var + eps) * gamma + beta


def _mla_kernel(x_ref, wdq_ref, qg_ref, qb_ref,
                wdkv_ref, kvg_ref, kvb_ref,
                a_h_ref, wov_h_ref,
                y_ref, ckv_ref,
                *, n_heads, past_length):
    x = x_ref[0]                                            # (S, D) bf16
    S = x.shape[0]
    D = y_ref.shape[-1]

    # ---- query down-projection + LayerNorm (stats in f32) ----
    cq = jnp.dot(x, wdq_ref[...], preferred_element_type=jnp.float32)    # (S, Pq)
    cq = _layernorm(cq, qg_ref[...], qb_ref[...]).astype(jnp.bfloat16)

    # ---- kv down-projection + LayerNorm; this is the compressed_kv output ----
    ckv = jnp.dot(x, wdkv_ref[...], preferred_element_type=jnp.float32)  # (S, Pkv)
    ckv = _layernorm(ckv, kvg_ref[...], kvb_ref[...])
    ckv_bf = ckv.astype(jnp.bfloat16)
    ckv_ref[0] = ckv_bf.astype(ckv_ref.dtype)

    # ---- additive causal bias, built once and reused by every head ----
    row = lax.broadcasted_iota(jnp.int32, (S, S), 0)
    col = lax.broadcasted_iota(jnp.int32, (S, S), 1)
    bias = jnp.where(col <= row + past_length,
                     jnp.float32(0.0), jnp.float32(-1e30))               # (S, S)

    # ---- per-head attention via absorbed weights; accumulator carried in the
    #      fori_loop, output ref written exactly once after the loop ----
    def head_body(h, acc):
        a_h = a_h_ref[h]                                    # (Pq, Pkv) bf16
        wov_h = wov_h_ref[h]                                # (Pkv, D)  bf16

        # q in latent (compressed-kv) space: (S, Pkv), K = Pq, N = Pkv
        q_lat = jnp.dot(cq, a_h,
                        preferred_element_type=jnp.float32).astype(jnp.bfloat16)

        # scores = q_lat @ ckv^T (contract last axes; K = Pkv) + causal bias
        s = lax.dot_general(q_lat, ckv_bf,
                            dimension_numbers=(((1,), (1,)), ((), ())),
                            preferred_element_type=jnp.float32) + bias   # (S, S)

        m = jnp.max(s, axis=-1, keepdims=True)
        e = jnp.exp(s - m)
        p = e * pl.reciprocal(jnp.sum(e, axis=-1, keepdims=True), approx=True)

        # o in latent space: (S, Pkv), K = S
        o_lat = jnp.dot(p.astype(jnp.bfloat16), ckv_bf,
                        preferred_element_type=jnp.float32).astype(jnp.bfloat16)

        # absorbed value+output projection: (S, D), K = Pkv, N = D
        return acc + jnp.dot(o_lat, wov_h, preferred_element_type=jnp.float32)

    y = lax.fori_loop(0, n_heads, head_body,
                      jnp.zeros((S, D), jnp.float32))
    y_ref[0] = y.astype(y_ref.dtype)


def ropeless_mla_forward(x, params, n_heads, past_length=0):
    # Implements the kv_cache=None path of the PyTorch module.
    B, S, D = x.shape
    dh = D // n_heads
    Pq = params["W_dq"].shape[1]
    Pkv = params["W_dkv"].shape[1]
    bf16 = jnp.bfloat16
    scale = 1.0 / math.sqrt(dh)

    # ---- host-side weight prep: MLA weight absorption in f32, then bf16 ----
    x_bf = x.astype(bf16)
    w_dq = params["W_dq"].astype(bf16)                                     # (D, Pq)
    w_dkv = params["W_dkv"].astype(bf16)                                   # (D, Pkv)

    w_uq_h = (params["W_uq"] * scale).reshape(Pq, n_heads, dh).transpose(1, 0, 2)   # (H, Pq, dh)
    w_uk_h = params["W_ukv"][:, :D].reshape(Pkv, n_heads, dh).transpose(1, 0, 2)    # (H, Pkv, dh)
    w_uv_h = params["W_ukv"][:, D:].reshape(Pkv, n_heads, dh).transpose(1, 0, 2)    # (H, Pkv, dh)
    w_o_h = params["W_o"].T.reshape(n_heads, dh, D)                                 # (H, dh, D)

    # A_h   = W_uq_h(scaled) @ W_uk_h^T : (H, Pq, Pkv)
    # Wov_h = W_uv_h @ W_o_h            : (H, Pkv, D)
    a_h = jnp.einsum("hqd,hkd->hqk", w_uq_h, w_uk_h).astype(bf16)
    wov_h = jnp.einsum("hkd,hde->hke", w_uv_h, w_o_h).astype(bf16)

    kernel = functools.partial(_mla_kernel, n_heads=n_heads,
                               past_length=past_length)

    full = lambda shape: pl.BlockSpec(shape, lambda b: (0,) * len(shape))

    out_shape = (
        jax.ShapeDtypeStruct((B, S, D), jnp.float32),
        jax.ShapeDtypeStruct((B, S, Pkv), bf16),   # latent kv cache in bf16
    )

    return pl.pallas_call(
        kernel,
        out_shape=out_shape,
        grid_spec=pltpu.PrefetchScalarGridSpec(
            num_scalar_prefetch=0,
            grid=(B,),
            in_specs=[
                pl.BlockSpec((1, S, D), lambda b: (b, 0, 0)),   # x (bf16)
                full((D, Pq)),                                  # W_dq
                full((1, Pq)),                                  # q_ln gamma
                full((1, Pq)),                                  # q_ln beta
                full((D, Pkv)),                                 # W_dkv
                full((1, Pkv)),                                 # kv_ln gamma
                full((1, Pkv)),                                 # kv_ln beta
                full((n_heads, Pq, Pkv)),                       # A_h   (absorbed Q/K)
                full((n_heads, Pkv, D)),                        # Wov_h (absorbed V/O)
            ],
            out_specs=[
                pl.BlockSpec((1, S, D), lambda b: (b, 0, 0)),
                pl.BlockSpec((1, S, Pkv), lambda b: (b, 0, 0)),
            ],
        ),
        compiler_params=pltpu.CompilerParams(
            dimension_semantics=("parallel",),
            vmem_limit_bytes=32 * 1024 * 1024,
        ),
    )(x_bf, w_dq,
      params["q_ln_gamma"], params["q_ln_beta"],
      w_dkv,
      params["kv_ln_gamma"], params["kv_ln_beta"],
      a_h, wov_h)


def init_params(key, d_model, n_heads):
    q_proj_dim = d_model // 2
    kv_proj_dim = 2 * d_model // 3
    ks = jax.random.split(key, 5)
    return {
        "W_dq": 0.01 * jax.random.normal(ks[0], (d_model, q_proj_dim), jnp.float32),
        "W_uq": 0.01 * jax.random.normal(ks[1], (q_proj_dim, d_model), jnp.float32),
        "W_dkv": 0.01 * jax.random.normal(ks[2], (d_model, kv_proj_dim), jnp.float32),
        "W_ukv": 0.01 * jax.random.normal(ks[3], (kv_proj_dim, 2 * d_model), jnp.float32),
        "W_o": 0.01 * jax.random.normal(ks[4], (d_model, d_model), jnp.float32),
        "q_ln_gamma": jnp.ones((1, q_proj_dim), jnp.float32),
        "q_ln_beta": jnp.zeros((1, q_proj_dim), jnp.float32),
        "kv_ln_gamma": jnp.ones((1, kv_proj_dim), jnp.float32),
        "kv_ln_beta": jnp.zeros((1, kv_proj_dim), jnp.float32),
    }


def reference_forward(x, params, n_heads, past_length=0):
    # Pure-JAX fp32 reference mirroring the PyTorch module (kv_cache=None path).
    B, S, D = x.shape
    dh = D // n_heads

    def ln(v, g, b, eps=1e-5):
        mu = jnp.mean(v, axis=-1, keepdims=True)
        var = jnp.mean(jnp.square(v - mu), axis=-1, keepdims=True)
        return (v - mu) / jnp.sqrt(var + eps) * g + b

    cq = ln(x @ params["W_dq"], params["q_ln_gamma"], params["q_ln_beta"])
    Q = cq @ params["W_uq"]
    ckv = ln(x @ params["W_dkv"], params["kv_ln_gamma"], params["kv_ln_beta"])
    KV = ckv @ params["W_ukv"]
    K, V = KV[..., :D], KV[..., D:]

    qh = Q.reshape(B, S, n_heads, dh).transpose(0, 2, 1, 3)
    kh = K.reshape(B, S, n_heads, dh).transpose(0, 2, 1, 3)
    vh = V.reshape(B, S, n_heads, dh).transpose(0, 2, 1, 3)

    row = jnp.arange(S)[:, None]
    col = jnp.arange(S)[None, :]
    allowed = col <= (row + past_length)

    s = jnp.einsum("bhqd,bhkd->bhqk", qh, kh) / math.sqrt(dh)
    s = jnp.where(allowed[None, None], s, -jnp.inf)
    p = jax.nn.softmax(s, axis=-1)
    o = jnp.einsum("bhqk,bhkd->bhqd", p, vh)
    o = o.transpose(0, 2, 1, 3).reshape(B, S, D)
    y = o @ params["W_o"].T
    return y, ckv


if __name__ == "__main__":
    # Lane-dense small shapes: D=384 (3*128), Pq=192, Pkv=256 (2*128), S=128.
    d_model = 384
    n_heads = 6
    B, S = 2, 128

    key = jax.random.PRNGKey(0)
    kx, kp = jax.random.split(key)
    x = jax.random.normal(kx, (B, S, d_model), jnp.float32)
    params = init_params(kp, d_model, n_heads)

    y, ckv = ropeless_mla_forward(x, params, n_heads)
    y = jax.block_until_ready(y)
    ckv = jax.block_until_ready(ckv)

    y_ref, ckv_ref = reference_forward(x, params, n_heads)

    def max_rel_err(a, b):
        return float(jnp.max(jnp.abs(a.astype(jnp.float32) - b))
                     / (jnp.max(jnp.abs(b)) + 1e-12))

    err_y = max_rel_err(y, y_ref)
    err_ckv = max_rel_err(ckv, ckv_ref)
    assert err_y < 5e-2, f"y mismatch (max rel err {err_y})"
    assert err_ckv < 5e-2, f"compressed_kv mismatch (max rel err {err_ckv})"

    print("KERNEL_OK")
</pallas_src>

<mosaic_0001>
module attributes {stable_mosaic.version = 11 : i64} {
  func.func @_mla_kernel(%arg0: i32, %arg1: memref<1x128x384xbf16, #tpu.memory_space<vmem>>, %arg2: memref<384x192xbf16, #tpu.memory_space<vmem>>, %arg3: memref<1x192xf32, #tpu.memory_space<vmem>>, %arg4: memref<1x192xf32, #tpu.memory_space<vmem>>, %arg5: memref<384x256xbf16, #tpu.memory_space<vmem>>, %arg6: memref<1x256xf32, #tpu.memory_space<vmem>>, %arg7: memref<1x256xf32, #tpu.memory_space<vmem>>, %arg8: memref<6x192x256xbf16, #tpu.memory_space<vmem>>, %arg9: memref<6x256x384xbf16, #tpu.memory_space<vmem>>, %arg10: memref<1x128x384xf32, #tpu.memory_space<vmem>>, %arg11: memref<1x128x256xbf16, #tpu.memory_space<vmem>>) attributes {dimension_semantics = [#tpu.dimension_semantics<parallel>], iteration_bounds = array<i64: 2>, scalar_prefetch = 0 : i64, scratch_operands = 0 : i64, tpu.core_type = #tpu.core_type<tc>, window_params = [{transform_indices = @transform_0, window_bounds = array<i64: 1, 128, 384>}, {pipeline_mode = #tpu.pipeline_mode<synchronous>, transform_indices = @transform_1, window_bounds = array<i64: 384, 192>}, {pipeline_mode = #tpu.pipeline_mode<synchronous>, transform_indices = @transform_2, window_bounds = array<i64: 1, 192>}, {pipeline_mode = #tpu.pipeline_mode<synchronous>, transform_indices = @transform_3, window_bounds = array<i64: 1, 192>}, {pipeline_mode = #tpu.pipeline_mode<synchronous>, transform_indices = @transform_4, window_bounds = array<i64: 384, 256>}, {pipeline_mode = #tpu.pipeline_mode<synchronous>, transform_indices = @transform_5, window_bounds = array<i64: 1, 256>}, {pipeline_mode = #tpu.pipeline_mode<synchronous>, transform_indices = @transform_6, window_bounds = array<i64: 1, 256>}, {pipeline_mode = #tpu.pipeline_mode<synchronous>, transform_indices = @transform_7, window_bounds = array<i64: 6, 192, 256>}, {pipeline_mode = #tpu.pipeline_mode<synchronous>, transform_indices = @transform_8, window_bounds = array<i64: 6, 256, 384>}, {transform_indices = @transform_9, window_bounds = array<i64: 1, 128, 384>}, {transform_indices = @transform_10, window_bounds = array<i64: 1, 128, 256>}]} {
    %c0 = arith.constant 0 : index
    %c0_0 = arith.constant 0 : index
    %c0_1 = arith.constant 0 : index
    %0 = vector.load %arg1[%c0, %c0_0, %c0_1] : memref<1x128x384xbf16, #tpu.memory_space<vmem>>, vector<1x128x384xbf16>
    %1 = vector.shape_cast %0 : vector<1x128x384xbf16> to vector<128x384xbf16>
    %c0_2 = arith.constant 0 : index
    %c0_3 = arith.constant 0 : index
    %2 = vector.load %arg2[%c0_2, %c0_3] : memref<384x192xbf16, #tpu.memory_space<vmem>>, vector<384x192xbf16>
    %cst = arith.constant dense<0.000000e+00> : vector<128x192xf32>
    %3 = tpu.matmul %1, %2, %cst {dimension_numbers = #tpu.dot_dimension_numbers<[1], [0], [0], [1], [0, 0, 1, 1], [], []>} : vector<128x384xbf16>, vector<384x192xbf16>, vector<128x192xf32> -> vector<128x192xf32>
    %c0_4 = arith.constant 0 : index
    %c0_5 = arith.constant 0 : index
    %4 = vector.load %arg3[%c0_4, %c0_5] : memref<1x192xf32, #tpu.memory_space<vmem>>, vector<1x192xf32>
    %c0_6 = arith.constant 0 : index
    %c0_7 = arith.constant 0 : index
    %5 = vector.load %arg4[%c0_6, %c0_7] : memref<1x192xf32, #tpu.memory_space<vmem>>, vector<1x192xf32>
    %cst_8 = arith.constant dense<0.000000e+00> : vector<128xf32>
    %6 = vector.multi_reduction <add>, %3, %cst_8 [1] : vector<128x192xf32> to vector<128xf32>
    %7 = vector.shape_cast %6 : vector<128xf32> to vector<128x1xf32>
    %cst_9 = arith.constant 1.920000e+02 : f32
    %8 = vector.broadcast %cst_9 : f32 to vector<128x1xf32>
    %9 = arith.divf %7, %8 : vector<128x1xf32>
    %10 = vector.broadcast %9 : vector<128x1xf32> to vector<128x192xf32>
    %11 = arith.subf %3, %10 : vector<128x192xf32>
    %12 = arith.mulf %11, %11 : vector<128x192xf32>
    %cst_10 = arith.constant dense<0.000000e+00> : vector<128xf32>
    %13 = vector.multi_reduction <add>, %12, %cst_10 [1] : vector<128x192xf32> to vector<128xf32>
    %14 = vector.shape_cast %13 : vector<128xf32> to vector<128x1xf32>
    %cst_11 = arith.constant 1.920000e+02 : f32
    %15 = vector.broadcast %cst_11 : f32 to vector<128x1xf32>
    %16 = arith.divf %14, %15 : vector<128x1xf32>
    %17 = vector.broadcast %9 : vector<128x1xf32> to vector<128x192xf32>
    %18 = arith.subf %3, %17 : vector<128x192xf32>
    %cst_12 = arith.constant 9.99999974E-6 : f32
    %19 = vector.broadcast %cst_12 : f32 to vector<128x1xf32>
    %20 = arith.addf %16, %19 : vector<128x1xf32>
    %21 = math.rsqrt %20 : vector<128x1xf32>
    %22 = vector.broadcast %21 : vector<128x1xf32> to vector<128x192xf32>
    %23 = arith.mulf %18, %22 : vector<128x192xf32>
    %24 = vector.broadcast %4 : vector<1x192xf32> to vector<128x192xf32>
    %25 = arith.mulf %23, %24 : vector<128x192xf32>
    %26 = vector.broadcast %5 : vector<1x192xf32> to vector<128x192xf32>
    %27 = arith.addf %25, %26 : vector<128x192xf32>
    %28 = arith.truncf %27 : vector<128x192xf32> to vector<128x192xbf16>
    %c0_13 = arith.constant 0 : index
    %c0_14 = arith.constant 0 : index
    %29 = vector.load %arg5[%c0_13, %c0_14] : memref<384x256xbf16, #tpu.memory_space<vmem>>, vector<384x256xbf16>
    %cst_15 = arith.constant dense<0.000000e+00> : vector<128x256xf32>
    %30 = tpu.matmul %1, %29, %cst_15 {dimension_numbers = #tpu.dot_dimension_numbers<[1], [0], [0], [1], [0, 0, 1, 1], [], []>} : vector<128x384xbf16>, vector<384x256xbf16>, vector<128x256xf32> -> vector<128x256xf32>
    %c0_16 = arith.constant 0 : index
    %c0_17 = arith.constant 0 : index
    %31 = vector.load %arg6[%c0_16, %c0_17] : memref<1x256xf32, #tpu.memory_space<vmem>>, vector<1x256xf32>
    %c0_18 = arith.constant 0 : index
    %c0_19 = arith.constant 0 : index
    %32 = vector.load %arg7[%c0_18, %c0_19] : memref<1x256xf32, #tpu.memory_space<vmem>>, vector<1x256xf32>
    %cst_20 = arith.constant dense<0.000000e+00> : vector<128xf32>
    %33 = vector.multi_reduction <add>, %30, %cst_20 [1] : vector<128x256xf32> to vector<128xf32>
    %34 = vector.shape_cast %33 : vector<128xf32> to vector<128x1xf32>
    %cst_21 = arith.constant 2.560000e+02 : f32
    %35 = vector.broadcast %cst_21 : f32 to vector<128x1xf32>
    %36 = arith.divf %34, %35 : vector<128x1xf32>
    %37 = vector.broadcast %36 : vector<128x1xf32> to vector<128x256xf32>
    %38 = arith.subf %30, %37 : vector<128x256xf32>
    %39 = arith.mulf %38, %38 : vector<128x256xf32>
    %cst_22 = arith.constant dense<0.000000e+00> : vector<128xf32>
    %40 = vector.multi_reduction <add>, %39, %cst_22 [1] : vector<128x256xf32> to vector<128xf32>
    %41 = vector.shape_cast %40 : vector<128xf32> to vector<128x1xf32>
    %cst_23 = arith.constant 2.560000e+02 : f32
    %42 = vector.broadcast %cst_23 : f32 to vector<128x1xf32>
    %43 = arith.divf %41, %42 : vector<128x1xf32>
    %44 = vector.broadcast %36 : vector<128x1xf32> to vector<128x256xf32>
    %45 = arith.subf %30, %44 : vector<128x256xf32>
    %cst_24 = arith.constant 9.99999974E-6 : f32
    %46 = vector.broadcast %cst_24 : f32 to vector<128x1xf32>
    %47 = arith.addf %43, %46 : vector<128x1xf32>
    %48 = math.rsqrt %47 : vector<128x1xf32>
    %49 = vector.broadcast %48 : vector<128x1xf32> to vector<128x256xf32>
    %50 = arith.mulf %45, %49 : vector<128x256xf32>
    %51 = vector.broadcast %31 : vector<1x256xf32> to vector<128x256xf32>
    %52 = arith.mulf %50, %51 : vector<128x256xf32>
    %53 = vector.broadcast %32 : vector<1x256xf32> to vector<128x256xf32>
    %54 = arith.addf %52, %53 : vector<128x256xf32>
    %55 = arith.truncf %54 : vector<128x256xf32> to vector<128x256xbf16>
    %c0_25 = arith.constant 0 : index
    %c0_26 = arith.constant 0 : index
    %c0_27 = arith.constant 0 : index
    %56 = vector.load %arg11[%c0_25, %c0_26, %c0_27] : memref<1x128x256xbf16, #tpu.memory_space<vmem>>, vector<1x128x256xbf16>
    %57 = vector.shape_cast %56 : vector<1x128x256xbf16> to vector<128x256xbf16>
    %58 = vector.shape_cast %55 : vector<128x256xbf16> to vector<1x128x256xbf16>
    tpu.vector_store %arg11[%c0_25, %c0_26, %c0_27], %58 {strides = array<i32>} : memref<1x128x256xbf16, #tpu.memory_space<vmem>>, vector<1x128x256xbf16>,
    %59 = tpu.iota {dimensions = array<i32: 0>} : vector<128x128xi32>
    %60 = tpu.iota {dimensions = array<i32: 1>} : vector<128x128xi32>
    %c0_i32 = arith.constant 0 : i32
    %61 = vector.broadcast %c0_i32 : i32 to vector<128x128xi32>
    %62 = arith.addi %59, %61 : vector<128x128xi32>
    %63 = arith.cmpi sle, %60, %62 : vector<128x128xi32>
    %cst_28 = arith.constant 0.000000e+00 : f32
    %cst_29 = arith.constant -1.000000e+30 : f32
    %64 = vector.broadcast %cst_28 : f32 to vector<128x128xf32>
    %65 = vector.broadcast %cst_29 : f32 to vector<128x128xf32>
    %66 = arith.select %63, %64, %65 : vector<128x128xi1>, vector<128x128xf32>
    %cst_30 = arith.constant 0.000000e+00 : f32
    %67 = vector.broadcast %cst_30 : f32 to vector<128x384xf32>
    %c0_i32_31 = arith.constant 0 : i32
    %c6_i32 = arith.constant 6 : i32
    %68 = arith.addi %c0_i32_31, %c6_i32 : i32
    %c1_i32 = arith.constant 1 : i32
    %69 = scf.for %arg12 = %c0_i32_31 to %68 step %c1_i32 iter_args(%arg13 = %67) -> (vector<128x384xf32>)  : i32 {
      %73 = arith.index_cast %arg12 : i32 to index
      %c0_36 = arith.constant 0 : index
      %c0_37 = arith.constant 0 : index
      %74 = vector.load %arg8[%73, %c0_36, %c0_37] : memref<6x192x256xbf16, #tpu.memory_space<vmem>>, vector<1x192x256xbf16>
      %75 = vector.shape_cast %74 : vector<1x192x256xbf16> to vector<192x256xbf16>
      %76 = arith.index_cast %arg12 : i32 to index
      %c0_38 = arith.constant 0 : index
      %c0_39 = arith.constant 0 : index
      %77 = vector.load %arg9[%76, %c0_38, %c0_39] : memref<6x256x384xbf16, #tpu.memory_space<vmem>>, vector<1x256x384xbf16>
      %78 = vector.shape_cast %77 : vector<1x256x384xbf16> to vector<256x384xbf16>
      %cst_40 = arith.constant dense<0.000000e+00> : vector<128x256xf32>
      %79 = tpu.matmul %28, %75, %cst_40 {dimension_numbers = #tpu.dot_dimension_numbers<[1], [0], [0], [1], [0, 0, 1, 1], [], []>} : vector<128x192xbf16>, vector<192x256xbf16>, vector<128x256xf32> -> vector<128x256xf32>
      %80 = arith.truncf %79 : vector<128x256xf32> to vector<128x256xbf16>
      %cst_41 = arith.constant dense<0.000000e+00> : vector<128x128xf32>
      %81 = tpu.matmul %80, %55, %cst_41 {dimension_numbers = #tpu.dot_dimension_numbers<[1], [1], [0], [0], [0, 0, 1, 0], [], []>} : vector<128x256xbf16>, vector<128x256xbf16>, vector<128x128xf32> -> vector<128x128xf32>
      %82 = arith.addf %81, %66 : vector<128x128xf32>
      %cst_42 = arith.constant dense<0xFF800000> : vector<128xf32>
      %83 = vector.multi_reduction <maximumf>, %82, %cst_42 [1] : vector<128x128xf32> to vector<128xf32>
      %84 = vector.shape_cast %83 : vector<128xf32> to vector<128x1xf32>
      %85 = vector.broadcast %84 : vector<128x1xf32> to vector<128x128xf32>
      %86 = arith.subf %82, %85 : vector<128x128xf32>
      %87 = math.exp %86 : vector<128x128xf32>
      %cst_43 = arith.constant dense<0.000000e+00> : vector<128xf32>
      %88 = vector.multi_reduction <add>, %87, %cst_43 [1] : vector<128x128xf32> to vector<128xf32>
      %89 = vector.shape_cast %88 : vector<128xf32> to vector<128x1xf32>
      %90 = tpu.reciprocal %89 {approx = true} : vector<128x1xf32> -> vector<128x1xf32>
      %91 = vector.broadcast %90 : vector<128x1xf32> to vector<128x128xf32>
      %92 = arith.mulf %87, %91 : vector<128x128xf32>
      %93 = arith.truncf %92 : vector<128x128xf32> to vector<128x128xbf16>
      %cst_44 = arith.constant dense<0.000000e+00> : vector<128x256xf32>
      %94 = tpu.matmul %93, %55, %cst_44 {dimension_numbers = #tpu.dot_dimension_numbers<[1], [0], [0], [1], [0, 0, 1, 1], [], []>} : vector<128x128xbf16>, vector<128x256xbf16>, vector<128x256xf32> -> vector<128x256xf32>
      %95 = arith.truncf %94 : vector<128x256xf32> to vector<128x256xbf16>
      %cst_45 = arith.constant dense<0.000000e+00> : vector<128x384xf32>
      %96 = tpu.matmul %95, %78, %cst_45 {dimension_numbers = #tpu.dot_dimension_numbers<[1], [0], [0], [1], [0, 0, 1, 1], [], []>} : vector<128x256xbf16>, vector<256x384xbf16>, vector<128x384xf32> -> vector<128x384xf32>
      %97 = arith.addf %arg13, %96 : vector<128x384xf32>
      scf.yield %97 : vector<128x384xf32>
    }
    %c6_i32_32 = arith.constant 6 : i32
    %c0_33 = arith.constant 0 : index
    %c0_34 = arith.constant 0 : index
    %c0_35 = arith.constant 0 : index
    %70 = vector.load %arg10[%c0_33, %c0_34, %c0_35] : memref<1x128x384xf32, #tpu.memory_space<vmem>>, vector<1x128x384xf32>
    %71 = vector.shape_cast %70 : vector<1x128x384xf32> to vector<128x384xf32>
    %72 = vector.shape_cast %69 : vector<128x384xf32> to vector<1x128x384xf32>
    tpu.vector_store %arg10[%c0_33, %c0_34, %c0_35], %72 {strides = array<i32>} : memref<1x128x384xf32, #tpu.memory_space<vmem>>, vector<1x128x384xf32>,
    return
  }
  func.func @transform_0(%arg0: i32) -> (i32, i32, i32) {
    %c0_i32 = arith.constant 0 : i32
    %c0_i32_0 = arith.constant 0 : i32
    %c0_i32_1 = arith.constant 0 : i32
    return %arg0, %c0_i32, %c0_i32_0 : i32, i32, i32
  }
  func.func @transform_1(%arg0: i32) -> (i32, i32) {
    %c0_i32 = arith.constant 0 : i32
    %c0_i32_0 = arith.constant 0 : i32
    %c0_i32_1 = arith.constant 0 : i32
    return %c0_i32, %c0_i32_0 : i32, i32
  }
  func.func @transform_2(%arg0: i32) -> (i32, i32) {
    %c0_i32 = arith.constant 0 : i32
    %c0_i32_0 = arith.constant 0 : i32
    %c0_i32_1 = arith.constant 0 : i32
    return %c0_i32, %c0_i32_0 : i32, i32
  }
  func.func @transform_3(%arg0: i32) -> (i32, i32) {
    %c0_i32 = arith.constant 0 : i32
    %c0_i32_0 = arith.constant 0 : i32
    %c0_i32_1 = arith.constant 0 : i32
    return %c0_i32, %c0_i32_0 : i32, i32
  }
  func.func @transform_4(%arg0: i32) -> (i32, i32) {
    %c0_i32 = arith.constant 0 : i32
    %c0_i32_0 = arith.constant 0 : i32
    %c0_i32_1 = arith.constant 0 : i32
    return %c0_i32, %c0_i32_0 : i32, i32
  }
  func.func @transform_5(%arg0: i32) -> (i32, i32) {
    %c0_i32 = arith.constant 0 : i32
    %c0_i32_0 = arith.constant 0 : i32
    %c0_i32_1 = arith.constant 0 : i32
    return %c0_i32, %c0_i32_0 : i32, i32
  }
  func.func @transform_6(%arg0: i32) -> (i32, i32) {
    %c0_i32 = arith.constant 0 : i32
    %c0_i32_0 = arith.constant 0 : i32
    %c0_i32_1 = arith.constant 0 : i32
    return %c0_i32, %c0_i32_0 : i32, i32
  }
  func.func @transform_7(%arg0: i32) -> (i32, i32, i32) {
    %c0_i32 = arith.constant 0 : i32
    %c0_i32_0 = arith.constant 0 : i32
    %c0_i32_1 = arith.constant 0 : i32
    %c0_i32_2 = arith.constant 0 : i32
    return %c0_i32, %c0_i32_0, %c0_i32_1 : i32, i32, i32
  }
  func.func @transform_8(%arg0: i32) -> (i32, i32, i32) {
    %c0_i32 = arith.constant 0 : i32
    %c0_i32_0 = arith.constant 0 : i32
    %c0_i32_1 = arith.constant 0 : i32
    %c0_i32_2 = arith.constant 0 : i32
    return %c0_i32, %c0_i32_0, %c0_i32_1 : i32, i32, i32
  }
  func.func @transform_9(%arg0: i32) -> (i32, i32, i32) {
    %c0_i32 = arith.constant 0 : i32
    %c0_i32_0 = arith.constant 0 : i32
    %c0_i32_1 = arith.constant 0 : i32
    return %arg0, %c0_i32, %c0_i32_0 : i32, i32, i32
  }
  func.func @transform_10(%arg0: i32) -> (i32, i32, i32) {
    %c0_i32 = arith.constant 0 : i32
    %c0_i32_0 = arith.constant 0 : i32
    %c0_i32_1 = arith.constant 0 : i32
    return %arg0, %c0_i32, %c0_i32_0 : i32, i32, i32
  }
}

</mosaic_0001>

<llo_original>
// kernel: tpu_custom_call.1
$region0: #{tpu_custom_call.1}
  #allocation0 [shape = 'u32[]', space=smem, size = 0x4, offset = 0x4, fixed_abs, tag = 'smem constant byte address 0x4 - core index']
  #allocation1 [shape = 'u32[144,128]{1,0:T(1,128)}', space=vmem, size = 0x12000, scoped, tag = 'internal scratch']
  %s0 = inlined_call_operand.hbm [shape: bf16[2,128,384], index: 0, kind: input, shape index: {}]
  %s1 = inlined_call_operand.vmem [shape: bf16[384,192], index: 1, kind: input, shape index: {}]
  %s2 = inlined_call_operand.hbm [shape: f32[1,192], index: 2, kind: input, shape index: {}]
  %s3 = inlined_call_operand.hbm [shape: f32[1,192], index: 3, kind: input, shape index: {}]
  %s4 = inlined_call_operand.hbm [shape: bf16[384,256], index: 4, kind: input, shape index: {}]
  %s5 = inlined_call_operand.hbm [shape: f32[1,256], index: 5, kind: input, shape index: {}]
  %s6 = inlined_call_operand.hbm [shape: f32[1,256], index: 6, kind: input, shape index: {}]
  %s7 = inlined_call_operand.hbm [shape: bf16[6,192,256], index: 7, kind: input, shape index: {}]
  %s8 = inlined_call_operand.hbm [shape: bf16[6,256,384], index: 8, kind: input, shape index: {}]
  %s9 = inlined_call_operand.hbm [shape: f32[2,128,384], index: 9, kind: output, shape index: {0}]
  %s10 = inlined_call_operand.hbm [shape: bf16[2,128,256], index: 10, kind: output, shape index: {1}]
  %11 = xla_tuple %s9, %s10
  %s12 = sld [smem:[#allocation0]]
  $region116: #{tpu_custom_call.1} parent=0
    _
  %s14 = ssub.s32 1, %s12
  %s15 = scalar_select 0, %s14, %s12
  $region1: #{tpu_custom_call.1} parent=0
    #allocation2 [shape = 'u8[196608]{0}', space=vmem, size = 0x30000, scoped, tag = 'input window, operand 0']
    #allocation3 [shape = 's32[2]{0}', space=sflag, size = 0x8, scoped, tag = 'scoped memory for tpu_custom_call.1']
    #allocation4 [shape = 's32[2]{0}', space=sflag, size = 0x8, scoped, tag = 'scoped memory for tpu_custom_call.1']
    #allocation5 [shape = 'u8[1024]{0}', space=vmem, size = 0x400, scoped, tag = 'input window, operand 2, single buffered']
    #allocation6 [shape = 's32[1]{0}', space=sflag, size = 0x4, scoped, tag = 'scoped memory for tpu_custom_call.1']
    #allocation7 [shape = 'u8[1024]{0}', space=vmem, size = 0x400, scoped, tag = 'input window, operand 3, single buffered']
    #allocation8 [shape = 'u8[196608]{0}', space=vmem, size = 0x30000, scoped, tag = 'input window, operand 4, single buffered']
    #allocation9 [shape = 's32[1]{0}', space=sflag, size = 0x4, scoped, tag = 'scoped memory for tpu_custom_call.1']
    #allocation10 [shape = 'u8[1024]{0}', space=vmem, size = 0x400, scoped, tag = 'input window, operand 5, single buffered']
    #allocation11 [shape = 'u8[1024]{0}', space=vmem, size = 0x400, scoped, tag = 'input window, operand 6, single buffered']
    #allocation12 [shape = 's32[1]{0}', space=sflag, size = 0x4, scoped, tag = 'scoped memory for tpu_custom_call.1']
    #allocation13 [shape = 'u8[589824]{0}', space=vmem, size = 0x90000, scoped, tag = 'input window, operand 7, single buffered']
    #allocation14 [shape = 'u8[1179648]{0}', space=vmem, size = 0x120000, scoped, tag = 'input window, operand 8, single buffered']
    #allocation15 [shape = 's32[1]{0}', space=sflag, size = 0x4, scoped, tag = 'scoped memory for tpu_custom_call.1']
    #allocation16 [shape = 'u8[393216]{0}', space=vmem, size = 0x60000, scoped, tag = 'output window, operand 0']
    #allocation17 [shape = 'u8[131072]{0}', space=vmem, size = 0x20000, scoped, tag = 'output window, operand 1']
    #allocation18 [shape = 's32[2]{0}', space=sflag, size = 0x8, scoped, tag = 'scoped memory for tpu_custom_call.1']
    %16 = vsyncpa [#allocation3], 0
    %s17 = scalar_lea.sflag [#allocation3], 1
    %18 = vsyncpa %s17, 0
    %19 = vsyncpa [#allocation6], 0
    %20 = vsyncpa [#allocation9], 0
    %21 = vsyncpa [#allocation12], 0
    %22 = vsyncpa [#allocation15], 0
    %23 = vsyncpa [#allocation4], 0
    %s24 = scalar_lea.sflag [#allocation4], 1
    %25 = vsyncpa %s24, 0
    %26 = vsyncpa [#allocation18], 0
    %s27 = scalar_lea.sflag [#allocation18], 1
    %28 = vsyncpa %s27, 0
    loop: start=0, step=1, limit=4
    $region2: #{tpu_custom_call.1} parent=1 // loop_pre_header
      _
    $region3: #{tpu_custom_call.1} parent=1 // loop_header
      %s30 = sphi 0, %s34
      %p31 = scmp.ge.s32.totalorder %s30, 4
      %s40 = sphi 0, %s42
      %s43 = sphi 0, %s40
      %s44 = sphi 0, %s43
      %s60 = sphi 0, %s44
      %s64 = sphi 0, %s64
      %s66 = sphi 0, %s64
      %s67 = sphi 0, %s66
      %s81 = sphi 0, %s67
      %s85 = sphi 0, %s85
      %s87 = sphi 0, %s85
      %s88 = sphi 0, %s87
      %s102 = sphi 0, %s88
      %s106 = sphi 0, %s106
      %s108 = sphi 0, %s106
      %s109 = sphi 0, %s108
      %s123 = sphi 0, %s109
      %s127 = sphi 0, %s127
      %s129 = sphi 0, %s127
      %s130 = sphi 0, %s129
      %s144 = sphi 0, %s130
      %s148 = sphi 0, %s148
      %s150 = sphi 0, %s148
      %s151 = sphi 0, %s150
      %s165 = sphi 0, %s151
      %s169 = sphi 0, %s169
      %s171 = sphi 0, %s169
      %s172 = sphi 0, %s171
      %s186 = sphi 0, %s172
      %s190 = sphi 0, %s190
      %s192 = sphi 0, %s190
      %s193 = sphi 0, %s192
      %s207 = sphi 0, %s193
      %s211 = sphi 0, %s211
      %s213 = sphi 0, %s211
      %s214 = sphi 0, %s213
      %s228 = sphi 0, %s214
      %s234 = sphi 0, %s236
      %s237 = sphi 0, %s234
      %s238 = sphi 0, %s237
      %s254 = sphi 0, %s238
      %s260 = sphi 0, %s262
      %s263 = sphi 0, %s260
      %s264 = sphi 0, %s263
      %s280 = sphi 0, %s264
    $region4: #{tpu_custom_call.1} parent=1 // loop_header_branch
      %33 = sbr.rel (%p31) target = $region8
    $region5: #{tpu_custom_call.1} parent=1 // loop_body
      %s35 = ssub.s32 %s30, 1
      %s36 = ssub.s32 %s30, 2
      %s37 = sadd.s32 %s30, 1
      %s38 = ssub.s32 %s30, %s37
      %p39 = scmp.eq.s32.totalorder %s38, 0
      %s41 = sadd.s32 %s40, 1
      %s42 = scalar_select %p39, %s40, %s41
      %p45 = pneg %p39
      %p46 = scmp.eq.s32.totalorder %s30, 1
      %p47 = por %p45, %p46
      %p48 = scmp.ne.s32.totalorder %s40, %s43
      %p49 = scmp.eq.s32.totalorder %s30, 0
      %p50 = por %p48, %p49
      %p51 = scmp.ne.s32.totalorder %s40, %s43
      %p52 = scmp.eq.s32.totalorder %s35, 1
      %p53 = por %p51, %p52
      %p54 = scmp.ne.s32.totalorder %s43, %s44
      %p55 = scmp.eq.s32.totalorder %s35, 0
      %p56 = por %p54, %p55
      %p57 = scmp.ne.s32.totalorder %s43, %s44
      %p58 = scmp.eq.s32.totalorder %s36, 1
      %p59 = por %p57, %p58
      %p61 = scmp.ne.s32.totalorder %s44, %s60
      %p62 = scmp.eq.s32.totalorder %s36, 0
      %p63 = por %p61, %p62
      %s65 = sadd.s32 %s64, 1
      %p68 = scmp.eq.s32.totalorder %s30, 1
      %p69 = scmp.ne.s32.totalorder %s64, %s66
      %p70 = scmp.eq.s32.totalorder %s30, 0
      %p71 = por %p69, %p70
      %p72 = scmp.ne.s32.totalorder %s64, %s66
      %p73 = scmp.eq.s32.totalorder %s35, 1
      %p74 = por %p72, %p73
      %p75 = scmp.ne.s32.totalorder %s66, %s67
      %p76 = scmp.eq.s32.totalorder %s35, 0
      %p77 = por %p75, %p76
      %p78 = scmp.ne.s32.totalorder %s66, %s67
      %p79 = scmp.eq.s32.totalorder %s36, 1
      %p80 = por %p78, %p79
      %p82 = scmp.ne.s32.totalorder %s67, %s81
      %p83 = scmp.eq.s32.totalorder %s36, 0
      %p84 = por %p82, %p83
      %s86 = sadd.s32 %s85, 1
      %p89 = scmp.eq.s32.totalorder %s30, 1
      %p90 = scmp.ne.s32.totalorder %s85, %s87
      %p91 = scmp.eq.s32.totalorder %s30, 0
      %p92 = por %p90, %p91
      %p93 = scmp.ne.s32.totalorder %s85, %s87
      %p94 = scmp.eq.s32.totalorder %s35, 1
      %p95 = por %p93, %p94
      %p96 = scmp.ne.s32.totalorder %s87, %s88
      %p97 = scmp.eq.s32.totalorder %s35, 0
      %p98 = por %p96, %p97
      %p99 = scmp.ne.s32.totalorder %s87, %s88
      %p100 = scmp.eq.s32.totalorder %s36, 1
      %p101 = por %p99, %p100
      %p103 = scmp.ne.s32.totalorder %s88, %s102
      %p104 = scmp.eq.s32.totalorder %s36, 0
      %p105 = por %p103, %p104
      %s107 = sadd.s32 %s106, 1
      %p110 = scmp.eq.s32.totalorder %s30, 1
      %p111 = scmp.ne.s32.totalorder %s106, %s108
      %p112 = scmp.eq.s32.totalorder %s30, 0
      %p113 = por %p111, %p112
      %p114 = scmp.ne.s32.totalorder %s106, %s108
      %p115 = scmp.eq.s32.totalorder %s35, 1
      %p116 = por %p114, %p115
      %p117 = scmp.ne.s32.totalorder %s108, %s109
      %p118 = scmp.eq.s32.totalorder %s35, 0
      %p119 = por %p117, %p118
      %p120 = scmp.ne.s32.totalorder %s108, %s109
      %p121 = scmp.eq.s32.totalorder %s36, 1
      %p122 = por %p120, %p121
      %p124 = scmp.ne.s32.totalorder %s109, %s123
      %p125 = scmp.eq.s32.totalorder %s36, 0
      %p126 = por %p124, %p125
      %s128 = sadd.s32 %s127, 1
      %p131 = scmp.eq.s32.totalorder %s30, 1
      %p132 = scmp.ne.s32.totalorder %s127, %s129
      %p133 = scmp.eq.s32.totalorder %s30, 0
      %p134 = por %p132, %p133
      %p135 = scmp.ne.s32.totalorder %s127, %s129
      %p136 = scmp.eq.s32.totalorder %s35, 1
      %p137 = por %p135, %p136
      %p138 = scmp.ne.s32.totalorder %s129, %s130
      %p139 = scmp.eq.s32.totalorder %s35, 0
      %p140 = por %p138, %p139
      %p141 = scmp.ne.s32.totalorder %s129, %s130
      %p142 = scmp.eq.s32.totalorder %s36, 1
      %p143 = por %p141, %p142
      %p145 = scmp.ne.s32.totalorder %s130, %s144
      %p146 = scmp.eq.s32.totalorder %s36, 0
      %p147 = por %p145, %p146
      %s149 = sadd.s32 %s148, 1
      %p152 = scmp.eq.s32.totalorder %s30, 1
      %p153 = scmp.ne.s32.totalorder %s148, %s150
      %p154 = scmp.eq.s32.totalorder %s30, 0
      %p155 = por %p153, %p154
      %p156 = scmp.ne.s32.totalorder %s148, %s150
      %p157 = scmp.eq.s32.totalorder %s35, 1
      %p158 = por %p156, %p157
      %p159 = scmp.ne.s32.totalorder %s150, %s151
      %p160 = scmp.eq.s32.totalorder %s35, 0
      %p161 = por %p159, %p160
      %p162 = scmp.ne.s32.totalorder %s150, %s151
      %p163 = scmp.eq.s32.totalorder %s36, 1
      %p164 = por %p162, %p163
      %p166 = scmp.ne.s32.totalorder %s151, %s165
      %p167 = scmp.eq.s32.totalorder %s36, 0
      %p168 = por %p166, %p167
      %s170 = sadd.s32 %s169, 1
      %p173 = scmp.eq.s32.totalorder %s30, 1
      %p174 = scmp.ne.s32.totalorder %s169, %s171
      %p175 = scmp.eq.s32.totalorder %s30, 0
      %p176 = por %p174, %p175
      %p177 = scmp.ne.s32.totalorder %s169, %s171
      %p178 = scmp.eq.s32.totalorder %s35, 1
      %p179 = por %p177, %p178
      %p180 = scmp.ne.s32.totalorder %s171, %s172
      %p181 = scmp.eq.s32.totalorder %s35, 0
      %p182 = por %p180, %p181
      %p183 = scmp.ne.s32.totalorder %s171, %s172
      %p184 = scmp.eq.s32.totalorder %s36, 1
      %p185 = por %p183, %p184
      %p187 = scmp.ne.s32.totalorder %s172, %s186
      %p188 = scmp.eq.s32.totalorder %s36, 0
      %p189 = por %p187, %p188
      %s191 = sadd.s32 %s190, 1
      %p194 = scmp.eq.s32.totalorder %s30, 1
      %p195 = scmp.ne.s32.totalorder %s190, %s192
      %p196 = scmp.eq.s32.totalorder %s30, 0
      %p197 = por %p195, %p196
      %p198 = scmp.ne.s32.totalorder %s190, %s192
      %p199 = scmp.eq.s32.totalorder %s35, 1
      %p200 = por %p198, %p199
      %p201 = scmp.ne.s32.totalorder %s192, %s193
      %p202 = scmp.eq.s32.totalorder %s35, 0
      %p203 = por %p201, %p202
      %p204 = scmp.ne.s32.totalorder %s192, %s193
      %p205 = scmp.eq.s32.totalorder %s36, 1
      %p206 = por %p204, %p205
      %p208 = scmp.ne.s32.totalorder %s193, %s207
      %p209 = scmp.eq.s32.totalorder %s36, 0
      %p210 = por %p208, %p209
      %s212 = sadd.s32 %s211, 1
      %p215 = scmp.eq.s32.totalorder %s30, 1
      %p216 = scmp.ne.s32.totalorder %s211, %s213
      %p217 = scmp.eq.s32.totalorder %s30, 0
      %p218 = por %p216, %p217
      %p219 = scmp.ne.s32.totalorder %s211, %s213
      %p220 = scmp.eq.s32.totalorder %s35, 1
      %p221 = por %p219, %p220
      %p222 = scmp.ne.s32.totalorder %s213, %s214
      %p223 = scmp.eq.s32.totalorder %s35, 0
      %p224 = por %p222, %p223
      %p225 = scmp.ne.s32.totalorder %s213, %s214
      %p226 = scmp.eq.s32.totalorder %s36, 1
      %p227 = por %p225, %p226
      %p229 = scmp.ne.s32.totalorder %s214, %s228
      %p230 = scmp.eq.s32.totalorder %s36, 0
      %p231 = por %p229, %p230
      %s232 = ssub.s32 %s30, %s37
      %p233 = scmp.eq.s32.totalorder %s232, 0
      %s235 = sadd.s32 %s234, 1
      %s236 = scalar_select %p233, %s234, %s235
      %p239 = pneg %p233
      %p240 = scmp.eq.s32.totalorder %s30, 1
      %p241 = por %p239, %p240
      %p242 = scmp.ne.s32.totalorder %s234, %s237
      %p243 = scmp.eq.s32.totalorder %s30, 0
      %p244 = por %p242, %p243
      %p245 = scmp.ne.s32.totalorder %s234, %s237
      %p246 = scmp.eq.s32.totalorder %s35, 1
      %p247 = por %p245, %p246
      %p248 = scmp.ne.s32.totalorder %s237, %s238
      %p249 = scmp.eq.s32.totalorder %s35, 0
      %p250 = por %p248, %p249
      %p251 = scmp.ne.s32.totalorder %s237, %s238
      %p252 = scmp.eq.s32.totalorder %s36, 1
      %p253 = por %p251, %p252
      %p255 = scmp.ne.s32.totalorder %s238, %s254
      %p256 = scmp.eq.s32.totalorder %s36, 0
      %p257 = por %p255, %p256
      %s258 = ssub.s32 %s30, %s37
      %p259 = scmp.eq.s32.totalorder %s258, 0
      %s261 = sadd.s32 %s260, 1
      %s262 = scalar_select %p259, %s260, %s261
      %p265 = pneg %p259
      %p266 = scmp.eq.s32.totalorder %s30, 1
      %p267 = por %p265, %p266
      %p268 = scmp.ne.s32.totalorder %s260, %s263
      %p269 = scmp.eq.s32.totalorder %s30, 0
      %p270 = por %p268, %p269
      %p271 = scmp.ne.s32.totalorder %s260, %s263
      %p272 = scmp.eq.s32.totalorder %s35, 1
      %p273 = por %p271, %p272
      %p274 = scmp.ne.s32.totalorder %s263, %s264
      %p275 = scmp.eq.s32.totalorder %s35, 0
      %p276 = por %p274, %p275
      %p277 = scmp.ne.s32.totalorder %s263, %s264
      %p278 = scmp.eq.s32.totalorder %s36, 1
      %p279 = por %p277, %p278
      %p281 = scmp.ne.s32.totalorder %s264, %s280
      %p282 = scmp.eq.s32.totalorder %s36, 0
      %p283 = por %p281, %p282
      %p284 = scmp.le.s32.totalorder 1, %s30
      %p285 = scmp.lt.s32.totalorder %s30, 3
      %p286 = pnand %p284, %p285
      %p287 = pneg %p286
      // Predicated region
      $region9: #{tpu_custom_call.1} parent=5 // pred_check
        _
      $region10: #{tpu_custom_call.1} parent=5 // pred_check_branch
        %289 = sbr.rel (%p286) target = $region12
      $region11: #{tpu_custom_call.1} parent=5 // pred_region
        %s290 = ssub.s32 %s30, 1
        // Predicated region
        $region13: #{tpu_custom_call.1} parent=11 // pred_check
          %p291 = pneg %p77
        $region14: #{tpu_custom_call.1} parent=11 // pred_check_branch
          %293 = sbr.rel (%p291) target = $region16
        $region15: #{tpu_custom_call.1} parent=11 // pred_region
          _
        $region16: #{tpu_custom_call.1} parent=11 // pred_fallthru
          _
        // Predicated region
        $region17: #{tpu_custom_call.1} parent=11 // pred_check
          %p294 = pneg %p98
        $region18: #{tpu_custom_call.1} parent=11 // pred_check_branch
          %296 = sbr.rel (%p294) target = $region20
        $region19: #{tpu_custom_call.1} parent=11 // pred_region
          %s298 = ssub.s32 32, 32
          %299 = vsyncadd [#allocation6], %s298
          %s301 = sshll.u32 [#allocation5], 4
          %s302 = int_to_ptr.vmem [resolvable:$true] %s301
          %304 = dma.hbm_to_vmem [thread:$0]  %s2, 32, %s302, [#allocation6]
        $region20: #{tpu_custom_call.1} parent=11 // pred_fallthru
          _
        // Predicated region
        $region21: #{tpu_custom_call.1} parent=11 // pred_check
          %p305 = pneg %p119
        $region22: #{tpu_custom_call.1} parent=11 // pred_check_branch
          %307 = sbr.rel (%p305) target = $region24
        $region23: #{tpu_custom_call.1} parent=11 // pred_region
          %s309 = ssub.s32 32, 32
          %310 = vsyncadd [#allocation6], %s309
          %s312 = sshll.u32 [#allocation7], 4
          %s313 = int_to_ptr.vmem [resolvable:$true] %s312
          %315 = dma.hbm_to_vmem [thread:$0]  %s3, 32, %s313, [#allocation6]
        $region24: #{tpu_custom_call.1} parent=11 // pred_fallthru
          _
        // Predicated region
        $region25: #{tpu_custom_call.1} parent=11 // pred_check
          %p316 = pneg %p140
        $region26: #{tpu_custom_call.1} parent=11 // pred_check_branch
          %318 = sbr.rel (%p316) target = $region28
        $region27: #{tpu_custom_call.1} parent=11 // pred_region
          %s320 = ssub.s32 6144, 6144
          %321 = vsyncadd [#allocation9], %s320
          %s322 = sshll.u32 [#allocation8], 4
          %s323 = int_to_ptr.vmem [resolvable:$true] %s322
          %328 = dma.hbm_to_vmem [thread:$0]  %s4, 6144, %s323, [#allocation9], 128, 128, 8
        $region28: #{tpu_custom_call.1} parent=11 // pred_fallthru
          _
        // Predicated region
        $region29: #{tpu_custom_call.1} parent=11 // pred_check
          %p329 = pneg %p161
        $region30: #{tpu_custom_call.1} parent=11 // pred_check_branch
          %331 = sbr.rel (%p329) target = $region32
        $region31: #{tpu_custom_call.1} parent=11 // pred_region
          %s333 = ssub.s32 32, 32
          %334 = vsyncadd [#allocation9], %s333
          %s336 = sshll.u32 [#allocation10], 4
          %s337 = int_to_ptr.vmem [resolvable:$true] %s336
          %339 = dma.hbm_to_vmem [thread:$0]  %s5, 32, %s337, [#allocation9]
        $region32: #{tpu_custom_call.1} parent=11 // pred_fallthru
          _
        // Predicated region
        $region33: #{tpu_custom_call.1} parent=11 // pred_check
          %p340 = pneg %p182
        $region34: #{tpu_custom_call.1} parent=11 // pred_check_branch
          %342 = sbr.rel (%p340) target = $region36
        $region35: #{tpu_custom_call.1} parent=11 // pred_region
          %s344 = ssub.s32 32, 32
          %345 = vsyncadd [#allocation12], %s344
          %s347 = sshll.u32 [#allocation11], 4
          %s348 = int_to_ptr.vmem [resolvable:$true] %s347
          %350 = dma.hbm_to_vmem [thread:$0]  %s6, 32, %s348, [#allocation12]
        $region36: #{tpu_custom_call.1} parent=11 // pred_fallthru
          _
        // Predicated region
        $region37: #{tpu_custom_call.1} parent=11 // pred_check
          %p351 = pneg %p203
        $region38: #{tpu_custom_call.1} parent=11 // pred_check_branch
          %353 = sbr.rel (%p351) target = $region40
        $region39: #{tpu_custom_call.1} parent=11 // pred_region
          %s355 = ssub.s32 18432, 18432
          %356 = vsyncadd [#allocation12], %s355
          %s357 = sshll.u32 [#allocation13], 4
          %s358 = int_to_ptr.vmem [resolvable:$true] %s357
          %363 = dma.hbm_to_vmem [thread:$0]  %s7, 18432, %s358, [#allocation12], 128, 128, 8
        $region40: #{tpu_custom_call.1} parent=11 // pred_fallthru
          _
        // Predicated region
        $region41: #{tpu_custom_call.1} parent=11 // pred_check
          %p364 = pneg %p224
        $region42: #{tpu_custom_call.1} parent=11 // pred_check_branch
          %366 = sbr.rel (%p364) target = $region44
        $region43: #{tpu_custom_call.1} parent=11 // pred_region
          %s368 = ssub.s32 36864, 36864
          %369 = vsyncadd [#allocation15], %s368
          %s370 = sshll.u32 [#allocation14], 4
          %s371 = int_to_ptr.vmem [resolvable:$true] %s370
          %376 = dma.hbm_to_vmem [thread:$0]  %s8, 36864, %s371, [#allocation15], 192, 192, 12
        $region44: #{tpu_custom_call.1} parent=11 // pred_fallthru
          _
      $region12: #{tpu_custom_call.1} parent=5 // pred_fallthru
        _
      %p377 = scmp.lt.s32.totalorder %s30, 2
      // Predicated region
      $region45: #{tpu_custom_call.1} parent=5 // pred_check
        %p378 = pneg %p377
      $region46: #{tpu_custom_call.1} parent=5 // pred_check_branch
        %380 = sbr.rel (%p378) target = $region48
      $region47: #{tpu_custom_call.1} parent=5 // pred_region
        // Predicated region
        $region49: #{tpu_custom_call.1} parent=47 // pred_check
          %p381 = pneg %p50
        $region50: #{tpu_custom_call.1} parent=47 // pred_check_branch
          %383 = sbr.rel (%p381) target = $region52
        $region51: #{tpu_custom_call.1} parent=47 // pred_region
          %s384 = sand.u32 %s40, 1
          %s385 = scalar_lea.sflag [#allocation3], %s384
          %s386 = sand.u32 %s40, 1
          %s387 = smul.addr %s386, 192
          %s388 = scalar_lea.vmem [#allocation2], %s387
          %s390 = ssub.s32 3072, 3072
          %391 = vsyncadd %s385, %s390
          %s392 = smul.addr %s30, 48
          %s393 = smul.addr %s392, 64
          %s394 = scalar_lea.hbm %s0, %s393
          %s395 = sshll.u32 %s388, 4
          %s396 = int_to_ptr.vmem [resolvable:$true] %s395
          %401 = dma.hbm_to_vmem [thread:$0]  %s394, 3072, %s396, %s385, 192, 192, 12
        $region52: #{tpu_custom_call.1} parent=47 // pred_fallthru
          _
      $region48: #{tpu_custom_call.1} parent=5 // pred_fallthru
        _
      %p402 = scmp.le.s32.totalorder 1, %s30
      %p403 = scmp.lt.s32.totalorder %s30, 3
      %p404 = pnand %p402, %p403
      %p405 = pneg %p404
      // Predicated region
      $region53: #{tpu_custom_call.1} parent=5 // pred_check
        _
      $region54: #{tpu_custom_call.1} parent=5 // pred_check_branch
        %407 = sbr.rel (%p404) target = $region56
      $region55: #{tpu_custom_call.1} parent=5 // pred_region
        %s408 = ssub.s32 %s30, 1
        %s409 = sand.u32 %s43, 1
        %s410 = scalar_lea.sflag [#allocation3], %s409
        %s411 = sand.u32 %s43, 1
        %s412 = smul.addr %s411, 192
        %s413 = scalar_lea.vmem [#allocation2], %s412
        // Predicated region
        $region57: #{tpu_custom_call.1} parent=55 // pred_check
          %p414 = pneg %p56
        $region58: #{tpu_custom_call.1} parent=55 // pred_check_branch
          %416 = sbr.rel (%p414) target = $region60
        $region59: #{tpu_custom_call.1} parent=55 // pred_region
          %417 = dma.done %s410, 3072
        $region60: #{tpu_custom_call.1} parent=55 // pred_fallthru
          _
        // Predicated region
        $region61: #{tpu_custom_call.1} parent=55 // pred_check
          %p418 = pneg %p98
        $region62: #{tpu_custom_call.1} parent=55 // pred_check_branch
          %420 = sbr.rel (%p418) target = $region64
        $region63: #{tpu_custom_call.1} parent=55 // pred_region
          %421 = dma.done [#allocation6], 32
        $region64: #{tpu_custom_call.1} parent=55 // pred_fallthru
          _
        // Predicated region
        $region65: #{tpu_custom_call.1} parent=55 // pred_check
          %p422 = pneg %p119
        $region66: #{tpu_custom_call.1} parent=55 // pred_check_branch
          %424 = sbr.rel (%p422) target = $region68
        $region67: #{tpu_custom_call.1} parent=55 // pred_region
          %425 = dma.done [#allocation6], 32
        $region68: #{tpu_custom_call.1} parent=55 // pred_fallthru
          _
        // Predicated region
        $region69: #{tpu_custom_call.1} parent=55 // pred_check
          %p426 = pneg %p140
        $region70: #{tpu_custom_call.1} parent=55 // pred_check_branch
          %428 = sbr.rel (%p426) target = $region72
        $region71: #{tpu_custom_call.1} parent=55 // pred_region
          %429 = dma.done [#allocation9], 6144
        $region72: #{tpu_custom_call.1} parent=55 // pred_fallthru
          _
        // Predicated region
        $region73: #{tpu_custom_call.1} parent=55 // pred_check
          %p430 = pneg %p161
        $region74: #{tpu_custom_call.1} parent=55 // pred_check_branch
          %432 = sbr.rel (%p430) target = $region76
        $region75: #{tpu_custom_call.1} parent=55 // pred_region
          %433 = dma.done [#allocation9], 32
        $region76: #{tpu_custom_call.1} parent=55 // pred_fallthru
          _
        // Predicated region
        $region77: #{tpu_custom_call.1} parent=55 // pred_check
          %p434 = pneg %p182
        $region78: #{tpu_custom_call.1} parent=55 // pred_check_branch
          %436 = sbr.rel (%p434) target = $region80
        $region79: #{tpu_custom_call.1} parent=55 // pred_region
          %437 = dma.done [#allocation12], 32
        $region80: #{tpu_custom_call.1} parent=55 // pred_fallthru
          _
        // Predicated region
        $region81: #{tpu_custom_call.1} parent=55 // pred_check
          %p438 = pneg %p203
        $region82: #{tpu_custom_call.1} parent=55 // pred_check_branch
          %440 = sbr.rel (%p438) target = $region84
        $region83: #{tpu_custom_call.1} parent=55 // pred_region
          %441 = dma.done [#allocation12], 18432
        $region84: #{tpu_custom_call.1} parent=55 // pred_fallthru
          _
        // Predicated region
        $region85: #{tpu_custom_call.1} parent=55 // pred_check
          %p442 = pneg %p224
        $region86: #{tpu_custom_call.1} parent=55 // pred_check_branch
          %444 = sbr.rel (%p442) target = $region88
        $region87: #{tpu_custom_call.1} parent=55 // pred_region
          %445 = dma.done [#allocation15], 36864
        $region88: #{tpu_custom_call.1} parent=55 // pred_fallthru
          _
        %s446 = sand.u32 %s43, 1
        %s447 = scalar_lea.sflag [#allocation3], %s446
        %s448 = sand.u32 %s43, 1
        %s449 = smul.addr %s448, 192
        %s450 = scalar_lea.vmem [#allocation2], %s449
        %p451 = pneg %p56
        %p452 = pneg %p53
        %p453 = pneg %p77
        %p454 = pneg %p74
        %p455 = pneg %p98
        %p456 = pneg %p95
        %p457 = pneg %p119
        %p458 = pneg %p116
        %p459 = pneg %p140
        %p460 = pneg %p137
        %p461 = pneg %p161
        %p462 = pneg %p158
        %p463 = pneg %p182
        %p464 = pneg %p179
        %p465 = pneg %p203
        %p466 = pneg %p200
        %p467 = pneg %p224
        %p468 = pneg %p221
        %p469 = pneg %p250
        %p470 = pneg %p247
        %s471 = sand.u32 %s237, 1
        %s472 = scalar_lea.sflag [#allocation4], %s471
        %s473 = sand.u32 %s237, 1
        %s474 = smul.addr %s473, 384
        %s475 = scalar_lea.vmem [#allocation16], %s474
        %p476 = pneg %p276
        %p477 = pneg %p273
        %s478 = sand.u32 %s263, 1
        %s479 = scalar_lea.sflag [#allocation18], %s478
        %s480 = sand.u32 %s263, 1
        %s481 = smul.addr %s480, 128
        %s482 = scalar_lea.vmem [#allocation17], %s481
        %v484 = vld [vmem:[%s413] sm:$0xff]
        %v485 = vld [vmem:[%s413 + $0x8] sm:$0xf]
        %v486 = vld [vmem:[%s413 + $0xc] sm:$0xff]
        %v487 = vld [vmem:[%s413 + $0x14] sm:$0xf]
        %v488 = vld [vmem:[%s413 + $0x18] sm:$0xff]
        %v489 = vld [vmem:[%s413 + $0x20] sm:$0xf]
        %v490 = vld [vmem:[%s413 + $0x24] sm:$0xff]
        %v491 = vld [vmem:[%s413 + $0x2c] sm:$0xf]
        %v492 = vld [vmem:[%s413 + $0x30] sm:$0xff]
        %v493 = vld [vmem:[%s413 + $0x38] sm:$0xf]
        %v494 = vld [vmem:[%s413 + $0x3c] sm:$0xff]
        %v495 = vld [vmem:[%s413 + $0x44] sm:$0xf]
        %v496 = vld [vmem:[%s413 + $0x48] sm:$0xff]
        %v497 = vld [vmem:[%s413 + $0x50] sm:$0xf]
        %v498 = vld [vmem:[%s413 + $0x54] sm:$0xff]
        %v499 = vld [vmem:[%s413 + $0x5c] sm:$0xf]
        %v500 = vld [vmem:[%s413 + $0x60] sm:$0xff]
        %v501 = vld [vmem:[%s413 + $0x68] sm:$0xf]
        %v502 = vld [vmem:[%s413 + $0x6c] sm:$0xff]
        %v503 = vld [vmem:[%s413 + $0x74] sm:$0xf]
        %v504 = vld [vmem:[%s413 + $0x78] sm:$0xff]
        %v505 = vld [vmem:[%s413 + $0x80] sm:$0xf]
        %v506 = vld [vmem:[%s413 + $0x84] sm:$0xff]
        %v507 = vld [vmem:[%s413 + $0x8c] sm:$0xf]
        %v508 = vld [vmem:[%s413 + $0x90] sm:$0xff]
        %v509 = vld [vmem:[%s413 + $0x98] sm:$0xf]
        %v510 = vld [vmem:[%s413 + $0x9c] sm:$0xff]
        %v511 = vld [vmem:[%s413 + $0xa4] sm:$0xf]
        %v512 = vld [vmem:[%s413 + $0xa8] sm:$0xff]
        %v513 = vld [vmem:[%s413 + $0xb0] sm:$0xf]
        %v514 = vld [vmem:[%s413 + $0xb4] sm:$0xff]
        %v515 = vld [vmem:[%s413 + $0xbc] sm:$0xf]
        %v516 = vld [vmem:[%s1] sm:$0xff]
        %v517 = vld [vmem:[%s1 + $0x8] sm:$0xff]
        %v518 = vld [vmem:[%s1 + $0x10] sm:$0xff]
        %v519 = vld [vmem:[%s1 + $0x18] sm:$0xff]
        %v520 = vld [vmem:[%s1 + $0x20] sm:$0xff]
        %v521 = vld [vmem:[%s1 + $0x28] sm:$0xff]
        %v522 = vld [vmem:[%s1 + $0x30] sm:$0xff]
        %v523 = vld [vmem:[%s1 + $0x38] sm:$0xff]
        %v524 = vld [vmem:[%s1 + $0x40] sm:$0xff]
        %v525 = vld [vmem:[%s1 + $0x48] sm:$0xff]
        %v526 = vld [vmem:[%s1 + $0x50] sm:$0xff]
        %v527 = vld [vmem:[%s1 + $0x58] sm:$0xff]
        %v528 = vld [vmem:[%s1 + $0x60] sm:$0xff]
        %v529 = vld [vmem:[%s1 + $0x68] sm:$0xff]
        %v530 = vld [vmem:[%s1 + $0x70] sm:$0xff]
        %v531 = vld [vmem:[%s1 + $0x78] sm:$0xff]
        %v532 = vld [vmem:[%s1 + $0x80] sm:$0xff]
        %v533 = vld [vmem:[%s1 + $0x88] sm:$0xff]
        %v534 = vld [vmem:[%s1 + $0x90] sm:$0xff]
        %v535 = vld [vmem:[%s1 + $0x98] sm:$0xff]
        %v536 = vld [vmem:[%s1 + $0xa0] sm:$0xff]
        %v537 = vld [vmem:[%s1 + $0xa8] sm:$0xff]
        %v538 = vld [vmem:[%s1 + $0xb0] sm:$0xff]
        %v539 = vld [vmem:[%s1 + $0xb8] sm:$0xff]
        %v540 = vld [vmem:[%s1 + $0xc0] sm:$0xff]
        %v541 = vld [vmem:[%s1 + $0xc8] sm:$0xff]
        %v542 = vld [vmem:[%s1 + $0xd0] sm:$0xff]
        %v543 = vld [vmem:[%s1 + $0xd8] sm:$0xff]
        %v544 = vld [vmem:[%s1 + $0xe0] sm:$0xff]
        %v545 = vld [vmem:[%s1 + $0xe8] sm:$0xff]
        %v546 = vld [vmem:[%s1 + $0xf0] sm:$0xff]
        %v547 = vld [vmem:[%s1 + $0xf8] sm:$0xff]
        %v548 = vld [vmem:[%s1 + $0x100] sm:$0xff]
        %v549 = vld [vmem:[%s1 + $0x108] sm:$0xff]
        %v550 = vld [vmem:[%s1 + $0x110] sm:$0xff]
        %v551 = vld [vmem:[%s1 + $0x118] sm:$0xff]
        %v552 = vld [vmem:[%s1 + $0x120] sm:$0xff]
        %v553 = vld [vmem:[%s1 + $0x128] sm:$0xff]
        %v554 = vld [vmem:[%s1 + $0x130] sm:$0xff]
        %v555 = vld [vmem:[%s1 + $0x138] sm:$0xff]
        %v556 = vld [vmem:[%s1 + $0x140] sm:$0xff]
        %v557 = vld [vmem:[%s1 + $0x148] sm:$0xff]
        %v558 = vld [vmem:[%s1 + $0x150] sm:$0xff]
        %v559 = vld [vmem:[%s1 + $0x158] sm:$0xff]
        %v560 = vld [vmem:[%s1 + $0x160] sm:$0xff]
        %v561 = vld [vmem:[%s1 + $0x168] sm:$0xff]
        %v562 = vld [vmem:[%s1 + $0x170] sm:$0xff]
        %v563 = vld [vmem:[%s1 + $0x178] sm:$0xff]
        %v596 = vunpack.c.l.b16 %v484
        %v597 = vunpack.c.h.b16 %v484
        %v598 = vunpack.c.l.b16 %v485
        %v599 = vunpack.c.l.b16 %v486
        %v600 = vunpack.c.h.b16 %v486
        %v601 = vunpack.c.l.b16 %v487
        %v602 = vunpack.c.l.b16 %v488
        %v603 = vunpack.c.h.b16 %v488
        %v604 = vunpack.c.l.b16 %v489
        %v605 = vunpack.c.l.b16 %v490
        %v606 = vunpack.c.h.b16 %v490
        %v607 = vunpack.c.l.b16 %v491
        %v608 = vunpack.c.l.b16 %v492
        %v609 = vunpack.c.h.b16 %v492
        %v610 = vunpack.c.l.b16 %v493
        %v611 = vunpack.c.l.b16 %v494
        %v612 = vunpack.c.h.b16 %v494
        %v613 = vunpack.c.l.b16 %v495
        %v614 = vunpack.c.l.b16 %v496
        %v615 = vunpack.c.h.b16 %v496
        %v616 = vunpack.c.l.b16 %v497
        %v617 = vunpack.c.l.b16 %v498
        %v618 = vunpack.c.h.b16 %v498
        %v619 = vunpack.c.l.b16 %v499
        %v620 = vunpack.c.l.b16 %v500
        %v621 = vunpack.c.h.b16 %v500
        %v622 = vunpack.c.l.b16 %v501
        %v623 = vunpack.c.l.b16 %v502
        %v624 = vunpack.c.h.b16 %v502
        %v625 = vunpack.c.l.b16 %v503
        %v626 = vunpack.c.l.b16 %v504
        %v627 = vunpack.c.h.b16 %v504
        %v628 = vunpack.c.l.b16 %v505
        %v629 = vunpack.c.l.b16 %v506
        %v630 = vunpack.c.h.b16 %v506
        %v631 = vunpack.c.l.b16 %v507
        %v632 = vunpack.c.l.b16 %v508
        %v633 = vunpack.c.h.b16 %v508
        %v634 = vunpack.c.l.b16 %v509
        %v635 = vunpack.c.l.b16 %v510
        %v636 = vunpack.c.h.b16 %v510
        %v637 = vunpack.c.l.b16 %v511
        %v638 = vunpack.c.l.b16 %v512
        %v639 = vunpack.c.h.b16 %v512
        %v640 = vunpack.c.l.b16 %v513
        %v641 = vunpack.c.l.b16 %v514
        %v642 = vunpack.c.h.b16 %v514
        %v643 = vunpack.c.l.b16 %v515
        %v644 = vpack.c.b16 %v599, %v596
        %v645 = vpack.c.b16 %v600, %v597
        %v646 = vpack.c.b16 %v601, %v598
        %v647 = vpack.c.b16 %v605, %v602
        %v648 = vpack.c.b16 %v606, %v603
        %v649 = vpack.c.b16 %v607, %v604
        %v650 = vpack.c.b16 %v611, %v608
        %v651 = vpack.c.b16 %v612, %v609
        %v652 = vpack.c.b16 %v613, %v610
        %v653 = vpack.c.b16 %v617, %v614
        %v654 = vpack.c.b16 %v618, %v615
        %v655 = vpack.c.b16 %v619, %v616
        %v656 = vpack.c.b16 %v623, %v620
        %v657 = vpack.c.b16 %v624, %v621
        %v658 = vpack.c.b16 %v625, %v622
        %v659 = vpack.c.b16 %v629, %v626
        %v660 = vpack.c.b16 %v630, %v627
        %v661 = vpack.c.b16 %v631, %v628
        %v662 = vpack.c.b16 %v635, %v632
        %v663 = vpack.c.b16 %v636, %v633
        %v664 = vpack.c.b16 %v637, %v634
        %v665 = vpack.c.b16 %v641, %v638
        %v666 = vpack.c.b16 %v642, %v639
        %v667 = vpack.c.b16 %v643, %v640
        %v740 = vunpack.c.l.b16 %v516
        %v741 = vunpack.c.h.b16 %v516
        %v742 = vunpack.c.l.b16 %v517
        %v743 = vunpack.c.h.b16 %v517
        %v744 = vunpack.c.l.b16 %v518
        %v745 = vunpack.c.h.b16 %v518
        %v746 = vunpack.c.l.b16 %v519
        %v747 = vunpack.c.h.b16 %v519
        %v748 = vunpack.c.l.b16 %v520
        %v749 = vunpack.c.h.b16 %v520
        %v750 = vunpack.c.l.b16 %v521
        %v751 = vunpack.c.h.b16 %v521
        %v752 = vunpack.c.l.b16 %v522
        %v753 = vunpack.c.h.b16 %v522
        %v754 = vunpack.c.l.b16 %v523
        %v755 = vunpack.c.h.b16 %v523
        %v756 = vunpack.c.l.b16 %v524
        %v757 = vunpack.c.h.b16 %v524
        %v758 = vunpack.c.l.b16 %v525
        %v759 = vunpack.c.h.b16 %v525
        %v760 = vunpack.c.l.b16 %v526
        %v761 = vunpack.c.h.b16 %v526
        %v762 = vunpack.c.l.b16 %v527
        %v763 = vunpack.c.h.b16 %v527
        %v764 = vunpack.c.l.b16 %v528
        %v765 = vunpack.c.h.b16 %v528
        %v766 = vunpack.c.l.b16 %v529
        %v767 = vunpack.c.h.b16 %v529
        %v768 = vunpack.c.l.b16 %v530
        %v769 = vunpack.c.h.b16 %v530
        %v770 = vunpack.c.l.b16 %v531
        %v771 = vunpack.c.h.b16 %v531
        %v772 = vunpack.c.l.b16 %v532
        %v773 = vunpack.c.h.b16 %v532
        %v774 = vunpack.c.l.b16 %v533
        %v775 = vunpack.c.h.b16 %v533
        %v776 = vunpack.c.l.b16 %v534
        %v777 = vunpack.c.h.b16 %v534
        %v778 = vunpack.c.l.b16 %v535
        %v779 = vunpack.c.h.b16 %v535
        %v780 = vunpack.c.l.b16 %v536
        %v781 = vunpack.c.h.b16 %v536
        %v782 = vunpack.c.l.b16 %v537
        %v783 = vunpack.c.h.b16 %v537
        %v784 = vunpack.c.l.b16 %v538
        %v785 = vunpack.c.h.b16 %v538
        %v786 = vunpack.c.l.b16 %v539
        %v787 = vunpack.c.h.b16 %v539
        %v788 = vunpack.c.l.b16 %v540
        %v789 = vunpack.c.h.b16 %v540
        %v790 = vunpack.c.l.b16 %v541
        %v791 = vunpack.c.h.b16 %v541
        %v792 = vunpack.c.l.b16 %v542
        %v793 = vunpack.c.h.b16 %v542
        %v794 = vunpack.c.l.b16 %v543
        %v795 = vunpack.c.h.b16 %v543
        %v796 = vunpack.c.l.b16 %v544
        %v797 = vunpack.c.h.b16 %v544
        %v798 = vunpack.c.l.b16 %v545
        %v799 = vunpack.c.h.b16 %v545
        %v800 = vunpack.c.l.b16 %v546
        %v801 = vunpack.c.h.b16 %v546
        %v802 = vunpack.c.l.b16 %v547
        %v803 = vunpack.c.h.b16 %v547
        %v804 = vunpack.c.l.b16 %v548
        %v805 = vunpack.c.h.b16 %v548
        %v806 = vunpack.c.l.b16 %v549
        %v807 = vunpack.c.h.b16 %v549
        %v808 = vunpack.c.l.b16 %v550
        %v809 = vunpack.c.h.b16 %v550
        %v810 = vunpack.c.l.b16 %v551
        %v811 = vunpack.c.h.b16 %v551
        %v812 = vunpack.c.l.b16 %v552
        %v813 = vunpack.c.h.b16 %v552
        %v814 = vunpack.c.l.b16 %v553
        %v815 = vunpack.c.h.b16 %v553
        %v816 = vunpack.c.l.b16 %v554
        %v817 = vunpack.c.h.b16 %v554
        %v818 = vunpack.c.l.b16 %v555
        %v819 = vunpack.c.h.b16 %v555
        %v820 = vunpack.c.l.b16 %v556
        %v821 = vunpack.c.h.b16 %v556
        %v822 = vunpack.c.l.b16 %v557
        %v823 = vunpack.c.h.b16 %v557
        %v824 = vunpack.c.l.b16 %v558
        %v825 = vunpack.c.h.b16 %v558
        %v826 = vunpack.c.l.b16 %v559
        %v827 = vunpack.c.h.b16 %v559
        %v828 = vunpack.c.l.b16 %v560
        %v829 = vunpack.c.h.b16 %v560
        %v830 = vunpack.c.l.b16 %v561
        %v831 = vunpack.c.h.b16 %v561
        %v832 = vunpack.c.l.b16 %v562
        %v833 = vunpack.c.h.b16 %v562
        %v834 = vunpack.c.l.b16 %v563
        %v835 = vunpack.c.h.b16 %v563
        %v836 = vpack.c.b16 %v742, %v740
        %v837 = vpack.c.b16 %v743, %v741
        %v838 = vpack.c.b16 %v746, %v744
        %v839 = vpack.c.b16 %v747, %v745
        %v840 = vpack.c.b16 %v750, %v748
        %v841 = vpack.c.b16 %v751, %v749
        %v842 = vpack.c.b16 %v754, %v752
        %v843 = vpack.c.b16 %v755, %v753
        %v844 = vpack.c.b16 %v758, %v756
        %v845 = vpack.c.b16 %v759, %v757
        %v846 = vpack.c.b16 %v762, %v760
        %v847 = vpack.c.b16 %v763, %v761
        %v848 = vpack.c.b16 %v766, %v764
        %v849 = vpack.c.b16 %v767, %v765
        %v850 = vpack.c.b16 %v770, %v768
        %v851 = vpack.c.b16 %v771, %v769
        %v852 = vpack.c.b16 %v774, %v772
        %v853 = vpack.c.b16 %v775, %v773
        %v854 = vpack.c.b16 %v778, %v776
        %v855 = vpack.c.b16 %v779, %v777
        %v856 = vpack.c.b16 %v782, %v780
        %v857 = vpack.c.b16 %v783, %v781
        %v858 = vpack.c.b16 %v786, %v784
        %v859 = vpack.c.b16 %v787, %v785
        %v860 = vpack.c.b16 %v790, %v788
        %v861 = vpack.c.b16 %v791, %v789
        %v862 = vpack.c.b16 %v794, %v792
        %v863 = vpack.c.b16 %v795, %v793
        %v864 = vpack.c.b16 %v798, %v796
        %v865 = vpack.c.b16 %v799, %v797
        %v866 = vpack.c.b16 %v802, %v800
        %v867 = vpack.c.b16 %v803, %v801
        %v868 = vpack.c.b16 %v806, %v804
        %v869 = vpack.c.b16 %v807, %v805
        %v870 = vpack.c.b16 %v810, %v808
        %v871 = vpack.c.b16 %v811, %v809
        %v872 = vpack.c.b16 %v814, %v812
        %v873 = vpack.c.b16 %v815, %v813
        %v874 = vpack.c.b16 %v818, %v816
        %v875 = vpack.c.b16 %v819, %v817
        %v876 = vpack.c.b16 %v822, %v820
        %v877 = vpack.c.b16 %v823, %v821
        %v878 = vpack.c.b16 %v826, %v824
        %v879 = vpack.c.b16 %v827, %v825
        %v880 = vpack.c.b16 %v830, %v828
        %v881 = vpack.c.b16 %v831, %v829
        %v882 = vpack.c.b16 %v834, %v832
        %v883 = vpack.c.b16 %v835, %v833
        %932 = vmatprep.subr.bf16.mxu0 %v851
        %933 = vmatpush1.bf16.msra.mxu0 %v850
        %934 = vmatprep.subr.bf16.mxu0 %v849
        %935 = vmatpush1.bf16.msra.mxu0 %v848
        %936 = vmatprep.subr.bf16.mxu0 %v847
        %937 = vmatpush1.bf16.msra.mxu0 %v846
        %938 = vmatprep.subr.bf16.mxu0 %v845
        %939 = vmatpush1.bf16.msra.mxu0 %v844
        %940 = vmatprep.subr.bf16.mxu0 %v843
        %941 = vmatpush1.bf16.msra.mxu0 %v842
        %942 = vmatprep.subr.bf16.mxu0 %v841
        %943 = vmatpush1.bf16.msra.mxu0 %v840
        %944 = vmatprep.subr.bf16.mxu0 %v839
        %945 = vmatpush1.bf16.msra.mxu0 %v838
        %946 = vmatprep.subr.bf16.mxu0 %v837
        %947 = vmatpush1.bf16.msra.mxu0 %v836
        %948 = vmatprep.subr.bf16.mxu0 %v867
        %949 = vmatpush2.bf16.msra.mxu0 %v866
        %950 = vmatprep.subr.bf16.mxu0 %v865
        %951 = vmatpush2.bf16.msra.mxu0 %v864
        %952 = vmatprep.subr.bf16.mxu0 %v863
        %953 = vmatpush2.bf16.msra.mxu0 %v862
        %954 = vmatprep.subr.bf16.mxu0 %v861
        %955 = vmatpush2.bf16.msra.mxu0 %v860
        %956 = vmatprep.subr.bf16.mxu0 %v859
        %957 = vmatpush2.bf16.msra.mxu0 %v858
        %958 = vmatprep.subr.bf16.mxu0 %v857
        %959 = vmatpush2.bf16.msra.mxu0 %v856
        %960 = vmatprep.subr.bf16.mxu0 %v855
        %961 = vmatpush2.bf16.msra.mxu0 %v854
        %962 = vmatprep.subr.bf16.mxu0 %v853
        %963 = vmatpush2.bf16.msra.mxu0 %v852
        %964 = vmatprep.mubr.bf16.mxu0 %v645
        %965 = vmatmul.mubr.bf16.gmra.mxu0 %v644
        %v966 = vpop.f32.mrf.mxu0
        %v967 = vadd.f32 0.0, %v966
        %v968 = vpop.f32.mrf.mxu0
        %v969 = vadd.f32 0.0, %v968
        %v970 = vpop.f32.mrf.mxu0
        %v971 = vadd.f32 0.0, %v970
        %v972 = vpop.f32.mrf.mxu0
        %v973 = vadd.f32 0.0, %v972
        %974 = vmatprep.mubr.bf16.mxu0 %v648
        %975 = vmatmul.mubr.bf16.gmra.mxu0 %v647
        %v976 = vpop.f32.mrf.mxu0
        %v977 = vadd.f32 0.0, %v976
        %v978 = vpop.f32.mrf.mxu0
        %v979 = vadd.f32 0.0, %v978
        %v980 = vpop.f32.mrf.mxu0
        %v981 = vadd.f32 0.0, %v980
        %v982 = vpop.f32.mrf.mxu0
        %v983 = vadd.f32 0.0, %v982
        %984 = vmatprep.mubr.bf16.mxu0 %v651
        %985 = vmatmul.mubr.bf16.gmra.mxu0 %v650
        %v986 = vpop.f32.mrf.mxu0
        %v987 = vadd.f32 0.0, %v986
        %v988 = vpop.f32.mrf.mxu0
        %v989 = vadd.f32 0.0, %v988
        %v990 = vpop.f32.mrf.mxu0
        %v991 = vadd.f32 0.0, %v990
        %v992 = vpop.f32.mrf.mxu0
        %v993 = vadd.f32 0.0, %v992
        %994 = vmatprep.mubr.bf16.mxu0 %v654
        %995 = vmatmul.mubr.bf16.gmra.mxu0 %v653
        %v996 = vpop.f32.mrf.mxu0
        %v997 = vadd.f32 0.0, %v996
        %v998 = vpop.f32.mrf.mxu0
        %v999 = vadd.f32 0.0, %v998
        %v1000 = vpop.f32.mrf.mxu0
        %v1001 = vadd.f32 0.0, %v1000
        %v1002 = vpop.f32.mrf.mxu0
        %v1003 = vadd.f32 0.0, %v1002
        %1004 = vmatprep.mubr.bf16.mxu0 %v657
        %1005 = vmatmul.mubr.bf16.gmra.mxu0 %v656
        %v1006 = vpop.f32.mrf.mxu0
        %v1007 = vadd.f32 0.0, %v1006
        %v1008 = vpop.f32.mrf.mxu0
        %v1009 = vadd.f32 0.0, %v1008
        %v1010 = vpop.f32.mrf.mxu0
        %v1011 = vadd.f32 0.0, %v1010
        %v1012 = vpop.f32.mrf.mxu0
        %v1013 = vadd.f32 0.0, %v1012
        %1014 = vmatprep.mubr.bf16.mxu0 %v660
        %1015 = vmatmul.mubr.bf16.gmra.mxu0 %v659
        %v1016 = vpop.f32.mrf.mxu0
        %v1017 = vadd.f32 0.0, %v1016
        %v1018 = vpop.f32.mrf.mxu0
        %v1019 = vadd.f32 0.0, %v1018
        %v1020 = vpop.f32.mrf.mxu0
        %v1021 = vadd.f32 0.0, %v1020
        %v1022 = vpop.f32.mrf.mxu0
        %v1023 = vadd.f32 0.0, %v1022
        %1024 = vmatprep.mubr.bf16.mxu0 %v663
        %1025 = vmatmul.mubr.bf16.gmra.mxu0 %v662
        %v1026 = vpop.f32.mrf.mxu0
        %v1027 = vadd.f32 0.0, %v1026
        %v1028 = vpop.f32.mrf.mxu0
        %v1029 = vadd.f32 0.0, %v1028
        %v1030 = vpop.f32.mrf.mxu0
        %v1031 = vadd.f32 0.0, %v1030
        %v1032 = vpop.f32.mrf.mxu0
        %v1033 = vadd.f32 0.0, %v1032
        %1034 = vmatprep.mubr.bf16.mxu0 %v666
        %1035 = vmatmul.mubr.bf16.gmra.mxu0 %v665
        %v1036 = vpop.f32.mrf.mxu0
        %v1037 = vadd.f32 0.0, %v1036
        %v1038 = vpop.f32.mrf.mxu0
        %v1039 = vadd.f32 0.0, %v1038
        %v1040 = vpop.f32.mrf.mxu0
        %v1041 = vadd.f32 0.0, %v1040
        %v1042 = vpop.f32.mrf.mxu0
        %v1043 = vadd.f32 0.0, %v1042
        %1044 = vdwg.mxu0
        %1045 = vmatprep.subr.bf16.mxu0 %v883
        %1046 = vmatpush1.bf16.msra.mxu0 %v882
        %1047 = vmatprep.subr.bf16.mxu0 %v881
        %1048 = vmatpush1.bf16.msra.mxu0 %v880
        %1049 = vmatprep.subr.bf16.mxu0 %v879
        %1050 = vmatpush1.bf16.msra.mxu0 %v878
        %1051 = vmatprep.subr.bf16.mxu0 %v877
        %1052 = vmatpush1.bf16.msra.mxu0 %v876
        %1053 = vmatprep.subr.bf16.mxu0 %v875
        %1054 = vmatpush1.bf16.msra.mxu0 %v874
        %1055 = vmatprep.subr.bf16.mxu0 %v873
        %1056 = vmatpush1.bf16.msra.mxu0 %v872
        %1057 = vmatprep.subr.bf16.mxu0 %v871
        %1058 = vmatpush1.bf16.msra.mxu0 %v870
        %1059 = vmatprep.subr.bf16.mxu0 %v869
        %1060 = vmatpush1.bf16.msra.mxu0 %v868
        %1061 = vmatprep.subr.bf16.mxu0 0
        %1062 = vmatpush2.bf16.msra.mxu0 0
        %1063 = vmatprep.subr.bf16.mxu0 0
        %1064 = vmatpush2.bf16.msra.mxu0 0
        %1065 = vmatprep.subr.bf16.mxu0 0
        %1066 = vmatpush2.bf16.msra.mxu0 0
        %1067 = vmatprep.subr.bf16.mxu0 0
        %1068 = vmatpush2.bf16.msra.mxu0 0
        %1069 = vmatprep.subr.bf16.mxu0 0
        %1070 = vmatpush2.bf16.msra.mxu0 0
        %1071 = vmatprep.subr.bf16.mxu0 0
        %1072 = vmatpush2.bf16.msra.mxu0 0
        %1073 = vmatprep.subr.bf16.mxu0 0
        %1074 = vmatpush2.bf16.msra.mxu0 0
        %1075 = vmatprep.subr.bf16.mxu0 0
        %1076 = vmatpush2.bf16.msra.mxu0 0
        %1077 = vmatprep.mubr.bf16.mxu0 0
        %1078 = vmatmul.mubr.bf16.gmra.mxu0 %v646
        %v1079 = vpop.f32.mrf.mxu0
        %v1080 = vadd.f32 %v967, %v1079
        %v1081 = vpop.f32.mrf.mxu0
        %v1082 = vadd.f32 %v969, %v1081
        %v1083 = vpop.f32.mrf.mxu0
        %v1084 = vadd.f32 %v971, %v1083
        %v1085 = vpop.f32.mrf.mxu0
        %v1086 = vadd.f32 %v973, %v1085
        %1087 = vmatprep.mubr.bf16.mxu0 0
        %1088 = vmatmul.mubr.bf16.gmra.mxu0 %v649
        %v1089 = vpop.f32.mrf.mxu0
        %v1090 = vadd.f32 %v977, %v1089
        %v1091 = vpop.f32.mrf.mxu0
        %v1092 = vadd.f32 %v979, %v1091
        %v1093 = vpop.f32.mrf.mxu0
        %v1094 = vadd.f32 %v981, %v1093
        %v1095 = vpop.f32.mrf.mxu0
        %v1096 = vadd.f32 %v983, %v1095
        %1097 = vmatprep.mubr.bf16.mxu0 0
        %1098 = vmatmul.mubr.bf16.gmra.mxu0 %v652
        %v1099 = vpop.f32.mrf.mxu0
        %v1100 = vadd.f32 %v987, %v1099
        %v1101 = vpop.f32.mrf.mxu0
        %v1102 = vadd.f32 %v989, %v1101
        %v1103 = vpop.f32.mrf.mxu0
        %v1104 = vadd.f32 %v991, %v1103
        %v1105 = vpop.f32.mrf.mxu0
        %v1106 = vadd.f32 %v993, %v1105
        %1107 = vmatprep.mubr.bf16.mxu0 0
        %1108 = vmatmul.mubr.bf16.gmra.mxu0 %v655
        %v1109 = vpop.f32.mrf.mxu0
        %v1110 = vadd.f32 %v997, %v1109
        %v1111 = vpop.f32.mrf.mxu0
        %v1112 = vadd.f32 %v999, %v1111
        %v1113 = vpop.f32.mrf.mxu0
        %v1114 = vadd.f32 %v1001, %v1113
        %v1115 = vpop.f32.mrf.mxu0
        %v1116 = vadd.f32 %v1003, %v1115
        %1117 = vmatprep.mubr.bf16.mxu0 0
        %1118 = vmatmul.mubr.bf16.gmra.mxu0 %v658
        %v1119 = vpop.f32.mrf.mxu0
        %v1120 = vadd.f32 %v1007, %v1119
        %v1121 = vpop.f32.mrf.mxu0
        %v1122 = vadd.f32 %v1009, %v1121
        %v1123 = vpop.f32.mrf.mxu0
        %v1124 = vadd.f32 %v1011, %v1123
        %v1125 = vpop.f32.mrf.mxu0
        %v1126 = vadd.f32 %v1013, %v1125
        %1127 = vmatprep.mubr.bf16.mxu0 0
        %1128 = vmatmul.mubr.bf16.gmra.mxu0 %v661
        %v1129 = vpop.f32.mrf.mxu0
        %v1130 = vadd.f32 %v1017, %v1129
        %v1131 = vpop.f32.mrf.mxu0
        %v1132 = vadd.f32 %v1019, %v1131
        %v1133 = vpop.f32.mrf.mxu0
        %v1134 = vadd.f32 %v1021, %v1133
        %v1135 = vpop.f32.mrf.mxu0
        %v1136 = vadd.f32 %v1023, %v1135
        %1137 = vmatprep.mubr.bf16.mxu0 0
        %1138 = vmatmul.mubr.bf16.gmra.mxu0 %v664
        %v1139 = vpop.f32.mrf.mxu0
        %v1140 = vadd.f32 %v1027, %v1139
        %v1141 = vpop.f32.mrf.mxu0
        %v1142 = vadd.f32 %v1029, %v1141
        %v1143 = vpop.f32.mrf.mxu0
        %v1144 = vadd.f32 %v1031, %v1143
        %v1145 = vpop.f32.mrf.mxu0
        %v1146 = vadd.f32 %v1033, %v1145
        %1147 = vmatprep.mubr.bf16.mxu0 0
        %1148 = vmatmul.mubr.bf16.gmra.mxu0 %v667
        %v1149 = vpop.f32.mrf.mxu0
        %v1150 = vadd.f32 %v1037, %v1149
        %v1151 = vpop.f32.mrf.mxu0
        %v1152 = vadd.f32 %v1039, %v1151
        %v1153 = vpop.f32.mrf.mxu0
        %v1154 = vadd.f32 %v1041, %v1153
        %v1155 = vpop.f32.mrf.mxu0
        %v1156 = vadd.f32 %v1043, %v1155
        %1157 = vdwg.mxu0
        %v1158 = vld [vmem:[#allocation5] sm:$0x3]
        %v1159 = vld [vmem:[#allocation7] sm:$0x3]
        %vm1160 = vcmask 523264
        %v1161 = vsel %vm1160, %v1082, 0.0
        %v1162 = vadd.f32 %v1080, %v1161
        %1163 = vadd.xlane.f32.xlu0 %v1162
        %v1164 = vpop.xlane.xlu0 %1163
        %v1165 = vsel %vm1160, %v1086, 0.0
        %v1166 = vadd.f32 %v1084, %v1165
        %1167 = vadd.xlane.f32.xlu0 %v1166
        %v1168 = vpop.xlane.xlu0 %1167
        %v1169 = vsel %vm1160, %v1092, 0.0
        %v1170 = vadd.f32 %v1090, %v1169
        %1171 = vadd.xlane.f32.xlu0 %v1170
        %v1172 = vpop.xlane.xlu0 %1171
        %v1173 = vsel %vm1160, %v1096, 0.0
        %v1174 = vadd.f32 %v1094, %v1173
        %1175 = vadd.xlane.f32.xlu0 %v1174
        %v1176 = vpop.xlane.xlu0 %1175
        %v1177 = vsel %vm1160, %v1102, 0.0
        %v1178 = vadd.f32 %v1100, %v1177
        %1179 = vadd.xlane.f32.xlu0 %v1178
        %v1180 = vpop.xlane.xlu0 %1179
        %v1181 = vsel %vm1160, %v1106, 0.0
        %v1182 = vadd.f32 %v1104, %v1181
        %1183 = vadd.xlane.f32.xlu0 %v1182
        %v1184 = vpop.xlane.xlu0 %1183
        %v1185 = vsel %vm1160, %v1112, 0.0
        %v1186 = vadd.f32 %v1110, %v1185
        %1187 = vadd.xlane.f32.xlu0 %v1186
        %v1188 = vpop.xlane.xlu0 %1187
        %v1189 = vsel %vm1160, %v1116, 0.0
        %v1190 = vadd.f32 %v1114, %v1189
        %1191 = vadd.xlane.f32.xlu0 %v1190
        %v1192 = vpop.xlane.xlu0 %1191
        %v1193 = vsel %vm1160, %v1122, 0.0
        %v1194 = vadd.f32 %v1120, %v1193
        %1195 = vadd.xlane.f32.xlu0 %v1194
        %v1196 = vpop.xlane.xlu0 %1195
        %v1197 = vsel %vm1160, %v1126, 0.0
        %v1198 = vadd.f32 %v1124, %v1197
        %1199 = vadd.xlane.f32.xlu0 %v1198
        %v1200 = vpop.xlane.xlu0 %1199
        %v1201 = vsel %vm1160, %v1132, 0.0
        %v1202 = vadd.f32 %v1130, %v1201
        %1203 = vadd.xlane.f32.xlu0 %v1202
        %v1204 = vpop.xlane.xlu0 %1203
        %v1205 = vsel %vm1160, %v1136, 0.0
        %v1206 = vadd.f32 %v1134, %v1205
        %1207 = vadd.xlane.f32.xlu0 %v1206
        %v1208 = vpop.xlane.xlu0 %1207
        %v1209 = vsel %vm1160, %v1142, 0.0
        %v1210 = vadd.f32 %v1140, %v1209
        %1211 = vadd.xlane.f32.xlu0 %v1210
        %v1212 = vpop.xlane.xlu0 %1211
        %v1213 = vsel %vm1160, %v1146, 0.0
        %v1214 = vadd.f32 %v1144, %v1213
        %1215 = vadd.xlane.f32.xlu0 %v1214
        %v1216 = vpop.xlane.xlu0 %1215
        %v1217 = vsel %vm1160, %v1152, 0.0
        %v1218 = vadd.f32 %v1150, %v1217
        %1219 = vadd.xlane.f32.xlu0 %v1218
        %v1220 = vpop.xlane.xlu0 %1219
        %v1221 = vsel %vm1160, %v1156, 0.0
        %v1222 = vadd.f32 %v1154, %v1221
        %1223 = vadd.xlane.f32.xlu0 %v1222
        %v1224 = vpop.xlane.xlu0 %1223
        %v1225 = vrcp.pop 192.0
        %v1226 = vmul.f32 %v1164, %v1225
        %v1227 = vmul.f32 %v1168, %v1225
        %v1228 = vmul.f32 %v1172, %v1225
        %v1229 = vmul.f32 %v1176, %v1225
        %v1230 = vmul.f32 %v1180, %v1225
        %v1231 = vmul.f32 %v1184, %v1225
        %v1232 = vmul.f32 %v1188, %v1225
        %v1233 = vmul.f32 %v1192, %v1225
        %v1234 = vmul.f32 %v1196, %v1225
        %v1235 = vmul.f32 %v1200, %v1225
        %v1236 = vmul.f32 %v1204, %v1225
        %v1237 = vmul.f32 %v1208, %v1225
        %v1238 = vmul.f32 %v1212, %v1225
        %v1239 = vmul.f32 %v1216, %v1225
        %v1240 = vmul.f32 %v1220, %v1225
        %v1241 = vmul.f32 %v1224, %v1225
        %v1242 = vsub.f32 %v1080, %v1226
        %v1243 = vsub.f32 %v1082, %v1226
        %v1244 = vsub.f32 %v1084, %v1227
        %v1245 = vsub.f32 %v1086, %v1227
        %v1246 = vsub.f32 %v1090, %v1228
        %v1247 = vsub.f32 %v1092, %v1228
        %v1248 = vsub.f32 %v1094, %v1229
        %v1249 = vsub.f32 %v1096, %v1229
        %v1250 = vsub.f32 %v1100, %v1230
        %v1251 = vsub.f32 %v1102, %v1230
        %v1252 = vsub.f32 %v1104, %v1231
        %v1253 = vsub.f32 %v1106, %v1231
        %v1254 = vsub.f32 %v1110, %v1232
        %v1255 = vsub.f32 %v1112, %v1232
        %v1256 = vsub.f32 %v1114, %v1233
        %v1257 = vsub.f32 %v1116, %v1233
        %v1258 = vsub.f32 %v1120, %v1234
        %v1259 = vsub.f32 %v1122, %v1234
        %v1260 = vsub.f32 %v1124, %v1235
        %v1261 = vsub.f32 %v1126, %v1235
        %v1262 = vsub.f32 %v1130, %v1236
        %v1263 = vsub.f32 %v1132, %v1236
        %v1264 = vsub.f32 %v1134, %v1237
        %v1265 = vsub.f32 %v1136, %v1237
        %v1266 = vsub.f32 %v1140, %v1238
        %v1267 = vsub.f32 %v1142, %v1238
        %v1268 = vsub.f32 %v1144, %v1239
        %v1269 = vsub.f32 %v1146, %v1239
        %v1270 = vsub.f32 %v1150, %v1240
        %v1271 = vsub.f32 %v1152, %v1240
        %v1272 = vsub.f32 %v1154, %v1241
        %v1273 = vsub.f32 %v1156, %v1241
        %v1274 = vmul.f32 %v1242, %v1242
        %v1275 = vmul.f32 %v1243, %v1243
        %v1276 = vmul.f32 %v1244, %v1244
        %v1277 = vmul.f32 %v1245, %v1245
        %v1278 = vmul.f32 %v1246, %v1246
        %v1279 = vmul.f32 %v1247, %v1247
        %v1280 = vmul.f32 %v1248, %v1248
        %v1281 = vmul.f32 %v1249, %v1249
        %v1282 = vmul.f32 %v1250, %v1250
        %v1283 = vmul.f32 %v1251, %v1251
        %v1284 = vmul.f32 %v1252, %v1252
        %v1285 = vmul.f32 %v1253, %v1253
        %v1286 = vmul.f32 %v1254, %v1254
        %v1287 = vmul.f32 %v1255, %v1255
        %v1288 = vmul.f32 %v1256, %v1256
        %v1289 = vmul.f32 %v1257, %v1257
        %v1290 = vmul.f32 %v1258, %v1258
        %v1291 = vmul.f32 %v1259, %v1259
        %v1292 = vmul.f32 %v1260, %v1260
        %v1293 = vmul.f32 %v1261, %v1261
        %v1294 = vmul.f32 %v1262, %v1262
        %v1295 = vmul.f32 %v1263, %v1263
        %v1296 = vmul.f32 %v1264, %v1264
        %v1297 = vmul.f32 %v1265, %v1265
        %v1298 = vmul.f32 %v1266, %v1266
        %v1299 = vmul.f32 %v1267, %v1267
        %v1300 = vmul.f32 %v1268, %v1268
        %v1301 = vmul.f32 %v1269, %v1269
        %v1302 = vmul.f32 %v1270, %v1270
        %v1303 = vmul.f32 %v1271, %v1271
        %v1304 = vmul.f32 %v1272, %v1272
        %v1305 = vmul.f32 %v1273, %v1273
        %v1306 = vsel %vm1160, %v1275, 0.0
        %v1307 = vadd.f32 %v1274, %v1306
        %1308 = vadd.xlane.f32.xlu0 %v1307
        %v1309 = vpop.xlane.xlu0 %1308
        %v1310 = vsel %vm1160, %v1277, 0.0
        %v1311 = vadd.f32 %v1276, %v1310
        %1312 = vadd.xlane.f32.xlu0 %v1311
        %v1313 = vpop.xlane.xlu0 %1312
        %v1314 = vsel %vm1160, %v1279, 0.0
        %v1315 = vadd.f32 %v1278, %v1314
        %1316 = vadd.xlane.f32.xlu0 %v1315
        %v1317 = vpop.xlane.xlu0 %1316
        %v1318 = vsel %vm1160, %v1281, 0.0
        %v1319 = vadd.f32 %v1280, %v1318
        %1320 = vadd.xlane.f32.xlu0 %v1319
        %v1321 = vpop.xlane.xlu0 %1320
        %v1322 = vsel %vm1160, %v1283, 0.0
        %v1323 = vadd.f32 %v1282, %v1322
        %1324 = vadd.xlane.f32.xlu0 %v1323
        %v1325 = vpop.xlane.xlu0 %1324
        %v1326 = vsel %vm1160, %v1285, 0.0
        %v1327 = vadd.f32 %v1284, %v1326
        %1328 = vadd.xlane.f32.xlu0 %v1327
        %v1329 = vpop.xlane.xlu0 %1328
        %v1330 = vsel %vm1160, %v1287, 0.0
        %v1331 = vadd.f32 %v1286, %v1330
        %1332 = vadd.xlane.f32.xlu0 %v1331
        %v1333 = vpop.xlane.xlu0 %1332
        %v1334 = vsel %vm1160, %v1289, 0.0
        %v1335 = vadd.f32 %v1288, %v1334
        %1336 = vadd.xlane.f32.xlu0 %v1335
        %v1337 = vpop.xlane.xlu0 %1336
        %v1338 = vsel %vm1160, %v1291, 0.0
        %v1339 = vadd.f32 %v1290, %v1338
        %1340 = vadd.xlane.f32.xlu0 %v1339
        %v1341 = vpop.xlane.xlu0 %1340
        %v1342 = vsel %vm1160, %v1293, 0.0
        %v1343 = vadd.f32 %v1292, %v1342
        %1344 = vadd.xlane.f32.xlu0 %v1343
        %v1345 = vpop.xlane.xlu0 %1344
        %v1346 = vsel %vm1160, %v1295, 0.0
        %v1347 = vadd.f32 %v1294, %v1346
        %1348 = vadd.xlane.f32.xlu0 %v1347
        %v1349 = vpop.xlane.xlu0 %1348
        %v1350 = vsel %vm1160, %v1297, 0.0
        %v1351 = vadd.f32 %v1296, %v1350
        %1352 = vadd.xlane.f32.xlu0 %v1351
        %v1353 = vpop.xlane.xlu0 %1352
        %v1354 = vsel %vm1160, %v1299, 0.0
        %v1355 = vadd.f32 %v1298, %v1354
        %1356 = vadd.xlane.f32.xlu0 %v1355
        %v1357 = vpop.xlane.xlu0 %1356
        %v1358 = vsel %vm1160, %v1301, 0.0
        %v1359 = vadd.f32 %v1300, %v1358
        %1360 = vadd.xlane.f32.xlu0 %v1359
        %v1361 = vpop.xlane.xlu0 %1360
        %v1362 = vsel %vm1160, %v1303, 0.0
        %v1363 = vadd.f32 %v1302, %v1362
        %1364 = vadd.xlane.f32.xlu0 %v1363
        %v1365 = vpop.xlane.xlu0 %1364
        %v1366 = vsel %vm1160, %v1305, 0.0
        %v1367 = vadd.f32 %v1304, %v1366
        %1368 = vadd.xlane.f32.xlu0 %v1367
        %v1369 = vpop.xlane.xlu0 %1368
        %v1370 = vmul.f32 %v1309, %v1225
        %v1371 = vmul.f32 %v1313, %v1225
        %v1372 = vmul.f32 %v1317, %v1225
        %v1373 = vmul.f32 %v1321, %v1225
        %v1374 = vmul.f32 %v1325, %v1225
        %v1375 = vmul.f32 %v1329, %v1225
        %v1376 = vmul.f32 %v1333, %v1225
        %v1377 = vmul.f32 %v1337, %v1225
        %v1378 = vmul.f32 %v1341, %v1225
        %v1379 = vmul.f32 %v1345, %v1225
        %v1380 = vmul.f32 %v1349, %v1225
        %v1381 = vmul.f32 %v1353, %v1225
        %v1382 = vmul.f32 %v1357, %v1225
        %v1383 = vmul.f32 %v1361, %v1225
        %v1384 = vmul.f32 %v1365, %v1225
        %v1385 = vmul.f32 %v1369, %v1225
        %v1386 = vadd.f32 %v1370, 1e-05
        %v1387 = vadd.f32 %v1371, 1e-05
        %v1388 = vadd.f32 %v1372, 1e-05
        %v1389 = vadd.f32 %v1373, 1e-05
        %v1390 = vadd.f32 %v1374, 1e-05
        %v1391 = vadd.f32 %v1375, 1e-05
        %v1392 = vadd.f32 %v1376, 1e-05
        %v1393 = vadd.f32 %v1377, 1e-05
        %v1394 = vadd.f32 %v1378, 1e-05
        %v1395 = vadd.f32 %v1379, 1e-05
        %v1396 = vadd.f32 %v1380, 1e-05
        %v1397 = vadd.f32 %v1381, 1e-05
        %v1398 = vadd.f32 %v1382, 1e-05
        %v1399 = vadd.f32 %v1383, 1e-05
        %v1400 = vadd.f32 %v1384, 1e-05
        %v1401 = vadd.f32 %v1385, 1e-05
        %v1402 = vrsqrt.pop %v1386
        %v1403 = vrsqrt.pop %v1387
        %v1404 = vrsqrt.pop %v1388
        %v1405 = vrsqrt.pop %v1389
        %v1406 = vrsqrt.pop %v1390
        %v1407 = vrsqrt.pop %v1391
        %v1408 = vrsqrt.pop %v1392
        %v1409 = vrsqrt.pop %v1393
        %v1410 = vrsqrt.pop %v1394
        %v1411 = vrsqrt.pop %v1395
        %v1412 = vrsqrt.pop %v1396
        %v1413 = vrsqrt.pop %v1397
        %v1414 = vrsqrt.pop %v1398
        %v1415 = vrsqrt.pop %v1399
        %v1416 = vrsqrt.pop %v1400
        %v1417 = vrsqrt.pop %v1401
        %v1418 = vmul.f32 %v1242, %v1402
        %v1419 = vmul.f32 %v1243, %v1402
        %v1420 = vmul.f32 %v1244, %v1403
        %v1421 = vmul.f32 %v1245, %v1403
        %v1422 = vmul.f32 %v1246, %v1404
        %v1423 = vmul.f32 %v1247, %v1404
        %v1424 = vmul.f32 %v1248, %v1405
        %v1425 = vmul.f32 %v1249, %v1405
        %v1426 = vmul.f32 %v1250, %v1406
        %v1427 = vmul.f32 %v1251, %v1406
        %v1428 = vmul.f32 %v1252, %v1407
        %v1429 = vmul.f32 %v1253, %v1407
        %v1430 = vmul.f32 %v1254, %v1408
        %v1431 = vmul.f32 %v1255, %v1408
        %v1432 = vmul.f32 %v1256, %v1409
        %v1433 = vmul.f32 %v1257, %v1409
        %v1434 = vmul.f32 %v1258, %v1410
        %v1435 = vmul.f32 %v1259, %v1410
        %v1436 = vmul.f32 %v1260, %v1411
        %v1437 = vmul.f32 %v1261, %v1411
        %v1438 = vmul.f32 %v1262, %v1412
        %v1439 = vmul.f32 %v1263, %v1412
        %v1440 = vmul.f32 %v1264, %v1413
        %v1441 = vmul.f32 %v1265, %v1413
        %v1442 = vmul.f32 %v1266, %v1414
        %v1443 = vmul.f32 %v1267, %v1414
        %v1444 = vmul.f32 %v1268, %v1415
        %v1445 = vmul.f32 %v1269, %v1415
        %v1446 = vmul.f32 %v1270, %v1416
        %v1447 = vmul.f32 %v1271, %v1416
        %v1448 = vmul.f32 %v1272, %v1417
        %v1449 = vmul.f32 %v1273, %v1417
        %v1451 = vlaneseq
        %v1452 = vshrl.u32 %v1451, 7
        %v1453 = vsub.s32 0, %v1452
        %v1454 = vrot.slane %v1158, %v1453
        %v1455 = vlaneseq
        %v1456 = vshrl.u32 %v1455, 7
        %v1457 = vsub.s32 1, %v1456
        %v1458 = vrot.slane %v1158, %v1457
        %v1461 = vmul.f32 %v1418, %v1454
        %v1462 = vmul.f32 %v1419, %v1458
        %v1463 = vmul.f32 %v1420, %v1454
        %v1464 = vmul.f32 %v1421, %v1458
        %v1465 = vmul.f32 %v1422, %v1454
        %v1466 = vmul.f32 %v1423, %v1458
        %v1467 = vmul.f32 %v1424, %v1454
        %v1468 = vmul.f32 %v1425, %v1458
        %v1469 = vmul.f32 %v1426, %v1454
        %v1470 = vmul.f32 %v1427, %v1458
        %v1471 = vmul.f32 %v1428, %v1454
        %v1472 = vmul.f32 %v1429, %v1458
        %v1473 = vmul.f32 %v1430, %v1454
        %v1474 = vmul.f32 %v1431, %v1458
        %v1475 = vmul.f32 %v1432, %v1454
        %v1476 = vmul.f32 %v1433, %v1458
        %v1477 = vmul.f32 %v1434, %v1454
        %v1478 = vmul.f32 %v1435, %v1458
        %v1479 = vmul.f32 %v1436, %v1454
        %v1480 = vmul.f32 %v1437, %v1458
        %v1481 = vmul.f32 %v1438, %v1454
        %v1482 = vmul.f32 %v1439, %v1458
        %v1483 = vmul.f32 %v1440, %v1454
        %v1484 = vmul.f32 %v1441, %v1458
        %v1485 = vmul.f32 %v1442, %v1454
        %v1486 = vmul.f32 %v1443, %v1458
        %v1487 = vmul.f32 %v1444, %v1454
        %v1488 = vmul.f32 %v1445, %v1458
        %v1489 = vmul.f32 %v1446, %v1454
        %v1490 = vmul.f32 %v1447, %v1458
        %v1491 = vmul.f32 %v1448, %v1454
        %v1492 = vmul.f32 %v1449, %v1458
        %v1494 = vlaneseq
        %v1495 = vshrl.u32 %v1494, 7
        %v1496 = vsub.s32 0, %v1495
        %v1497 = vrot.slane %v1159, %v1496
        %v1498 = vlaneseq
        %v1499 = vshrl.u32 %v1498, 7
        %v1500 = vsub.s32 1, %v1499
        %v1501 = vrot.slane %v1159, %v1500
        %v1504 = vadd.f32 %v1461, %v1497
        %v1505 = vadd.f32 %v1462, %v1501
        %v1506 = vadd.f32 %v1463, %v1497
        %v1507 = vadd.f32 %v1464, %v1501
        %v1508 = vadd.f32 %v1465, %v1497
        %v1509 = vadd.f32 %v1466, %v1501
        %v1510 = vadd.f32 %v1467, %v1497
        %v1511 = vadd.f32 %v1468, %v1501
        %v1512 = vadd.f32 %v1469, %v1497
        %v1513 = vadd.f32 %v1470, %v1501
        %v1514 = vadd.f32 %v1471, %v1497
        %v1515 = vadd.f32 %v1472, %v1501
        %v1516 = vadd.f32 %v1473, %v1497
        %v1517 = vadd.f32 %v1474, %v1501
        %v1518 = vadd.f32 %v1475, %v1497
        %v1519 = vadd.f32 %v1476, %v1501
        %v1520 = vadd.f32 %v1477, %v1497
        %v1521 = vadd.f32 %v1478, %v1501
        %v1522 = vadd.f32 %v1479, %v1497
        %v1523 = vadd.f32 %v1480, %v1501
        %v1524 = vadd.f32 %v1481, %v1497
        %v1525 = vadd.f32 %v1482, %v1501
        %v1526 = vadd.f32 %v1483, %v1497
        %v1527 = vadd.f32 %v1484, %v1501
        %v1528 = vadd.f32 %v1485, %v1497
        %v1529 = vadd.f32 %v1486, %v1501
        %v1530 = vadd.f32 %v1487, %v1497
        %v1531 = vadd.f32 %v1488, %v1501
        %v1532 = vadd.f32 %v1489, %v1497
        %v1533 = vadd.f32 %v1490, %v1501
        %v1534 = vadd.f32 %v1491, %v1497
        %v1535 = vadd.f32 %v1492, %v1501
        %v1536 = vpack.c.bf16 %v1506, %v1504
        %v1537 = vpack.c.bf16 %v1507, %v1505
        %v1538 = vpack.c.bf16 %v1510, %v1508
        %v1539 = vpack.c.bf16 %v1511, %v1509
        %v1540 = vpack.c.bf16 %v1514, %v1512
        %v1541 = vpack.c.bf16 %v1515, %v1513
        %v1542 = vpack.c.bf16 %v1518, %v1516
        %v1543 = vpack.c.bf16 %v1519, %v1517
        %v1544 = vpack.c.bf16 %v1522, %v1520
        %v1545 = vpack.c.bf16 %v1523, %v1521
        %v1546 = vpack.c.bf16 %v1526, %v1524
        %v1547 = vpack.c.bf16 %v1527, %v1525
        %v1548 = vpack.c.bf16 %v1530, %v1528
        %v1549 = vpack.c.bf16 %v1531, %v1529
        %v1550 = vpack.c.bf16 %v1534, %v1532
        %v1551 = vpack.c.bf16 %v1535, %v1533
        %v1552 = vld [vmem:[#allocation8] sm:$0xff]
        %v1553 = vld [vmem:[#allocation8 + $0x8] sm:$0xff]
        %v1554 = vld [vmem:[#allocation8 + $0x10] sm:$0xff]
        %v1555 = vld [vmem:[#allocation8 + $0x18] sm:$0xff]
        %v1556 = vld [vmem:[#allocation8 + $0x20] sm:$0xff]
        %v1557 = vld [vmem:[#allocation8 + $0x28] sm:$0xff]
        %v1558 = vld [vmem:[#allocation8 + $0x30] sm:$0xff]
        %v1559 = vld [vmem:[#allocation8 + $0x38] sm:$0xff]
        %v1560 = vld [vmem:[#allocation8 + $0x40] sm:$0xff]
        %v1561 = vld [vmem:[#allocation8 + $0x48] sm:$0xff]
        %v1562 = vld [vmem:[#allocation8 + $0x50] sm:$0xff]
        %v1563 = vld [vmem:[#allocation8 + $0x58] sm:$0xff]
        %v1564 = vld [vmem:[#allocation8 + $0x60] sm:$0xff]
        %v1565 = vld [vmem:[#allocation8 + $0x68] sm:$0xff]
        %v1566 = vld [vmem:[#allocation8 + $0x70] sm:$0xff]
        %v1567 = vld [vmem:[#allocation8 + $0x78] sm:$0xff]
        %v1568 = vld [vmem:[#allocation8 + $0x80] sm:$0xff]
        %v1569 = vld [vmem:[#allocation8 + $0x88] sm:$0xff]
        %v1570 = vld [vmem:[#allocation8 + $0x90] sm:$0xff]
        %v1571 = vld [vmem:[#allocation8 + $0x98] sm:$0xff]
        %v1572 = vld [vmem:[#allocation8 + $0xa0] sm:$0xff]
        %v1573 = vld [vmem:[#allocation8 + $0xa8] sm:$0xff]
        %v1574 = vld [vmem:[#allocation8 + $0xb0] sm:$0xff]
        %v1575 = vld [vmem:[#allocation8 + $0xb8] sm:$0xff]
        %v1576 = vld [vmem:[#allocation8 + $0xc0] sm:$0xff]
        %v1577 = vld [vmem:[#allocation8 + $0xc8] sm:$0xff]
        %v1578 = vld [vmem:[#allocation8 + $0xd0] sm:$0xff]
        %v1579 = vld [vmem:[#allocation8 + $0xd8] sm:$0xff]
        %v1580 = vld [vmem:[#allocation8 + $0xe0] sm:$0xff]
        %v1581 = vld [vmem:[#allocation8 + $0xe8] sm:$0xff]
        %v1582 = vld [vmem:[#allocation8 + $0xf0] sm:$0xff]
        %v1583 = vld [vmem:[#allocation8 + $0xf8] sm:$0xff]
        %v1584 = vld [vmem:[#allocation8 + $0x100] sm:$0xff]
        %v1585 = vld [vmem:[#allocation8 + $0x108] sm:$0xff]
        %v1586 = vld [vmem:[#allocation8 + $0x110] sm:$0xff]
        %v1587 = vld [vmem:[#allocation8 + $0x118] sm:$0xff]
        %v1588 = vld [vmem:[#allocation8 + $0x120] sm:$0xff]
        %v1589 = vld [vmem:[#allocation8 + $0x128] sm:$0xff]
        %v1590 = vld [vmem:[#allocation8 + $0x130] sm:$0xff]
        %v1591 = vld [vmem:[#allocation8 + $0x138] sm:$0xff]
        %v1592 = vld [vmem:[#allocation8 + $0x140] sm:$0xff]
        %v1593 = vld [vmem:[#allocation8 + $0x148] sm:$0xff]
        %v1594 = vld [vmem:[#allocation8 + $0x150] sm:$0xff]
        %v1595 = vld [vmem:[#allocation8 + $0x158] sm:$0xff]
        %v1596 = vld [vmem:[#allocation8 + $0x160] sm:$0xff]
        %v1597 = vld [vmem:[#allocation8 + $0x168] sm:$0xff]
        %v1598 = vld [vmem:[#allocation8 + $0x170] sm:$0xff]
        %v1599 = vld [vmem:[#allocation8 + $0x178] sm:$0xff]
        %v1648 = vunpack.c.l.b16 %v1552
        %v1649 = vunpack.c.h.b16 %v1552
        %v1650 = vunpack.c.l.b16 %v1553
        %v1651 = vunpack.c.h.b16 %v1553
        %v1652 = vunpack.c.l.b16 %v1554
        %v1653 = vunpack.c.h.b16 %v1554
        %v1654 = vunpack.c.l.b16 %v1555
        %v1655 = vunpack.c.h.b16 %v1555
        %v1656 = vunpack.c.l.b16 %v1556
        %v1657 = vunpack.c.h.b16 %v1556
        %v1658 = vunpack.c.l.b16 %v1557
        %v1659 = vunpack.c.h.b16 %v1557
        %v1660 = vunpack.c.l.b16 %v1558
        %v1661 = vunpack.c.h.b16 %v1558
        %v1662 = vunpack.c.l.b16 %v1559
        %v1663 = vunpack.c.h.b16 %v1559
        %v1664 = vunpack.c.l.b16 %v1560
        %v1665 = vunpack.c.h.b16 %v1560
        %v1666 = vunpack.c.l.b16 %v1561
        %v1667 = vunpack.c.h.b16 %v1561
        %v1668 = vunpack.c.l.b16 %v1562
        %v1669 = vunpack.c.h.b16 %v1562
        %v1670 = vunpack.c.l.b16 %v1563
        %v1671 = vunpack.c.h.b16 %v1563
        %v1672 = vunpack.c.l.b16 %v1564
        %v1673 = vunpack.c.h.b16 %v1564
        %v1674 = vunpack.c.l.b16 %v1565
        %v1675 = vunpack.c.h.b16 %v1565
        %v1676 = vunpack.c.l.b16 %v1566
        %v1677 = vunpack.c.h.b16 %v1566
        %v1678 = vunpack.c.l.b16 %v1567
        %v1679 = vunpack.c.h.b16 %v1567
        %v1680 = vunpack.c.l.b16 %v1568
        %v1681 = vunpack.c.h.b16 %v1568
        %v1682 = vunpack.c.l.b16 %v1569
        %v1683 = vunpack.c.h.b16 %v1569
        %v1684 = vunpack.c.l.b16 %v1570
        %v1685 = vunpack.c.h.b16 %v1570
        %v1686 = vunpack.c.l.b16 %v1571
        %v1687 = vunpack.c.h.b16 %v1571
        %v1688 = vunpack.c.l.b16 %v1572
        %v1689 = vunpack.c.h.b16 %v1572
        %v1690 = vunpack.c.l.b16 %v1573
        %v1691 = vunpack.c.h.b16 %v1573
        %v1692 = vunpack.c.l.b16 %v1574
        %v1693 = vunpack.c.h.b16 %v1574
        %v1694 = vunpack.c.l.b16 %v1575
        %v1695 = vunpack.c.h.b16 %v1575
        %v1696 = vunpack.c.l.b16 %v1576
        %v1697 = vunpack.c.h.b16 %v1576
        %v1698 = vunpack.c.l.b16 %v1577
        %v1699 = vunpack.c.h.b16 %v1577
        %v1700 = vunpack.c.l.b16 %v1578
        %v1701 = vunpack.c.h.b16 %v1578
        %v1702 = vunpack.c.l.b16 %v1579
        %v1703 = vunpack.c.h.b16 %v1579
        %v1704 = vunpack.c.l.b16 %v1580
        %v1705 = vunpack.c.h.b16 %v1580
        %v1706 = vunpack.c.l.b16 %v1581
        %v1707 = vunpack.c.h.b16 %v1581
        %v1708 = vunpack.c.l.b16 %v1582
        %v1709 = vunpack.c.h.b16 %v1582
        %v1710 = vunpack.c.l.b16 %v1583
        %v1711 = vunpack.c.h.b16 %v1583
        %v1712 = vunpack.c.l.b16 %v1584
        %v1713 = vunpack.c.h.b16 %v1584
        %v1714 = vunpack.c.l.b16 %v1585
        %v1715 = vunpack.c.h.b16 %v1585
        %v1716 = vunpack.c.l.b16 %v1586
        %v1717 = vunpack.c.h.b16 %v1586
        %v1718 = vunpack.c.l.b16 %v1587
        %v1719 = vunpack.c.h.b16 %v1587
        %v1720 = vunpack.c.l.b16 %v1588
        %v1721 = vunpack.c.h.b16 %v1588
        %v1722 = vunpack.c.l.b16 %v1589
        %v1723 = vunpack.c.h.b16 %v1589
        %v1724 = vunpack.c.l.b16 %v1590
        %v1725 = vunpack.c.h.b16 %v1590
        %v1726 = vunpack.c.l.b16 %v1591
        %v1727 = vunpack.c.h.b16 %v1591
        %v1728 = vunpack.c.l.b16 %v1592
        %v1729 = vunpack.c.h.b16 %v1592
        %v1730 = vunpack.c.l.b16 %v1593
        %v1731 = vunpack.c.h.b16 %v1593
        %v1732 = vunpack.c.l.b16 %v1594
        %v1733 = vunpack.c.h.b16 %v1594
        %v1734 = vunpack.c.l.b16 %v1595
        %v1735 = vunpack.c.h.b16 %v1595
        %v1736 = vunpack.c.l.b16 %v1596
        %v1737 = vunpack.c.h.b16 %v1596
        %v1738 = vunpack.c.l.b16 %v1597
        %v1739 = vunpack.c.h.b16 %v1597
        %v1740 = vunpack.c.l.b16 %v1598
        %v1741 = vunpack.c.h.b16 %v1598
        %v1742 = vunpack.c.l.b16 %v1599
        %v1743 = vunpack.c.h.b16 %v1599
        %v1744 = vpack.c.b16 %v1650, %v1648
        %v1745 = vpack.c.b16 %v1651, %v1649
        %v1746 = vpack.c.b16 %v1654, %v1652
        %v1747 = vpack.c.b16 %v1655, %v1653
        %v1748 = vpack.c.b16 %v1658, %v1656
        %v1749 = vpack.c.b16 %v1659, %v1657
        %v1750 = vpack.c.b16 %v1662, %v1660
        %v1751 = vpack.c.b16 %v1663, %v1661
        %v1752 = vpack.c.b16 %v1666, %v1664
        %v1753 = vpack.c.b16 %v1667, %v1665
        %v1754 = vpack.c.b16 %v1670, %v1668
        %v1755 = vpack.c.b16 %v1671, %v1669
        %v1756 = vpack.c.b16 %v1674, %v1672
        %v1757 = vpack.c.b16 %v1675, %v1673
        %v1758 = vpack.c.b16 %v1678, %v1676
        %v1759 = vpack.c.b16 %v1679, %v1677
        %v1760 = vpack.c.b16 %v1682, %v1680
        %v1761 = vpack.c.b16 %v1683, %v1681
        %v1762 = vpack.c.b16 %v1686, %v1684
        %v1763 = vpack.c.b16 %v1687, %v1685
        %v1764 = vpack.c.b16 %v1690, %v1688
        %v1765 = vpack.c.b16 %v1691, %v1689
        %v1766 = vpack.c.b16 %v1694, %v1692
        %v1767 = vpack.c.b16 %v1695, %v1693
        %v1768 = vpack.c.b16 %v1698, %v1696
        %v1769 = vpack.c.b16 %v1699, %v1697
        %v1770 = vpack.c.b16 %v1702, %v1700
        %v1771 = vpack.c.b16 %v1703, %v1701
        %v1772 = vpack.c.b16 %v1706, %v1704
        %v1773 = vpack.c.b16 %v1707, %v1705
        %v1774 = vpack.c.b16 %v1710, %v1708
        %v1775 = vpack.c.b16 %v1711, %v1709
        %v1776 = vpack.c.b16 %v1714, %v1712
        %v1777 = vpack.c.b16 %v1715, %v1713
        %v1778 = vpack.c.b16 %v1718, %v1716
        %v1779 = vpack.c.b16 %v1719, %v1717
        %v1780 = vpack.c.b16 %v1722, %v1720
        %v1781 = vpack.c.b16 %v1723, %v1721
        %v1782 = vpack.c.b16 %v1726, %v1724
        %v1783 = vpack.c.b16 %v1727, %v1725
        %v1784 = vpack.c.b16 %v1730, %v1728
        %v1785 = vpack.c.b16 %v1731, %v1729
        %v1786 = vpack.c.b16 %v1734, %v1732
        %v1787 = vpack.c.b16 %v1735, %v1733
        %v1788 = vpack.c.b16 %v1738, %v1736
        %v1789 = vpack.c.b16 %v1739, %v1737
        %v1790 = vpack.c.b16 %v1742, %v1740
        %v1791 = vpack.c.b16 %v1743, %v1741
        %1840 = vmatprep.subr.bf16.mxu0 %v1759
        %1841 = vmatpush1.bf16.msra.mxu0 %v1758
        %1842 = vmatprep.subr.bf16.mxu0 %v1757
        %1843 = vmatpush1.bf16.msra.mxu0 %v1756
        %1844 = vmatprep.subr.bf16.mxu0 %v1755
        %1845 = vmatpush1.bf16.msra.mxu0 %v1754
        %1846 = vmatprep.subr.bf16.mxu0 %v1753
        %1847 = vmatpush1.bf16.msra.mxu0 %v1752
        %1848 = vmatprep.subr.bf16.mxu0 %v1751
        %1849 = vmatpush1.bf16.msra.mxu0 %v1750
        %1850 = vmatprep.subr.bf16.mxu0 %v1749
        %1851 = vmatpush1.bf16.msra.mxu0 %v1748
        %1852 = vmatprep.subr.bf16.mxu0 %v1747
        %1853 = vmatpush1.bf16.msra.mxu0 %v1746
        %1854 = vmatprep.subr.bf16.mxu0 %v1745
        %1855 = vmatpush1.bf16.msra.mxu0 %v1744
        %1856 = vmatprep.subr.bf16.mxu0 %v1775
        %1857 = vmatpush2.bf16.msra.mxu0 %v1774
        %1858 = vmatprep.subr.bf16.mxu0 %v1773
        %1859 = vmatpush2.bf16.msra.mxu0 %v1772
        %1860 = vmatprep.subr.bf16.mxu0 %v1771
        %1861 = vmatpush2.bf16.msra.mxu0 %v1770
        %1862 = vmatprep.subr.bf16.mxu0 %v1769
        %1863 = vmatpush2.bf16.msra.mxu0 %v1768
        %1864 = vmatprep.subr.bf16.mxu0 %v1767
        %1865 = vmatpush2.bf16.msra.mxu0 %v1766
        %1866 = vmatprep.subr.bf16.mxu0 %v1765
        %1867 = vmatpush2.bf16.msra.mxu0 %v1764
        %1868 = vmatprep.subr.bf16.mxu0 %v1763
        %1869 = vmatpush2.bf16.msra.mxu0 %v1762
        %1870 = vmatprep.subr.bf16.mxu0 %v1761
        %1871 = vmatpush2.bf16.msra.mxu0 %v1760
        %1872 = vmatprep.mubr.bf16.mxu0 %v645
        %1873 = vmatmul.mubr.bf16.gmra.mxu0 %v644
        %v1874 = vpop.f32.mrf.mxu0
        %v1875 = vadd.f32 0.0, %v1874
        %v1876 = vpop.f32.mrf.mxu0
        %v1877 = vadd.f32 0.0, %v1876
        %v1878 = vpop.f32.mrf.mxu0
        %v1879 = vadd.f32 0.0, %v1878
        %v1880 = vpop.f32.mrf.mxu0
        %v1881 = vadd.f32 0.0, %v1880
        %1882 = vmatprep.mubr.bf16.mxu0 %v648
        %1883 = vmatmul.mubr.bf16.gmra.mxu0 %v647
        %v1884 = vpop.f32.mrf.mxu0
        %v1885 = vadd.f32 0.0, %v1884
        %v1886 = vpop.f32.mrf.mxu0
        %v1887 = vadd.f32 0.0, %v1886
        %v1888 = vpop.f32.mrf.mxu0
        %v1889 = vadd.f32 0.0, %v1888
        %v1890 = vpop.f32.mrf.mxu0
        %v1891 = vadd.f32 0.0, %v1890
        %1892 = vmatprep.mubr.bf16.mxu0 %v651
        %1893 = vmatmul.mubr.bf16.gmra.mxu0 %v650
        %v1894 = vpop.f32.mrf.mxu0
        %v1895 = vadd.f32 0.0, %v1894
        %v1896 = vpop.f32.mrf.mxu0
        %v1897 = vadd.f32 0.0, %v1896
        %v1898 = vpop.f32.mrf.mxu0
        %v1899 = vadd.f32 0.0, %v1898
        %v1900 = vpop.f32.mrf.mxu0
        %v1901 = vadd.f32 0.0, %v1900
        %1902 = vmatprep.mubr.bf16.mxu0 %v654
        %1903 = vmatmul.mubr.bf16.gmra.mxu0 %v653
        %v1904 = vpop.f32.mrf.mxu0
        %v1905 = vadd.f32 0.0, %v1904
        %v1906 = vpop.f32.mrf.mxu0
        %v1907 = vadd.f32 0.0, %v1906
        %v1908 = vpop.f32.mrf.mxu0
        %v1909 = vadd.f32 0.0, %v1908
        %v1910 = vpop.f32.mrf.mxu0
        %v1911 = vadd.f32 0.0, %v1910
        %1912 = vmatprep.mubr.bf16.mxu0 %v657
        %1913 = vmatmul.mubr.bf16.gmra.mxu0 %v656
        %v1914 = vpop.f32.mrf.mxu0
        %v1915 = vadd.f32 0.0, %v1914
        %v1916 = vpop.f32.mrf.mxu0
        %v1917 = vadd.f32 0.0, %v1916
        %v1918 = vpop.f32.mrf.mxu0
        %v1919 = vadd.f32 0.0, %v1918
        %v1920 = vpop.f32.mrf.mxu0
        %v1921 = vadd.f32 0.0, %v1920
        %1922 = vmatprep.mubr.bf16.mxu0 %v660
        %1923 = vmatmul.mubr.bf16.gmra.mxu0 %v659
        %v1924 = vpop.f32.mrf.mxu0
        %v1925 = vadd.f32 0.0, %v1924
        %v1926 = vpop.f32.mrf.mxu0
        %v1927 = vadd.f32 0.0, %v1926
        %v1928 = vpop.f32.mrf.mxu0
        %v1929 = vadd.f32 0.0, %v1928
        %v1930 = vpop.f32.mrf.mxu0
        %v1931 = vadd.f32 0.0, %v1930
        %1932 = vmatprep.mubr.bf16.mxu0 %v663
        %1933 = vmatmul.mubr.bf16.gmra.mxu0 %v662
        %v1934 = vpop.f32.mrf.mxu0
        %v1935 = vadd.f32 0.0, %v1934
        %v1936 = vpop.f32.mrf.mxu0
        %v1937 = vadd.f32 0.0, %v1936
        %v1938 = vpop.f32.mrf.mxu0
        %v1939 = vadd.f32 0.0, %v1938
        %v1940 = vpop.f32.mrf.mxu0
        %v1941 = vadd.f32 0.0, %v1940
        %1942 = vmatprep.mubr.bf16.mxu0 %v666
        %1943 = vmatmul.mubr.bf16.gmra.mxu0 %v665
        %v1944 = vpop.f32.mrf.mxu0
        %v1945 = vadd.f32 0.0, %v1944
        %v1946 = vpop.f32.mrf.mxu0
        %v1947 = vadd.f32 0.0, %v1946
        %v1948 = vpop.f32.mrf.mxu0
        %v1949 = vadd.f32 0.0, %v1948
        %v1950 = vpop.f32.mrf.mxu0
        %v1951 = vadd.f32 0.0, %v1950
        %1952 = vdwg.mxu0
        %1953 = vmatprep.subr.bf16.mxu0 %v1791
        %1954 = vmatpush1.bf16.msra.mxu0 %v1790
        %1955 = vmatprep.subr.bf16.mxu0 %v1789
        %1956 = vmatpush1.bf16.msra.mxu0 %v1788
        %1957 = vmatprep.subr.bf16.mxu0 %v1787
        %1958 = vmatpush1.bf16.msra.mxu0 %v1786
        %1959 = vmatprep.subr.bf16.mxu0 %v1785
        %1960 = vmatpush1.bf16.msra.mxu0 %v1784
        %1961 = vmatprep.subr.bf16.mxu0 %v1783
        %1962 = vmatpush1.bf16.msra.mxu0 %v1782
        %1963 = vmatprep.subr.bf16.mxu0 %v1781
        %1964 = vmatpush1.bf16.msra.mxu0 %v1780
        %1965 = vmatprep.subr.bf16.mxu0 %v1779
        %1966 = vmatpush1.bf16.msra.mxu0 %v1778
        %1967 = vmatprep.subr.bf16.mxu0 %v1777
        %1968 = vmatpush1.bf16.msra.mxu0 %v1776
        %1969 = vmatprep.subr.bf16.mxu0 0
        %1970 = vmatpush2.bf16.msra.mxu0 0
        %1971 = vmatprep.subr.bf16.mxu0 0
        %1972 = vmatpush2.bf16.msra.mxu0 0
        %1973 = vmatprep.subr.bf16.mxu0 0
        %1974 = vmatpush2.bf16.msra.mxu0 0
        %1975 = vmatprep.subr.bf16.mxu0 0
        %1976 = vmatpush2.bf16.msra.mxu0 0
        %1977 = vmatprep.subr.bf16.mxu0 0
        %1978 = vmatpush2.bf16.msra.mxu0 0
        %1979 = vmatprep.subr.bf16.mxu0 0
        %1980 = vmatpush2.bf16.msra.mxu0 0
        %1981 = vmatprep.subr.bf16.mxu0 0
        %1982 = vmatpush2.bf16.msra.mxu0 0
        %1983 = vmatprep.subr.bf16.mxu0 0
        %1984 = vmatpush2.bf16.msra.mxu0 0
        %1985 = vmatprep.mubr.bf16.mxu0 0
        %1986 = vmatmul.mubr.bf16.gmra.mxu0 %v646
        %v1987 = vpop.f32.mrf.mxu0
        %v1988 = vadd.f32 %v1875, %v1987
        %v1989 = vpop.f32.mrf.mxu0
        %v1990 = vadd.f32 %v1877, %v1989
        %v1991 = vpop.f32.mrf.mxu0
        %v1992 = vadd.f32 %v1879, %v1991
        %v1993 = vpop.f32.mrf.mxu0
        %v1994 = vadd.f32 %v1881, %v1993
        %1995 = vmatprep.mubr.bf16.mxu0 0
        %1996 = vmatmul.mubr.bf16.gmra.mxu0 %v649
        %v1997 = vpop.f32.mrf.mxu0
        %v1998 = vadd.f32 %v1885, %v1997
        %v1999 = vpop.f32.mrf.mxu0
        %v2000 = vadd.f32 %v1887, %v1999
        %v2001 = vpop.f32.mrf.mxu0
        %v2002 = vadd.f32 %v1889, %v2001
        %v2003 = vpop.f32.mrf.mxu0
        %v2004 = vadd.f32 %v1891, %v2003
        %2005 = vmatprep.mubr.bf16.mxu0 0
        %2006 = vmatmul.mubr.bf16.gmra.mxu0 %v652
        %v2007 = vpop.f32.mrf.mxu0
        %v2008 = vadd.f32 %v1895, %v2007
        %v2009 = vpop.f32.mrf.mxu0
        %v2010 = vadd.f32 %v1897, %v2009
        %v2011 = vpop.f32.mrf.mxu0
        %v2012 = vadd.f32 %v1899, %v2011
        %v2013 = vpop.f32.mrf.mxu0
        %v2014 = vadd.f32 %v1901, %v2013
        %2015 = vmatprep.mubr.bf16.mxu0 0
        %2016 = vmatmul.mubr.bf16.gmra.mxu0 %v655
        %v2017 = vpop.f32.mrf.mxu0
        %v2018 = vadd.f32 %v1905, %v2017
        %v2019 = vpop.f32.mrf.mxu0
        %v2020 = vadd.f32 %v1907, %v2019
        %v2021 = vpop.f32.mrf.mxu0
        %v2022 = vadd.f32 %v1909, %v2021
        %v2023 = vpop.f32.mrf.mxu0
        %v2024 = vadd.f32 %v1911, %v2023
        %2025 = vmatprep.mubr.bf16.mxu0 0
        %2026 = vmatmul.mubr.bf16.gmra.mxu0 %v658
        %v2027 = vpop.f32.mrf.mxu0
        %v2028 = vadd.f32 %v1915, %v2027
        %v2029 = vpop.f32.mrf.mxu0
        %v2030 = vadd.f32 %v1917, %v2029
        %v2031 = vpop.f32.mrf.mxu0
        %v2032 = vadd.f32 %v1919, %v2031
        %v2033 = vpop.f32.mrf.mxu0
        %v2034 = vadd.f32 %v1921, %v2033
        %2035 = vmatprep.mubr.bf16.mxu0 0
        %2036 = vmatmul.mubr.bf16.gmra.mxu0 %v661
        %v2037 = vpop.f32.mrf.mxu0
        %v2038 = vadd.f32 %v1925, %v2037
        %v2039 = vpop.f32.mrf.mxu0
        %v2040 = vadd.f32 %v1927, %v2039
        %v2041 = vpop.f32.mrf.mxu0
        %v2042 = vadd.f32 %v1929, %v2041
        %v2043 = vpop.f32.mrf.mxu0
        %v2044 = vadd.f32 %v1931, %v2043
        %2045 = vmatprep.mubr.bf16.mxu0 0
        %2046 = vmatmul.mubr.bf16.gmra.mxu0 %v664
        %v2047 = vpop.f32.mrf.mxu0
        %v2048 = vadd.f32 %v1935, %v2047
        %v2049 = vpop.f32.mrf.mxu0
        %v2050 = vadd.f32 %v1937, %v2049
        %v2051 = vpop.f32.mrf.mxu0
        %v2052 = vadd.f32 %v1939, %v2051
        %v2053 = vpop.f32.mrf.mxu0
        %v2054 = vadd.f32 %v1941, %v2053
        %2055 = vmatprep.mubr.bf16.mxu0 0
        %2056 = vmatmul.mubr.bf16.gmra.mxu0 %v667
        %v2057 = vpop.f32.mrf.mxu0
        %v2058 = vadd.f32 %v1945, %v2057
        %v2059 = vpop.f32.mrf.mxu0
        %v2060 = vadd.f32 %v1947, %v2059
        %v2061 = vpop.f32.mrf.mxu0
        %v2062 = vadd.f32 %v1949, %v2061
        %v2063 = vpop.f32.mrf.mxu0
        %v2064 = vadd.f32 %v1951, %v2063
        %2065 = vdwg.mxu0
        %v2066 = vld [vmem:[#allocation10] sm:$0x3]
        %v2067 = vld [vmem:[#allocation11] sm:$0x3]
        %v2068 = vadd.f32 %v1988, %v1990
        %2069 = vadd.xlane.f32.xlu0 %v2068
        %v2070 = vpop.xlane.xlu0 %2069
        %v2071 = vadd.f32 %v1992, %v1994
        %2072 = vadd.xlane.f32.xlu0 %v2071
        %v2073 = vpop.xlane.xlu0 %2072
        %v2074 = vadd.f32 %v1998, %v2000
        %2075 = vadd.xlane.f32.xlu0 %v2074
        %v2076 = vpop.xlane.xlu0 %2075
        %v2077 = vadd.f32 %v2002, %v2004
        %2078 = vadd.xlane.f32.xlu0 %v2077
        %v2079 = vpop.xlane.xlu0 %2078
        %v2080 = vadd.f32 %v2008, %v2010
        %2081 = vadd.xlane.f32.xlu0 %v2080
        %v2082 = vpop.xlane.xlu0 %2081
        %v2083 = vadd.f32 %v2012, %v2014
        %2084 = vadd.xlane.f32.xlu0 %v2083
        %v2085 = vpop.xlane.xlu0 %2084
        %v2086 = vadd.f32 %v2018, %v2020
        %2087 = vadd.xlane.f32.xlu0 %v2086
        %v2088 = vpop.xlane.xlu0 %2087
        %v2089 = vadd.f32 %v2022, %v2024
        %2090 = vadd.xlane.f32.xlu0 %v2089
        %v2091 = vpop.xlane.xlu0 %2090
        %v2092 = vadd.f32 %v2028, %v2030
        %2093 = vadd.xlane.f32.xlu0 %v2092
        %v2094 = vpop.xlane.xlu0 %2093
        %v2095 = vadd.f32 %v2032, %v2034
        %2096 = vadd.xlane.f32.xlu0 %v2095
        %v2097 = vpop.xlane.xlu0 %2096
        %v2098 = vadd.f32 %v2038, %v2040
        %2099 = vadd.xlane.f32.xlu0 %v2098
        %v2100 = vpop.xlane.xlu0 %2099
        %v2101 = vadd.f32 %v2042, %v2044
        %2102 = vadd.xlane.f32.xlu0 %v2101
        %v2103 = vpop.xlane.xlu0 %2102
        %v2104 = vadd.f32 %v2048, %v2050
        %2105 = vadd.xlane.f32.xlu0 %v2104
        %v2106 = vpop.xlane.xlu0 %2105
        %v2107 = vadd.f32 %v2052, %v2054
        %2108 = vadd.xlane.f32.xlu0 %v2107
        %v2109 = vpop.xlane.xlu0 %2108
        %v2110 = vadd.f32 %v2058, %v2060
        %2111 = vadd.xlane.f32.xlu0 %v2110
        %v2112 = vpop.xlane.xlu0 %2111
        %v2113 = vadd.f32 %v2062, %v2064
        %2114 = vadd.xlane.f32.xlu0 %v2113
        %v2115 = vpop.xlane.xlu0 %2114
        %v2116 = vrcp.pop 256.0
        %v2117 = vmul.f32 %v2070, %v2116
        %v2118 = vmul.f32 %v2073, %v2116
        %v2119 = vmul.f32 %v2076, %v2116
        %v2120 = vmul.f32 %v2079, %v2116
        %v2121 = vmul.f32 %v2082, %v2116
        %v2122 = vmul.f32 %v2085, %v2116
        %v2123 = vmul.f32 %v2088, %v2116
        %v2124 = vmul.f32 %v2091, %v2116
        %v2125 = vmul.f32 %v2094, %v2116
        %v2126 = vmul.f32 %v2097, %v2116
        %v2127 = vmul.f32 %v2100, %v2116
        %v2128 = vmul.f32 %v2103, %v2116
        %v2129 = vmul.f32 %v2106, %v2116
        %v2130 = vmul.f32 %v2109, %v2116
        %v2131 = vmul.f32 %v2112, %v2116
        %v2132 = vmul.f32 %v2115, %v2116
        %v2133 = vsub.f32 %v1988, %v2117
        %v2134 = vsub.f32 %v1990, %v2117
        %v2135 = vsub.f32 %v1992, %v2118
        %v2136 = vsub.f32 %v1994, %v2118
        %v2137 = vsub.f32 %v1998, %v2119
        %v2138 = vsub.f32 %v2000, %v2119
        %v2139 = vsub.f32 %v2002, %v2120
        %v2140 = vsub.f32 %v2004, %v2120
        %v2141 = vsub.f32 %v2008, %v2121
        %v2142 = vsub.f32 %v2010, %v2121
        %v2143 = vsub.f32 %v2012, %v2122
        %v2144 = vsub.f32 %v2014, %v2122
        %v2145 = vsub.f32 %v2018, %v2123
        %v2146 = vsub.f32 %v2020, %v2123
        %v2147 = vsub.f32 %v2022, %v2124
        %v2148 = vsub.f32 %v2024, %v2124
        %v2149 = vsub.f32 %v2028, %v2125
        %v2150 = vsub.f32 %v2030, %v2125
        %v2151 = vsub.f32 %v2032, %v2126
        %v2152 = vsub.f32 %v2034, %v2126
        %v2153 = vsub.f32 %v2038, %v2127
        %v2154 = vsub.f32 %v2040, %v2127
        %v2155 = vsub.f32 %v2042, %v2128
        %v2156 = vsub.f32 %v2044, %v2128
        %v2157 = vsub.f32 %v2048, %v2129
        %v2158 = vsub.f32 %v2050, %v2129
        %v2159 = vsub.f32 %v2052, %v2130
        %v2160 = vsub.f32 %v2054, %v2130
        %v2161 = vsub.f32 %v2058, %v2131
        %v2162 = vsub.f32 %v2060, %v2131
        %v2163 = vsub.f32 %v2062, %v2132
        %v2164 = vsub.f32 %v2064, %v2132
        %v2165 = vmul.f32 %v2133, %v2133
        %v2166 = vmul.f32 %v2134, %v2134
        %v2167 = vmul.f32 %v2135, %v2135
        %v2168 = vmul.f32 %v2136, %v2136
        %v2169 = vmul.f32 %v2137, %v2137
        %v2170 = vmul.f32 %v2138, %v2138
        %v2171 = vmul.f32 %v2139, %v2139
        %v2172 = vmul.f32 %v2140, %v2140
        %v2173 = vmul.f32 %v2141, %v2141
        %v2174 = vmul.f32 %v2142, %v2142
        %v2175 = vmul.f32 %v2143, %v2143
        %v2176 = vmul.f32 %v2144, %v2144
        %v2177 = vmul.f32 %v2145, %v2145
        %v2178 = vmul.f32 %v2146, %v2146
        %v2179 = vmul.f32 %v2147, %v2147
        %v2180 = vmul.f32 %v2148, %v2148
        %v2181 = vmul.f32 %v2149, %v2149
        %v2182 = vmul.f32 %v2150, %v2150
        %v2183 = vmul.f32 %v2151, %v2151
        %v2184 = vmul.f32 %v2152, %v2152
        %v2185 = vmul.f32 %v2153, %v2153
        %v2186 = vmul.f32 %v2154, %v2154
        %v2187 = vmul.f32 %v2155, %v2155
        %v2188 = vmul.f32 %v2156, %v2156
        %v2189 = vmul.f32 %v2157, %v2157
        %v2190 = vmul.f32 %v2158, %v2158
        %v2191 = vmul.f32 %v2159, %v2159
        %v2192 = vmul.f32 %v2160, %v2160
        %v2193 = vmul.f32 %v2161, %v2161
        %v2194 = vmul.f32 %v2162, %v2162
        %v2195 = vmul.f32 %v2163, %v2163
        %v2196 = vmul.f32 %v2164, %v2164
        %v2197 = vadd.f32 %v2165, %v2166
        %2198 = vadd.xlane.f32.xlu0 %v2197
        %v2199 = vpop.xlane.xlu0 %2198
        %v2200 = vadd.f32 %v2167, %v2168
        %2201 = vadd.xlane.f32.xlu0 %v2200
        %v2202 = vpop.xlane.xlu0 %2201
        %v2203 = vadd.f32 %v2169, %v2170
        %2204 = vadd.xlane.f32.xlu0 %v2203
        %v2205 = vpop.xlane.xlu0 %2204
        %v2206 = vadd.f32 %v2171, %v2172
        %2207 = vadd.xlane.f32.xlu0 %v2206
        %v2208 = vpop.xlane.xlu0 %2207
        %v2209 = vadd.f32 %v2173, %v2174
        %2210 = vadd.xlane.f32.xlu0 %v2209
        %v2211 = vpop.xlane.xlu0 %2210
        %v2212 = vadd.f32 %v2175, %v2176
        %2213 = vadd.xlane.f32.xlu0 %v2212
        %v2214 = vpop.xlane.xlu0 %2213
        %v2215 = vadd.f32 %v2177, %v2178
        %2216 = vadd.xlane.f32.xlu0 %v2215
        %v2217 = vpop.xlane.xlu0 %2216
        %v2218 = vadd.f32 %v2179, %v2180
        %2219 = vadd.xlane.f32.xlu0 %v2218
        %v2220 = vpop.xlane.xlu0 %2219
        %v2221 = vadd.f32 %v2181, %v2182
        %2222 = vadd.xlane.f32.xlu0 %v2221
        %v2223 = vpop.xlane.xlu0 %2222
        %v2224 = vadd.f32 %v2183, %v2184
        %2225 = vadd.xlane.f32.xlu0 %v2224
        %v2226 = vpop.xlane.xlu0 %2225
        %v2227 = vadd.f32 %v2185, %v2186
        %2228 = vadd.xlane.f32.xlu0 %v2227
        %v2229 = vpop.xlane.xlu0 %2228
        %v2230 = vadd.f32 %v2187, %v2188
        %2231 = vadd.xlane.f32.xlu0 %v2230
        %v2232 = vpop.xlane.xlu0 %2231
        %v2233 = vadd.f32 %v2189, %v2190
        %2234 = vadd.xlane.f32.xlu0 %v2233
        %v2235 = vpop.xlane.xlu0 %2234
        %v2236 = vadd.f32 %v2191, %v2192
        %2237 = vadd.xlane.f32.xlu0 %v2236
        %v2238 = vpop.xlane.xlu0 %2237
        %v2239 = vadd.f32 %v2193, %v2194
        %2240 = vadd.xlane.f32.xlu0 %v2239
        %v2241 = vpop.xlane.xlu0 %2240
        %v2242 = vadd.f32 %v2195, %v2196
        %2243 = vadd.xlane.f32.xlu0 %v2242
        %v2244 = vpop.xlane.xlu0 %2243
        %v2245 = vmul.f32 %v2199, %v2116
        %v2246 = vmul.f32 %v2202, %v2116
        %v2247 = vmul.f32 %v2205, %v2116
        %v2248 = vmul.f32 %v2208, %v2116
        %v2249 = vmul.f32 %v2211, %v2116
        %v2250 = vmul.f32 %v2214, %v2116
        %v2251 = vmul.f32 %v2217, %v2116
        %v2252 = vmul.f32 %v2220, %v2116
        %v2253 = vmul.f32 %v2223, %v2116
        %v2254 = vmul.f32 %v2226, %v2116
        %v2255 = vmul.f32 %v2229, %v2116
        %v2256 = vmul.f32 %v2232, %v2116
        %v2257 = vmul.f32 %v2235, %v2116
        %v2258 = vmul.f32 %v2238, %v2116
        %v2259 = vmul.f32 %v2241, %v2116
        %v2260 = vmul.f32 %v2244, %v2116
        %v2261 = vadd.f32 %v2245, 1e-05
        %v2262 = vadd.f32 %v2246, 1e-05
        %v2263 = vadd.f32 %v2247, 1e-05
        %v2264 = vadd.f32 %v2248, 1e-05
        %v2265 = vadd.f32 %v2249, 1e-05
        %v2266 = vadd.f32 %v2250, 1e-05
        %v2267 = vadd.f32 %v2251, 1e-05
        %v2268 = vadd.f32 %v2252, 1e-05
        %v2269 = vadd.f32 %v2253, 1e-05
        %v2270 = vadd.f32 %v2254, 1e-05
        %v2271 = vadd.f32 %v2255, 1e-05
        %v2272 = vadd.f32 %v2256, 1e-05
        %v2273 = vadd.f32 %v2257, 1e-05
        %v2274 = vadd.f32 %v2258, 1e-05
        %v2275 = vadd.f32 %v2259, 1e-05
        %v2276 = vadd.f32 %v2260, 1e-05
        %v2277 = vrsqrt.pop %v2261
        %v2278 = vrsqrt.pop %v2262
        %v2279 = vrsqrt.pop %v2263
        %v2280 = vrsqrt.pop %v2264
        %v2281 = vrsqrt.pop %v2265
        %v2282 = vrsqrt.pop %v2266
        %v2283 = vrsqrt.pop %v2267
        %v2284 = vrsqrt.pop %v2268
        %v2285 = vrsqrt.pop %v2269
        %v2286 = vrsqrt.pop %v2270
        %v2287 = vrsqrt.pop %v2271
        %v2288 = vrsqrt.pop %v2272
        %v2289 = vrsqrt.pop %v2273
        %v2290 = vrsqrt.pop %v2274
        %v2291 = vrsqrt.pop %v2275
        %v2292 = vrsqrt.pop %v2276
        %v2293 = vmul.f32 %v2133, %v2277
        %v2294 = vmul.f32 %v2134, %v2277
        %v2295 = vmul.f32 %v2135, %v2278
        %v2296 = vmul.f32 %v2136, %v2278
        %v2297 = vmul.f32 %v2137, %v2279
        %v2298 = vmul.f32 %v2138, %v2279
        %v2299 = vmul.f32 %v2139, %v2280
        %v2300 = vmul.f32 %v2140, %v2280
        %v2301 = vmul.f32 %v2141, %v2281
        %v2302 = vmul.f32 %v2142, %v2281
        %v2303 = vmul.f32 %v2143, %v2282
        %v2304 = vmul.f32 %v2144, %v2282
        %v2305 = vmul.f32 %v2145, %v2283
        %v2306 = vmul.f32 %v2146, %v2283
        %v2307 = vmul.f32 %v2147, %v2284
        %v2308 = vmul.f32 %v2148, %v2284
        %v2309 = vmul.f32 %v2149, %v2285
        %v2310 = vmul.f32 %v2150, %v2285
        %v2311 = vmul.f32 %v2151, %v2286
        %v2312 = vmul.f32 %v2152, %v2286
        %v2313 = vmul.f32 %v2153, %v2287
        %v2314 = vmul.f32 %v2154, %v2287
        %v2315 = vmul.f32 %v2155, %v2288
        %v2316 = vmul.f32 %v2156, %v2288
        %v2317 = vmul.f32 %v2157, %v2289
        %v2318 = vmul.f32 %v2158, %v2289
        %v2319 = vmul.f32 %v2159, %v2290
        %v2320 = vmul.f32 %v2160, %v2290
        %v2321 = vmul.f32 %v2161, %v2291
        %v2322 = vmul.f32 %v2162, %v2291
        %v2323 = vmul.f32 %v2163, %v2292
        %v2324 = vmul.f32 %v2164, %v2292
        %v2326 = vlaneseq
        %v2327 = vshrl.u32 %v2326, 7
        %v2328 = vsub.s32 0, %v2327
        %v2329 = vrot.slane %v2066, %v2328
        %v2330 = vlaneseq
        %v2331 = vshrl.u32 %v2330, 7
        %v2332 = vsub.s32 1, %v2331
        %v2333 = vrot.slane %v2066, %v2332
        %v2336 = vmul.f32 %v2293, %v2329
        %v2337 = vmul.f32 %v2294, %v2333
        %v2338 = vmul.f32 %v2295, %v2329
        %v2339 = vmul.f32 %v2296, %v2333
        %v2340 = vmul.f32 %v2297, %v2329
        %v2341 = vmul.f32 %v2298, %v2333
        %v2342 = vmul.f32 %v2299, %v2329
        %v2343 = vmul.f32 %v2300, %v2333
        %v2344 = vmul.f32 %v2301, %v2329
        %v2345 = vmul.f32 %v2302, %v2333
        %v2346 = vmul.f32 %v2303, %v2329
        %v2347 = vmul.f32 %v2304, %v2333
        %v2348 = vmul.f32 %v2305, %v2329
        %v2349 = vmul.f32 %v2306, %v2333
        %v2350 = vmul.f32 %v2307, %v2329
        %v2351 = vmul.f32 %v2308, %v2333
        %v2352 = vmul.f32 %v2309, %v2329
        %v2353 = vmul.f32 %v2310, %v2333
        %v2354 = vmul.f32 %v2311, %v2329
        %v2355 = vmul.f32 %v2312, %v2333
        %v2356 = vmul.f32 %v2313, %v2329
        %v2357 = vmul.f32 %v2314, %v2333
        %v2358 = vmul.f32 %v2315, %v2329
        %v2359 = vmul.f32 %v2316, %v2333
        %v2360 = vmul.f32 %v2317, %v2329
        %v2361 = vmul.f32 %v2318, %v2333
        %v2362 = vmul.f32 %v2319, %v2329
        %v2363 = vmul.f32 %v2320, %v2333
        %v2364 = vmul.f32 %v2321, %v2329
        %v2365 = vmul.f32 %v2322, %v2333
        %v2366 = vmul.f32 %v2323, %v2329
        %v2367 = vmul.f32 %v2324, %v2333
        %v2369 = vlaneseq
        %v2370 = vshrl.u32 %v2369, 7
        %v2371 = vsub.s32 0, %v2370
        %v2372 = vrot.slane %v2067, %v2371
        %v2373 = vlaneseq
        %v2374 = vshrl.u32 %v2373, 7
        %v2375 = vsub.s32 1, %v2374
        %v2376 = vrot.slane %v2067, %v2375
        %v2379 = vadd.f32 %v2336, %v2372
        %v2380 = vadd.f32 %v2337, %v2376
        %v2381 = vadd.f32 %v2338, %v2372
        %v2382 = vadd.f32 %v2339, %v2376
        %v2383 = vadd.f32 %v2340, %v2372
        %v2384 = vadd.f32 %v2341, %v2376
        %v2385 = vadd.f32 %v2342, %v2372
        %v2386 = vadd.f32 %v2343, %v2376
        %v2387 = vadd.f32 %v2344, %v2372
        %v2388 = vadd.f32 %v2345, %v2376
        %v2389 = vadd.f32 %v2346, %v2372
        %v2390 = vadd.f32 %v2347, %v2376
        %v2391 = vadd.f32 %v2348, %v2372
        %v2392 = vadd.f32 %v2349, %v2376
        %v2393 = vadd.f32 %v2350, %v2372
        %v2394 = vadd.f32 %v2351, %v2376
        %v2395 = vadd.f32 %v2352, %v2372
        %v2396 = vadd.f32 %v2353, %v2376
        %v2397 = vadd.f32 %v2354, %v2372
        %v2398 = vadd.f32 %v2355, %v2376
        %v2399 = vadd.f32 %v2356, %v2372
        %v2400 = vadd.f32 %v2357, %v2376
        %v2401 = vadd.f32 %v2358, %v2372
        %v2402 = vadd.f32 %v2359, %v2376
        %v2403 = vadd.f32 %v2360, %v2372
        %v2404 = vadd.f32 %v2361, %v2376
        %v2405 = vadd.f32 %v2362, %v2372
        %v2406 = vadd.f32 %v2363, %v2376
        %v2407 = vadd.f32 %v2364, %v2372
        %v2408 = vadd.f32 %v2365, %v2376
        %v2409 = vadd.f32 %v2366, %v2372
        %v2410 = vadd.f32 %v2367, %v2376
        %v2411 = vpack.c.bf16 %v2381, %v2379
        %v2412 = vpack.c.bf16 %v2382, %v2380
        %v2413 = vpack.c.bf16 %v2385, %v2383
        %v2414 = vpack.c.bf16 %v2386, %v2384
        %v2415 = vpack.c.bf16 %v2389, %v2387
        %v2416 = vpack.c.bf16 %v2390, %v2388
        %v2417 = vpack.c.bf16 %v2393, %v2391
        %v2418 = vpack.c.bf16 %v2394, %v2392
        %v2419 = vpack.c.bf16 %v2397, %v2395
        %v2420 = vpack.c.bf16 %v2398, %v2396
        %v2421 = vpack.c.bf16 %v2401, %v2399
        %v2422 = vpack.c.bf16 %v2402, %v2400
        %v2423 = vpack.c.bf16 %v2405, %v2403
        %v2424 = vpack.c.bf16 %v2406, %v2404
        %v2425 = vpack.c.bf16 %v2409, %v2407
        %v2426 = vpack.c.bf16 %v2410, %v2408
        %v2443 = vunpack.c.l.b16 %v2411
        %v2444 = vunpack.c.l.b16 %v2412
        %v2445 = vunpack.c.h.b16 %v2411
        %v2446 = vunpack.c.h.b16 %v2412
        %v2447 = vunpack.c.l.b16 %v2413
        %v2448 = vunpack.c.l.b16 %v2414
        %v2449 = vunpack.c.h.b16 %v2413
        %v2450 = vunpack.c.h.b16 %v2414
        %v2451 = vunpack.c.l.b16 %v2415
        %v2452 = vunpack.c.l.b16 %v2416
        %v2453 = vunpack.c.h.b16 %v2415
        %v2454 = vunpack.c.h.b16 %v2416
        %v2455 = vunpack.c.l.b16 %v2417
        %v2456 = vunpack.c.l.b16 %v2418
        %v2457 = vunpack.c.h.b16 %v2417
        %v2458 = vunpack.c.h.b16 %v2418
        %v2459 = vunpack.c.l.b16 %v2419
        %v2460 = vunpack.c.l.b16 %v2420
        %v2461 = vunpack.c.h.b16 %v2419
        %v2462 = vunpack.c.h.b16 %v2420
        %v2463 = vunpack.c.l.b16 %v2421
        %v2464 = vunpack.c.l.b16 %v2422
        %v2465 = vunpack.c.h.b16 %v2421
        %v2466 = vunpack.c.h.b16 %v2422
        %v2467 = vunpack.c.l.b16 %v2423
        %v2468 = vunpack.c.l.b16 %v2424
        %v2469 = vunpack.c.h.b16 %v2423
        %v2470 = vunpack.c.h.b16 %v2424
        %v2471 = vunpack.c.l.b16 %v2425
        %v2472 = vunpack.c.l.b16 %v2426
        %v2473 = vunpack.c.h.b16 %v2425
        %v2474 = vunpack.c.h.b16 %v2426
        %v2475 = vpack.c.b16 %v2444, %v2443
        %v2476 = vpack.c.b16 %v2446, %v2445
        %v2477 = vpack.c.b16 %v2448, %v2447
        %v2478 = vpack.c.b16 %v2450, %v2449
        %v2479 = vpack.c.b16 %v2452, %v2451
        %v2480 = vpack.c.b16 %v2454, %v2453
        %v2481 = vpack.c.b16 %v2456, %v2455
        %v2482 = vpack.c.b16 %v2458, %v2457
        %v2483 = vpack.c.b16 %v2460, %v2459
        %v2484 = vpack.c.b16 %v2462, %v2461
        %v2485 = vpack.c.b16 %v2464, %v2463
        %v2486 = vpack.c.b16 %v2466, %v2465
        %v2487 = vpack.c.b16 %v2468, %v2467
        %v2488 = vpack.c.b16 %v2470, %v2469
        %v2489 = vpack.c.b16 %v2472, %v2471
        %v2490 = vpack.c.b16 %v2474, %v2473
        %2507 = vst [vmem:[%s482] sm:$0xff] %v2475
        %2508 = vst [vmem:[%s482 + $0x8] sm:$0xff] %v2476
        %2509 = vst [vmem:[%s482 + $0x10] sm:$0xff] %v2477
        %2510 = vst [vmem:[%s482 + $0x18] sm:$0xff] %v2478
        %2511 = vst [vmem:[%s482 + $0x20] sm:$0xff] %v2479
        %2512 = vst [vmem:[%s482 + $0x28] sm:$0xff] %v2480
        %2513 = vst [vmem:[%s482 + $0x30] sm:$0xff] %v2481
        %2514 = vst [vmem:[%s482 + $0x38] sm:$0xff] %v2482
        %2515 = vst [vmem:[%s482 + $0x40] sm:$0xff] %v2483
        %2516 = vst [vmem:[%s482 + $0x48] sm:$0xff] %v2484
        %2517 = vst [vmem:[%s482 + $0x50] sm:$0xff] %v2485
        %2518 = vst [vmem:[%s482 + $0x58] sm:$0xff] %v2486
        %2519 = vst [vmem:[%s482 + $0x60] sm:$0xff] %v2487
        %2520 = vst [vmem:[%s482 + $0x68] sm:$0xff] %v2488
        %2521 = vst [vmem:[%s482 + $0x70] sm:$0xff] %v2489
        %2522 = vst [vmem:[%s482 + $0x78] sm:$0xff] %v2490
        %v2523 = vlaneseq
        %v2524 = vshrl.u32 %v2523, 7
        %v2525 = vadd.s32 %v2524, 8
        %v2526 = vadd.s32 %v2524, 16
        %v2527 = vadd.s32 %v2524, 24
        %v2528 = vadd.s32 %v2524, 32
        %v2529 = vadd.s32 %v2524, 40
        %v2530 = vadd.s32 %v2524, 48
        %v2531 = vadd.s32 %v2524, 56
        %v2532 = vadd.s32 %v2524, 64
        %v2533 = vadd.s32 %v2524, 72
        %v2534 = vadd.s32 %v2524, 80
        %v2535 = vadd.s32 %v2524, 88
        %v2536 = vadd.s32 %v2524, 96
        %v2537 = vadd.s32 %v2524, 104
        %v2538 = vadd.s32 %v2524, 112
        %v2539 = vadd.s32 %v2524, 120
        %v2540 = vlaneseq
        %v2541 = vand.u32 %v2540, 127
        %vm2542 = vcmp.le.s32.totalorder %v2541, %v2524
        %vm2543 = vcmp.le.s32.totalorder %v2541, %v2525
        %vm2544 = vcmp.le.s32.totalorder %v2541, %v2526
        %vm2545 = vcmp.le.s32.totalorder %v2541, %v2527
        %vm2546 = vcmp.le.s32.totalorder %v2541, %v2528
        %vm2547 = vcmp.le.s32.totalorder %v2541, %v2529
        %vm2548 = vcmp.le.s32.totalorder %v2541, %v2530
        %vm2549 = vcmp.le.s32.totalorder %v2541, %v2531
        %vm2550 = vcmp.le.s32.totalorder %v2541, %v2532
        %vm2551 = vcmp.le.s32.totalorder %v2541, %v2533
        %vm2552 = vcmp.le.s32.totalorder %v2541, %v2534
        %vm2553 = vcmp.le.s32.totalorder %v2541, %v2535
        %vm2554 = vcmp.le.s32.totalorder %v2541, %v2536
        %vm2555 = vcmp.le.s32.totalorder %v2541, %v2537
        %vm2556 = vcmp.le.s32.totalorder %v2541, %v2538
        %vm2557 = vcmp.le.s32.totalorder %v2541, %v2539
        %v2558 = vsel %vm2542, 0.0, -1e+30
        %v2559 = vsel %vm2543, 0.0, -1e+30
        %v2560 = vsel %vm2544, 0.0, -1e+30
        %v2561 = vsel %vm2545, 0.0, -1e+30
        %v2562 = vsel %vm2546, 0.0, -1e+30
        %v2563 = vsel %vm2547, 0.0, -1e+30
        %v2564 = vsel %vm2548, 0.0, -1e+30
        %v2565 = vsel %vm2549, 0.0, -1e+30
        %v2566 = vsel %vm2550, 0.0, -1e+30
        %v2567 = vsel %vm2551, 0.0, -1e+30
        %v2568 = vsel %vm2552, 0.0, -1e+30
        %v2569 = vsel %vm2553, 0.0, -1e+30
        %v2570 = vsel %vm2554, 0.0, -1e+30
        %v2571 = vsel %vm2555, 0.0, -1e+30
        %v2572 = vsel %vm2556, 0.0, -1e+30
        %v2573 = vsel %vm2557, 0.0, -1e+30
        loop: start=0, step=1, limit=6
        $region89: #{tpu_custom_call.1} parent=55 // loop_pre_header
          _
        $region90: #{tpu_custom_call.1} parent=55 // loop_header
          %s2575 = sphi 0, %s2579
          %p2576 = scmp.ge.s32.totalorder %s2575, 6
          %v2580 = vphi 0.0, %v3839
          %v2581 = vphi 0.0, %v3840
          %v2582 = vphi 0.0, %v3841
          %v2583 = vphi 0.0, %v3842
          %v2584 = vphi 0.0, %v3843
          %v2585 = vphi 0.0, %v3844
          %v2586 = vphi 0.0, %v3845
          %v2587 = vphi 0.0, %v3846
          %v2588 = vphi 0.0, %v3847
          %v2589 = vphi 0.0, %v3848
          %v2590 = vphi 0.0, %v3849
          %v2591 = vphi 0.0, %v3850
          %v2592 = vphi 0.0, %v3851
          %v2593 = vphi 0.0, %v3852
          %v2594 = vphi 0.0, %v3853
          %v2595 = vphi 0.0, %v3854
          %v2596 = vphi 0.0, %v3855
          %v2597 = vphi 0.0, %v3856
          %v2598 = vphi 0.0, %v3857
          %v2599 = vphi 0.0, %v3858
          %v2600 = vphi 0.0, %v3859
          %v2601 = vphi 0.0, %v3860
          %v2602 = vphi 0.0, %v3861
          %v2603 = vphi 0.0, %v3862
          %v2604 = vphi 0.0, %v3863
          %v2605 = vphi 0.0, %v3864
          %v2606 = vphi 0.0, %v3865
          %v2607 = vphi 0.0, %v3866
          %v2608 = vphi 0.0, %v3867
          %v2609 = vphi 0.0, %v3868
          %v2610 = vphi 0.0, %v3869
          %v2611 = vphi 0.0, %v3870
          %v2612 = vphi 0.0, %v3871
          %v2613 = vphi 0.0, %v3872
          %v2614 = vphi 0.0, %v3873
          %v2615 = vphi 0.0, %v3874
          %v2616 = vphi 0.0, %v3875
          %v2617 = vphi 0.0, %v3876
          %v2618 = vphi 0.0, %v3877
          %v2619 = vphi 0.0, %v3878
          %v2620 = vphi 0.0, %v3879
          %v2621 = vphi 0.0, %v3880
          %v2622 = vphi 0.0, %v3881
          %v2623 = vphi 0.0, %v3882
          %v2624 = vphi 0.0, %v3883
          %v2625 = vphi 0.0, %v3884
          %v2626 = vphi 0.0, %v3885
          %v2627 = vphi 0.0, %v3886
        $region91: #{tpu_custom_call.1} parent=55 // loop_header_branch
          %2578 = sbr.rel (%p2576) target = $region95
        $region92: #{tpu_custom_call.1} parent=55 // loop_body
          %s2628 = smul.u32 %s2575, 48
          %s2629 = smul.addr %s2628, 4
          %s2630 = scalar_lea.vmem [#allocation13], %s2629
          %v2631 = vld [vmem:[%s2630] sm:$0xff]
          %v2632 = vld [vmem:[%s2630 + $0x8] sm:$0xff]
          %v2633 = vld [vmem:[%s2630 + $0x10] sm:$0xff]
          %v2634 = vld [vmem:[%s2630 + $0x18] sm:$0xff]
          %v2635 = vld [vmem:[%s2630 + $0x20] sm:$0xff]
          %v2636 = vld [vmem:[%s2630 + $0x28] sm:$0xff]
          %v2637 = vld [vmem:[%s2630 + $0x30] sm:$0xff]
          %v2638 = vld [vmem:[%s2630 + $0x38] sm:$0xff]
          %v2639 = vld [vmem:[%s2630 + $0x40] sm:$0xff]
          %v2640 = vld [vmem:[%s2630 + $0x48] sm:$0xff]
          %v2641 = vld [vmem:[%s2630 + $0x50] sm:$0xff]
          %v2642 = vld [vmem:[%s2630 + $0x58] sm:$0xff]
          %v2643 = vld [vmem:[%s2630 + $0x60] sm:$0xff]
          %v2644 = vld [vmem:[%s2630 + $0x68] sm:$0xff]
          %v2645 = vld [vmem:[%s2630 + $0x70] sm:$0xff]
          %v2646 = vld [vmem:[%s2630 + $0x78] sm:$0xff]
          %v2647 = vld [vmem:[%s2630 + $0x80] sm:$0xff]
          %v2648 = vld [vmem:[%s2630 + $0x88] sm:$0xff]
          %v2649 = vld [vmem:[%s2630 + $0x90] sm:$0xff]
          %v2650 = vld [vmem:[%s2630 + $0x98] sm:$0xff]
          %v2651 = vld [vmem:[%s2630 + $0xa0] sm:$0xff]
          %v2652 = vld [vmem:[%s2630 + $0xa8] sm:$0xff]
          %v2653 = vld [vmem:[%s2630 + $0xb0] sm:$0xff]
          %v2654 = vld [vmem:[%s2630 + $0xb8] sm:$0xff]
          %s2655 = smul.u32 %s2575, 96
          %s2656 = smul.addr %s2655, 4
          %s2657 = scalar_lea.vmem [#allocation14], %s2656
          %v2658 = vld [vmem:[%s2657] sm:$0xff]
          %v2659 = vld [vmem:[%s2657 + $0x8] sm:$0xf]
          %v2660 = vld [vmem:[%s2657 + $0xc] sm:$0xff]
          %v2661 = vld [vmem:[%s2657 + $0x14] sm:$0xf]
          %v2662 = vld [vmem:[%s2657 + $0x18] sm:$0xff]
          %v2663 = vld [vmem:[%s2657 + $0x20] sm:$0xf]
          %v2664 = vld [vmem:[%s2657 + $0x24] sm:$0xff]
          %v2665 = vld [vmem:[%s2657 + $0x2c] sm:$0xf]
          %v2666 = vld [vmem:[%s2657 + $0x30] sm:$0xff]
          %v2667 = vld [vmem:[%s2657 + $0x38] sm:$0xf]
          %v2668 = vld [vmem:[%s2657 + $0x3c] sm:$0xff]
          %v2669 = vld [vmem:[%s2657 + $0x44] sm:$0xf]
          %v2670 = vld [vmem:[%s2657 + $0x48] sm:$0xff]
          %v2671 = vld [vmem:[%s2657 + $0x50] sm:$0xf]
          %v2672 = vld [vmem:[%s2657 + $0x54] sm:$0xff]
          %v2673 = vld [vmem:[%s2657 + $0x5c] sm:$0xf]
          %v2674 = vld [vmem:[%s2657 + $0x60] sm:$0xff]
          %v2675 = vld [vmem:[%s2657 + $0x68] sm:$0xf]
          %v2676 = vld [vmem:[%s2657 + $0x6c] sm:$0xff]
          %v2677 = vld [vmem:[%s2657 + $0x74] sm:$0xf]
          %v2678 = vld [vmem:[%s2657 + $0x78] sm:$0xff]
          %v2679 = vld [vmem:[%s2657 + $0x80] sm:$0xf]
          %v2680 = vld [vmem:[%s2657 + $0x84] sm:$0xff]
          %v2681 = vld [vmem:[%s2657 + $0x8c] sm:$0xf]
          %v2682 = vld [vmem:[%s2657 + $0x90] sm:$0xff]
          %v2683 = vld [vmem:[%s2657 + $0x98] sm:$0xf]
          %v2684 = vld [vmem:[%s2657 + $0x9c] sm:$0xff]
          %v2685 = vld [vmem:[%s2657 + $0xa4] sm:$0xf]
          %v2686 = vld [vmem:[%s2657 + $0xa8] sm:$0xff]
          %v2687 = vld [vmem:[%s2657 + $0xb0] sm:$0xf]
          %v2688 = vld [vmem:[%s2657 + $0xb4] sm:$0xff]
          %v2689 = vld [vmem:[%s2657 + $0xbc] sm:$0xf]
          %v2690 = vld [vmem:[%s2657 + $0xc0] sm:$0xff]
          %v2691 = vld [vmem:[%s2657 + $0xc8] sm:$0xf]
          %v2692 = vld [vmem:[%s2657 + $0xcc] sm:$0xff]
          %v2693 = vld [vmem:[%s2657 + $0xd4] sm:$0xf]
          %v2694 = vld [vmem:[%s2657 + $0xd8] sm:$0xff]
          %v2695 = vld [vmem:[%s2657 + $0xe0] sm:$0xf]
          %v2696 = vld [vmem:[%s2657 + $0xe4] sm:$0xff]
          %v2697 = vld [vmem:[%s2657 + $0xec] sm:$0xf]
          %v2698 = vld [vmem:[%s2657 + $0xf0] sm:$0xff]
          %v2699 = vld [vmem:[%s2657 + $0xf8] sm:$0xf]
          %v2700 = vld [vmem:[%s2657 + $0xfc] sm:$0xff]
          %v2701 = vld [vmem:[%s2657 + $0x104] sm:$0xf]
          %v2702 = vld [vmem:[%s2657 + $0x108] sm:$0xff]
          %v2703 = vld [vmem:[%s2657 + $0x110] sm:$0xf]
          %v2704 = vld [vmem:[%s2657 + $0x114] sm:$0xff]
          %v2705 = vld [vmem:[%s2657 + $0x11c] sm:$0xf]
          %v2706 = vld [vmem:[%s2657 + $0x120] sm:$0xff]
          %v2707 = vld [vmem:[%s2657 + $0x128] sm:$0xf]
          %v2708 = vld [vmem:[%s2657 + $0x12c] sm:$0xff]
          %v2709 = vld [vmem:[%s2657 + $0x134] sm:$0xf]
          %v2710 = vld [vmem:[%s2657 + $0x138] sm:$0xff]
          %v2711 = vld [vmem:[%s2657 + $0x140] sm:$0xf]
          %v2712 = vld [vmem:[%s2657 + $0x144] sm:$0xff]
          %v2713 = vld [vmem:[%s2657 + $0x14c] sm:$0xf]
          %v2714 = vld [vmem:[%s2657 + $0x150] sm:$0xff]
          %v2715 = vld [vmem:[%s2657 + $0x158] sm:$0xf]
          %v2716 = vld [vmem:[%s2657 + $0x15c] sm:$0xff]
          %v2717 = vld [vmem:[%s2657 + $0x164] sm:$0xf]
          %v2718 = vld [vmem:[%s2657 + $0x168] sm:$0xff]
          %v2719 = vld [vmem:[%s2657 + $0x170] sm:$0xf]
          %v2720 = vld [vmem:[%s2657 + $0x174] sm:$0xff]
          %v2721 = vld [vmem:[%s2657 + $0x17c] sm:$0xf]
          %v2746 = vunpack.c.l.b16 %v2631
          %v2747 = vunpack.c.h.b16 %v2631
          %v2748 = vunpack.c.l.b16 %v2632
          %v2749 = vunpack.c.h.b16 %v2632
          %v2750 = vunpack.c.l.b16 %v2633
          %v2751 = vunpack.c.h.b16 %v2633
          %v2752 = vunpack.c.l.b16 %v2634
          %v2753 = vunpack.c.h.b16 %v2634
          %v2754 = vunpack.c.l.b16 %v2635
          %v2755 = vunpack.c.h.b16 %v2635
          %v2756 = vunpack.c.l.b16 %v2636
          %v2757 = vunpack.c.h.b16 %v2636
          %v2758 = vunpack.c.l.b16 %v2637
          %v2759 = vunpack.c.h.b16 %v2637
          %v2760 = vunpack.c.l.b16 %v2638
          %v2761 = vunpack.c.h.b16 %v2638
          %v2762 = vunpack.c.l.b16 %v2639
          %v2763 = vunpack.c.h.b16 %v2639
          %v2764 = vunpack.c.l.b16 %v2640
          %v2765 = vunpack.c.h.b16 %v2640
          %v2766 = vunpack.c.l.b16 %v2641
          %v2767 = vunpack.c.h.b16 %v2641
          %v2768 = vunpack.c.l.b16 %v2642
          %v2769 = vunpack.c.h.b16 %v2642
          %v2770 = vunpack.c.l.b16 %v2643
          %v2771 = vunpack.c.h.b16 %v2643
          %v2772 = vunpack.c.l.b16 %v2644
          %v2773 = vunpack.c.h.b16 %v2644
          %v2774 = vunpack.c.l.b16 %v2645
          %v2775 = vunpack.c.h.b16 %v2645
          %v2776 = vunpack.c.l.b16 %v2646
          %v2777 = vunpack.c.h.b16 %v2646
          %v2778 = vunpack.c.l.b16 %v2647
          %v2779 = vunpack.c.h.b16 %v2647
          %v2780 = vunpack.c.l.b16 %v2648
          %v2781 = vunpack.c.h.b16 %v2648
          %v2782 = vunpack.c.l.b16 %v2649
          %v2783 = vunpack.c.h.b16 %v2649
          %v2784 = vunpack.c.l.b16 %v2650
          %v2785 = vunpack.c.h.b16 %v2650
          %v2786 = vunpack.c.l.b16 %v2651
          %v2787 = vunpack.c.h.b16 %v2651
          %v2788 = vunpack.c.l.b16 %v2652
          %v2789 = vunpack.c.h.b16 %v2652
          %v2790 = vunpack.c.l.b16 %v2653
          %v2791 = vunpack.c.h.b16 %v2653
          %v2792 = vunpack.c.l.b16 %v2654
          %v2793 = vunpack.c.h.b16 %v2654
          %v2794 = vpack.c.b16 %v2748, %v2746
          %v2795 = vpack.c.b16 %v2749, %v2747
          %v2796 = vpack.c.b16 %v2752, %v2750
          %v2797 = vpack.c.b16 %v2753, %v2751
          %v2798 = vpack.c.b16 %v2756, %v2754
          %v2799 = vpack.c.b16 %v2757, %v2755
          %v2800 = vpack.c.b16 %v2760, %v2758
          %v2801 = vpack.c.b16 %v2761, %v2759
          %v2802 = vpack.c.b16 %v2764, %v2762
          %v2803 = vpack.c.b16 %v2765, %v2763
          %v2804 = vpack.c.b16 %v2768, %v2766
          %v2805 = vpack.c.b16 %v2769, %v2767
          %v2806 = vpack.c.b16 %v2772, %v2770
          %v2807 = vpack.c.b16 %v2773, %v2771
          %v2808 = vpack.c.b16 %v2776, %v2774
          %v2809 = vpack.c.b16 %v2777, %v2775
          %v2810 = vpack.c.b16 %v2780, %v2778
          %v2811 = vpack.c.b16 %v2781, %v2779
          %v2812 = vpack.c.b16 %v2784, %v2782
          %v2813 = vpack.c.b16 %v2785, %v2783
          %v2814 = vpack.c.b16 %v2788, %v2786
          %v2815 = vpack.c.b16 %v2789, %v2787
          %v2816 = vpack.c.b16 %v2792, %v2790
          %v2817 = vpack.c.b16 %v2793, %v2791
          %v2843 = vsel %vm1160, %v1537, 0
          %v2846 = vsel %vm1160, %v1539, 0
          %v2849 = vsel %vm1160, %v1541, 0
          %v2852 = vsel %vm1160, %v1543, 0
          %v2855 = vsel %vm1160, %v1545, 0
          %v2858 = vsel %vm1160, %v1547, 0
          %v2861 = vsel %vm1160, %v1549, 0
          %v2864 = vsel %vm1160, %v1551, 0
          %2866 = vmatprep.subr.bf16.mxu0 %v2809
          %2867 = vmatpush1.bf16.msra.mxu0 %v2808
          %2868 = vmatprep.subr.bf16.mxu0 %v2807
          %2869 = vmatpush1.bf16.msra.mxu0 %v2806
          %2870 = vmatprep.subr.bf16.mxu0 %v2805
          %2871 = vmatpush1.bf16.msra.mxu0 %v2804
          %2872 = vmatprep.subr.bf16.mxu0 %v2803
          %2873 = vmatpush1.bf16.msra.mxu0 %v2802
          %2874 = vmatprep.subr.bf16.mxu0 %v2801
          %2875 = vmatpush1.bf16.msra.mxu0 %v2800
          %2876 = vmatprep.subr.bf16.mxu0 %v2799
          %2877 = vmatpush1.bf16.msra.mxu0 %v2798
          %2878 = vmatprep.subr.bf16.mxu0 %v2797
          %2879 = vmatpush1.bf16.msra.mxu0 %v2796
          %2880 = vmatprep.subr.bf16.mxu0 %v2795
          %2881 = vmatpush1.bf16.msra.mxu0 %v2794
          %2882 = vmatprep.subr.bf16.mxu0 0
          %2883 = vmatpush2.bf16.msra.mxu0 0
          %2884 = vmatprep.subr.bf16.mxu0 0
          %2885 = vmatpush2.bf16.msra.mxu0 0
          %2886 = vmatprep.subr.bf16.mxu0 0
          %2887 = vmatpush2.bf16.msra.mxu0 0
          %2888 = vmatprep.subr.bf16.mxu0 0
          %2889 = vmatpush2.bf16.msra.mxu0 0
          %2890 = vmatprep.subr.bf16.mxu0 %v2817
          %2891 = vmatpush2.bf16.msra.mxu0 %v2816
          %2892 = vmatprep.subr.bf16.mxu0 %v2815
          %2893 = vmatpush2.bf16.msra.mxu0 %v2814
          %2894 = vmatprep.subr.bf16.mxu0 %v2813
          %2895 = vmatpush2.bf16.msra.mxu0 %v2812
          %2896 = vmatprep.subr.bf16.mxu0 %v2811
          %2897 = vmatpush2.bf16.msra.mxu0 %v2810
          %2898 = vmatprep.mubr.bf16.mxu0 %v2843
          %2899 = vmatmul.mubr.bf16.gmra.mxu0 %v1536
          %v2900 = vpop.f32.mrf.mxu0
          %v2901 = vadd.f32 0.0, %v2900
          %v2902 = vpop.f32.mrf.mxu0
          %v2903 = vadd.f32 0.0, %v2902
          %v2904 = vpop.f32.mrf.mxu0
          %v2905 = vadd.f32 0.0, %v2904
          %v2906 = vpop.f32.mrf.mxu0
          %v2907 = vadd.f32 0.0, %v2906
          %2908 = vmatprep.mubr.bf16.mxu0 %v2846
          %2909 = vmatmul.mubr.bf16.gmra.mxu0 %v1538
          %v2910 = vpop.f32.mrf.mxu0
          %v2911 = vadd.f32 0.0, %v2910
          %v2912 = vpop.f32.mrf.mxu0
          %v2913 = vadd.f32 0.0, %v2912
          %v2914 = vpop.f32.mrf.mxu0
          %v2915 = vadd.f32 0.0, %v2914
          %v2916 = vpop.f32.mrf.mxu0
          %v2917 = vadd.f32 0.0, %v2916
          %2918 = vmatprep.mubr.bf16.mxu0 %v2849
          %2919 = vmatmul.mubr.bf16.gmra.mxu0 %v1540
          %v2920 = vpop.f32.mrf.mxu0
          %v2921 = vadd.f32 0.0, %v2920
          %v2922 = vpop.f32.mrf.mxu0
          %v2923 = vadd.f32 0.0, %v2922
          %v2924 = vpop.f32.mrf.mxu0
          %v2925 = vadd.f32 0.0, %v2924
          %v2926 = vpop.f32.mrf.mxu0
          %v2927 = vadd.f32 0.0, %v2926
          %2928 = vmatprep.mubr.bf16.mxu0 %v2852
          %2929 = vmatmul.mubr.bf16.gmra.mxu0 %v1542
          %v2930 = vpop.f32.mrf.mxu0
          %v2931 = vadd.f32 0.0, %v2930
          %v2932 = vpop.f32.mrf.mxu0
          %v2933 = vadd.f32 0.0, %v2932
          %v2934 = vpop.f32.mrf.mxu0
          %v2935 = vadd.f32 0.0, %v2934
          %v2936 = vpop.f32.mrf.mxu0
          %v2937 = vadd.f32 0.0, %v2936
          %2938 = vmatprep.mubr.bf16.mxu0 %v2855
          %2939 = vmatmul.mubr.bf16.gmra.mxu0 %v1544
          %v2940 = vpop.f32.mrf.mxu0
          %v2941 = vadd.f32 0.0, %v2940
          %v2942 = vpop.f32.mrf.mxu0
          %v2943 = vadd.f32 0.0, %v2942
          %v2944 = vpop.f32.mrf.mxu0
          %v2945 = vadd.f32 0.0, %v2944
          %v2946 = vpop.f32.mrf.mxu0
          %v2947 = vadd.f32 0.0, %v2946
          %2948 = vmatprep.mubr.bf16.mxu0 %v2858
          %2949 = vmatmul.mubr.bf16.gmra.mxu0 %v1546
          %v2950 = vpop.f32.mrf.mxu0
          %v2951 = vadd.f32 0.0, %v2950
          %v2952 = vpop.f32.mrf.mxu0
          %v2953 = vadd.f32 0.0, %v2952
          %v2954 = vpop.f32.mrf.mxu0
          %v2955 = vadd.f32 0.0, %v2954
          %v2956 = vpop.f32.mrf.mxu0
          %v2957 = vadd.f32 0.0, %v2956
          %2958 = vmatprep.mubr.bf16.mxu0 %v2861
          %2959 = vmatmul.mubr.bf16.gmra.mxu0 %v1548
          %v2960 = vpop.f32.mrf.mxu0
          %v2961 = vadd.f32 0.0, %v2960
          %v2962 = vpop.f32.mrf.mxu0
          %v2963 = vadd.f32 0.0, %v2962
          %v2964 = vpop.f32.mrf.mxu0
          %v2965 = vadd.f32 0.0, %v2964
          %v2966 = vpop.f32.mrf.mxu0
          %v2967 = vadd.f32 0.0, %v2966
          %2968 = vmatprep.mubr.bf16.mxu0 %v2864
          %2969 = vmatmul.mubr.bf16.gmra.mxu0 %v1550
          %v2970 = vpop.f32.mrf.mxu0
          %v2971 = vadd.f32 0.0, %v2970
          %v2972 = vpop.f32.mrf.mxu0
          %v2973 = vadd.f32 0.0, %v2972
          %v2974 = vpop.f32.mrf.mxu0
          %v2975 = vadd.f32 0.0, %v2974
          %v2976 = vpop.f32.mrf.mxu0
          %v2977 = vadd.f32 0.0, %v2976
          %2978 = vdwg.mxu0
          %v2979 = vpack.c.bf16 %v2905, %v2901
          %v2980 = vpack.c.bf16 %v2907, %v2903
          %v2981 = vpack.c.bf16 %v2915, %v2911
          %v2982 = vpack.c.bf16 %v2917, %v2913
          %v2983 = vpack.c.bf16 %v2925, %v2921
          %v2984 = vpack.c.bf16 %v2927, %v2923
          %v2985 = vpack.c.bf16 %v2935, %v2931
          %v2986 = vpack.c.bf16 %v2937, %v2933
          %v2987 = vpack.c.bf16 %v2945, %v2941
          %v2988 = vpack.c.bf16 %v2947, %v2943
          %v2989 = vpack.c.bf16 %v2955, %v2951
          %v2990 = vpack.c.bf16 %v2957, %v2953
          %v2991 = vpack.c.bf16 %v2965, %v2961
          %v2992 = vpack.c.bf16 %v2967, %v2963
          %v2993 = vpack.c.bf16 %v2975, %v2971
          %v2994 = vpack.c.bf16 %v2977, %v2973
          %2995 = vmatprep.subr.bf16.mxu0 %v2426
          %2996 = vmatpush1.bf16.xpose.msra.mxu0 %v2425
          %2997 = vmatprep.subr.bf16.mxu0 %v2424
          %2998 = vmatpush1.bf16.xpose.msra.mxu0 %v2423
          %2999 = vmatprep.subr.bf16.mxu0 %v2422
          %3000 = vmatpush1.bf16.xpose.msra.mxu0 %v2421
          %3001 = vmatprep.subr.bf16.mxu0 %v2420
          %3002 = vmatpush1.bf16.xpose.msra.mxu0 %v2419
          %3003 = vmatprep.subr.bf16.mxu0 %v2418
          %3004 = vmatpush1.bf16.xpose.msra.mxu0 %v2417
          %3005 = vmatprep.subr.bf16.mxu0 %v2416
          %3006 = vmatpush1.bf16.xpose.msra.mxu0 %v2415
          %3007 = vmatprep.subr.bf16.mxu0 %v2414
          %3008 = vmatpush1.bf16.xpose.msra.mxu0 %v2413
          %3009 = vmatprep.subr.bf16.mxu0 %v2412
          %3010 = vmatpush1.bf16.xpose.msra.mxu0 %v2411
          %3011 = vmatprep.subr.bf16.mxu0 0
          %3012 = vmatpush2.bf16.xpose.msra.mxu0 0
          %3013 = vmatprep.subr.bf16.mxu0 0
          %3014 = vmatpush2.bf16.xpose.msra.mxu0 0
          %3015 = vmatprep.subr.bf16.mxu0 0
          %3016 = vmatpush2.bf16.xpose.msra.mxu0 0
          %3017 = vmatprep.subr.bf16.mxu0 0
          %3018 = vmatpush2.bf16.xpose.msra.mxu0 0
          %3019 = vmatprep.subr.bf16.mxu0 0
          %3020 = vmatpush2.bf16.xpose.msra.mxu0 0
          %3021 = vmatprep.subr.bf16.mxu0 0
          %3022 = vmatpush2.bf16.xpose.msra.mxu0 0
          %3023 = vmatprep.subr.bf16.mxu0 0
          %3024 = vmatpush2.bf16.xpose.msra.mxu0 0
          %3025 = vmatprep.subr.bf16.mxu0 0
          %3026 = vmatpush2.bf16.xpose.msra.mxu0 0
          %3027 = vmatprep.mubr.bf16.mxu0 %v2980
          %3028 = vmatmul.mubr.bf16.gmra.mxu0 %v2979
          %v3029 = vpop.f32.mrf.mxu0
          %v3030 = vadd.f32 %v2558, %v3029
          %v3031 = vpop.f32.mrf.mxu0
          %v3032 = vpop.f32.mrf.mxu0
          %v3033 = vadd.f32 %v2559, %v3032
          %v3034 = vpop.f32.mrf.mxu0
          %3035 = vmatprep.mubr.bf16.mxu0 %v2982
          %3036 = vmatmul.mubr.bf16.gmra.mxu0 %v2981
          %v3037 = vpop.f32.mrf.mxu0
          %v3038 = vadd.f32 %v2560, %v3037
          %v3039 = vpop.f32.mrf.mxu0
          %v3040 = vpop.f32.mrf.mxu0
          %v3041 = vadd.f32 %v2561, %v3040
          %v3042 = vpop.f32.mrf.mxu0
          %3043 = vmatprep.mubr.bf16.mxu0 %v2984
          %3044 = vmatmul.mubr.bf16.gmra.mxu0 %v2983
          %v3045 = vpop.f32.mrf.mxu0
          %v3046 = vadd.f32 %v2562, %v3045
          %v3047 = vpop.f32.mrf.mxu0
          %v3048 = vpop.f32.mrf.mxu0
          %v3049 = vadd.f32 %v2563, %v3048
          %v3050 = vpop.f32.mrf.mxu0
          %3051 = vmatprep.mubr.bf16.mxu0 %v2986
          %3052 = vmatmul.mubr.bf16.gmra.mxu0 %v2985
          %v3053 = vpop.f32.mrf.mxu0
          %v3054 = vadd.f32 %v2564, %v3053
          %v3055 = vpop.f32.mrf.mxu0
          %v3056 = vpop.f32.mrf.mxu0
          %v3057 = vadd.f32 %v2565, %v3056
          %v3058 = vpop.f32.mrf.mxu0
          %3059 = vmatprep.mubr.bf16.mxu0 %v2988
          %3060 = vmatmul.mubr.bf16.gmra.mxu0 %v2987
          %v3061 = vpop.f32.mrf.mxu0
          %v3062 = vadd.f32 %v2566, %v3061
          %v3063 = vpop.f32.mrf.mxu0
          %v3064 = vpop.f32.mrf.mxu0
          %v3065 = vadd.f32 %v2567, %v3064
          %v3066 = vpop.f32.mrf.mxu0
          %3067 = vmatprep.mubr.bf16.mxu0 %v2990
          %3068 = vmatmul.mubr.bf16.gmra.mxu0 %v2989
          %v3069 = vpop.f32.mrf.mxu0
          %v3070 = vadd.f32 %v2568, %v3069
          %v3071 = vpop.f32.mrf.mxu0
          %v3072 = vpop.f32.mrf.mxu0
          %v3073 = vadd.f32 %v2569, %v3072
          %v3074 = vpop.f32.mrf.mxu0
          %3075 = vmatprep.mubr.bf16.mxu0 %v2992
          %3076 = vmatmul.mubr.bf16.gmra.mxu0 %v2991
          %v3077 = vpop.f32.mrf.mxu0
          %v3078 = vadd.f32 %v2570, %v3077
          %v3079 = vpop.f32.mrf.mxu0
          %v3080 = vpop.f32.mrf.mxu0
          %v3081 = vadd.f32 %v2571, %v3080
          %v3082 = vpop.f32.mrf.mxu0
          %3083 = vmatprep.mubr.bf16.mxu0 %v2994
          %3084 = vmatmul.mubr.bf16.gmra.mxu0 %v2993
          %v3085 = vpop.f32.mrf.mxu0
          %v3086 = vadd.f32 %v2572, %v3085
          %v3087 = vpop.f32.mrf.mxu0
          %v3088 = vpop.f32.mrf.mxu0
          %v3089 = vadd.f32 %v2573, %v3088
          %v3090 = vpop.f32.mrf.mxu0
          %3091 = vdwg.mxu0
          %3092 = vmax.xlane.f32.xlu0 %v3030
          %v3093 = vpop.xlane.xlu0 %3092
          %3094 = vmax.xlane.f32.xlu0 %v3033
          %v3095 = vpop.xlane.xlu0 %3094
          %3096 = vmax.xlane.f32.xlu0 %v3038
          %v3097 = vpop.xlane.xlu0 %3096
          %3098 = vmax.xlane.f32.xlu0 %v3041
          %v3099 = vpop.xlane.xlu0 %3098
          %3100 = vmax.xlane.f32.xlu0 %v3046
          %v3101 = vpop.xlane.xlu0 %3100
          %3102 = vmax.xlane.f32.xlu0 %v3049
          %v3103 = vpop.xlane.xlu0 %3102
          %3104 = vmax.xlane.f32.xlu0 %v3054
          %v3105 = vpop.xlane.xlu0 %3104
          %3106 = vmax.xlane.f32.xlu0 %v3057
          %v3107 = vpop.xlane.xlu0 %3106
          %3108 = vmax.xlane.f32.xlu0 %v3062
          %v3109 = vpop.xlane.xlu0 %3108
          %3110 = vmax.xlane.f32.xlu0 %v3065
          %v3111 = vpop.xlane.xlu0 %3110
          %3112 = vmax.xlane.f32.xlu0 %v3070
          %v3113 = vpop.xlane.xlu0 %3112
          %3114 = vmax.xlane.f32.xlu0 %v3073
          %v3115 = vpop.xlane.xlu0 %3114
          %3116 = vmax.xlane.f32.xlu0 %v3078
          %v3117 = vpop.xlane.xlu0 %3116
          %3118 = vmax.xlane.f32.xlu0 %v3081
          %v3119 = vpop.xlane.xlu0 %3118
          %3120 = vmax.xlane.f32.xlu0 %v3086
          %v3121 = vpop.xlane.xlu0 %3120
          %3122 = vmax.xlane.f32.xlu0 %v3089
          %v3123 = vpop.xlane.xlu0 %3122
          %v3124 = vsub.f32 %v3030, %v3093
          %v3125 = vsub.f32 %v3033, %v3095
          %v3126 = vsub.f32 %v3038, %v3097
          %v3127 = vsub.f32 %v3041, %v3099
          %v3128 = vsub.f32 %v3046, %v3101
          %v3129 = vsub.f32 %v3049, %v3103
          %v3130 = vsub.f32 %v3054, %v3105
          %v3131 = vsub.f32 %v3057, %v3107
          %v3132 = vsub.f32 %v3062, %v3109
          %v3133 = vsub.f32 %v3065, %v3111
          %v3134 = vsub.f32 %v3070, %v3113
          %v3135 = vsub.f32 %v3073, %v3115
          %v3136 = vsub.f32 %v3078, %v3117
          %v3137 = vsub.f32 %v3081, %v3119
          %v3138 = vsub.f32 %v3086, %v3121
          %v3139 = vsub.f32 %v3089, %v3123
          %v3140 = vmul.f32 %v3124, 1.442695
          %v3141 = vpow.pop %v3140
          %v3142 = vmul.f32 %v3125, 1.442695
          %v3143 = vpow.pop %v3142
          %v3144 = vmul.f32 %v3126, 1.442695
          %v3145 = vpow.pop %v3144
          %v3146 = vmul.f32 %v3127, 1.442695
          %v3147 = vpow.pop %v3146
          %v3148 = vmul.f32 %v3128, 1.442695
          %v3149 = vpow.pop %v3148
          %v3150 = vmul.f32 %v3129, 1.442695
          %v3151 = vpow.pop %v3150
          %v3152 = vmul.f32 %v3130, 1.442695
          %v3153 = vpow.pop %v3152
          %v3154 = vmul.f32 %v3131, 1.442695
          %v3155 = vpow.pop %v3154
          %v3156 = vmul.f32 %v3132, 1.442695
          %v3157 = vpow.pop %v3156
          %v3158 = vmul.f32 %v3133, 1.442695
          %v3159 = vpow.pop %v3158
          %v3160 = vmul.f32 %v3134, 1.442695
          %v3161 = vpow.pop %v3160
          %v3162 = vmul.f32 %v3135, 1.442695
          %v3163 = vpow.pop %v3162
          %v3164 = vmul.f32 %v3136, 1.442695
          %v3165 = vpow.pop %v3164
          %v3166 = vmul.f32 %v3137, 1.442695
          %v3167 = vpow.pop %v3166
          %v3168 = vmul.f32 %v3138, 1.442695
          %v3169 = vpow.pop %v3168
          %v3170 = vmul.f32 %v3139, 1.442695
          %v3171 = vpow.pop %v3170
          %3172 = vadd.xlane.f32.xlu0 %v3141
          %v3173 = vpop.xlane.xlu0 %3172
          %3174 = vadd.xlane.f32.xlu0 %v3143
          %v3175 = vpop.xlane.xlu0 %3174
          %3176 = vadd.xlane.f32.xlu0 %v3145
          %v3177 = vpop.xlane.xlu0 %3176
          %3178 = vadd.xlane.f32.xlu0 %v3147
          %v3179 = vpop.xlane.xlu0 %3178
          %3180 = vadd.xlane.f32.xlu0 %v3149
          %v3181 = vpop.xlane.xlu0 %3180
          %3182 = vadd.xlane.f32.xlu0 %v3151
          %v3183 = vpop.xlane.xlu0 %3182
          %3184 = vadd.xlane.f32.xlu0 %v3153
          %v3185 = vpop.xlane.xlu0 %3184
          %3186 = vadd.xlane.f32.xlu0 %v3155
          %v3187 = vpop.xlane.xlu0 %3186
          %3188 = vadd.xlane.f32.xlu0 %v3157
          %v3189 = vpop.xlane.xlu0 %3188
          %3190 = vadd.xlane.f32.xlu0 %v3159
          %v3191 = vpop.xlane.xlu0 %3190
          %3192 = vadd.xlane.f32.xlu0 %v3161
          %v3193 = vpop.xlane.xlu0 %3192
          %3194 = vadd.xlane.f32.xlu0 %v3163
          %v3195 = vpop.xlane.xlu0 %3194
          %3196 = vadd.xlane.f32.xlu0 %v3165
          %v3197 = vpop.xlane.xlu0 %3196
          %3198 = vadd.xlane.f32.xlu0 %v3167
          %v3199 = vpop.xlane.xlu0 %3198
          %3200 = vadd.xlane.f32.xlu0 %v3169
          %v3201 = vpop.xlane.xlu0 %3200
          %3202 = vadd.xlane.f32.xlu0 %v3171
          %v3203 = vpop.xlane.xlu0 %3202
          %v3204 = vrcp.pop %v3173
          %v3205 = vrcp.pop %v3175
          %v3206 = vrcp.pop %v3177
          %v3207 = vrcp.pop %v3179
          %v3208 = vrcp.pop %v3181
          %v3209 = vrcp.pop %v3183
          %v3210 = vrcp.pop %v3185
          %v3211 = vrcp.pop %v3187
          %v3212 = vrcp.pop %v3189
          %v3213 = vrcp.pop %v3191
          %v3214 = vrcp.pop %v3193
          %v3215 = vrcp.pop %v3195
          %v3216 = vrcp.pop %v3197
          %v3217 = vrcp.pop %v3199
          %v3218 = vrcp.pop %v3201
          %v3219 = vrcp.pop %v3203
          %v3220 = vmul.f32 %v3141, %v3204
          %v3221 = vmul.f32 %v3143, %v3205
          %v3222 = vmul.f32 %v3145, %v3206
          %v3223 = vmul.f32 %v3147, %v3207
          %v3224 = vmul.f32 %v3149, %v3208
          %v3225 = vmul.f32 %v3151, %v3209
          %v3226 = vmul.f32 %v3153, %v3210
          %v3227 = vmul.f32 %v3155, %v3211
          %v3228 = vmul.f32 %v3157, %v3212
          %v3229 = vmul.f32 %v3159, %v3213
          %v3230 = vmul.f32 %v3161, %v3214
          %v3231 = vmul.f32 %v3163, %v3215
          %v3232 = vmul.f32 %v3165, %v3216
          %v3233 = vmul.f32 %v3167, %v3217
          %v3234 = vmul.f32 %v3169, %v3218
          %v3235 = vmul.f32 %v3171, %v3219
          %v3236 = vpack.c.bf16 %v3221, %v3220
          %v3237 = vpack.c.bf16 %v3223, %v3222
          %v3238 = vpack.c.bf16 %v3225, %v3224
          %v3239 = vpack.c.bf16 %v3227, %v3226
          %v3240 = vpack.c.bf16 %v3229, %v3228
          %v3241 = vpack.c.bf16 %v3231, %v3230
          %v3242 = vpack.c.bf16 %v3233, %v3232
          %v3243 = vpack.c.bf16 %v3235, %v3234
          %3244 = vmatprep.subr.bf16.mxu0 %v2426
          %3245 = vmatpush1.bf16.msra.mxu0 %v2425
          %3246 = vmatprep.subr.bf16.mxu0 %v2424
          %3247 = vmatpush1.bf16.msra.mxu0 %v2423
          %3248 = vmatprep.subr.bf16.mxu0 %v2422
          %3249 = vmatpush1.bf16.msra.mxu0 %v2421
          %3250 = vmatprep.subr.bf16.mxu0 %v2420
          %3251 = vmatpush1.bf16.msra.mxu0 %v2419
          %3252 = vmatprep.subr.bf16.mxu0 %v2418
          %3253 = vmatpush1.bf16.msra.mxu0 %v2417
          %3254 = vmatprep.subr.bf16.mxu0 %v2416
          %3255 = vmatpush1.bf16.msra.mxu0 %v2415
          %3256 = vmatprep.subr.bf16.mxu0 %v2414
          %3257 = vmatpush1.bf16.msra.mxu0 %v2413
          %3258 = vmatprep.subr.bf16.mxu0 %v2412
          %3259 = vmatpush1.bf16.msra.mxu0 %v2411
          %3260 = vmatprep.subr.bf16.mxu0 0
          %3261 = vmatpush2.bf16.msra.mxu0 0
          %3262 = vmatprep.subr.bf16.mxu0 0
          %3263 = vmatpush2.bf16.msra.mxu0 0
          %3264 = vmatprep.subr.bf16.mxu0 0
          %3265 = vmatpush2.bf16.msra.mxu0 0
          %3266 = vmatprep.subr.bf16.mxu0 0
          %3267 = vmatpush2.bf16.msra.mxu0 0
          %3268 = vmatprep.subr.bf16.mxu0 0
          %3269 = vmatpush2.bf16.msra.mxu0 0
          %3270 = vmatprep.subr.bf16.mxu0 0
          %3271 = vmatpush2.bf16.msra.mxu0 0
          %3272 = vmatprep.subr.bf16.mxu0 0
          %3273 = vmatpush2.bf16.msra.mxu0 0
          %3274 = vmatprep.subr.bf16.mxu0 0
          %3275 = vmatpush2.bf16.msra.mxu0 0
          %3276 = vmatprep.mubr.bf16.mxu0 0
          %3277 = vmatmul.mubr.bf16.gmra.mxu0 %v3236
          %v3278 = vpop.f32.mrf.mxu0
          %v3279 = vadd.f32 0.0, %v3278
          %v3280 = vpop.f32.mrf.mxu0
          %v3281 = vadd.f32 0.0, %v3280
          %v3282 = vpop.f32.mrf.mxu0
          %v3283 = vadd.f32 0.0, %v3282
          %v3284 = vpop.f32.mrf.mxu0
          %v3285 = vadd.f32 0.0, %v3284
          %3286 = vmatprep.mubr.bf16.mxu0 0
          %3287 = vmatmul.mubr.bf16.gmra.mxu0 %v3237
          %v3288 = vpop.f32.mrf.mxu0
          %v3289 = vadd.f32 0.0, %v3288
          %v3290 = vpop.f32.mrf.mxu0
          %v3291 = vadd.f32 0.0, %v3290
          %v3292 = vpop.f32.mrf.mxu0
          %v3293 = vadd.f32 0.0, %v3292
          %v3294 = vpop.f32.mrf.mxu0
          %v3295 = vadd.f32 0.0, %v3294
          %3296 = vmatprep.mubr.bf16.mxu0 0
          %3297 = vmatmul.mubr.bf16.gmra.mxu0 %v3238
          %v3298 = vpop.f32.mrf.mxu0
          %v3299 = vadd.f32 0.0, %v3298
          %v3300 = vpop.f32.mrf.mxu0
          %v3301 = vadd.f32 0.0, %v3300
          %v3302 = vpop.f32.mrf.mxu0
          %v3303 = vadd.f32 0.0, %v3302
          %v3304 = vpop.f32.mrf.mxu0
          %v3305 = vadd.f32 0.0, %v3304
          %3306 = vmatprep.mubr.bf16.mxu0 0
          %3307 = vmatmul.mubr.bf16.gmra.mxu0 %v3239
          %v3308 = vpop.f32.mrf.mxu0
          %v3309 = vadd.f32 0.0, %v3308
          %v3310 = vpop.f32.mrf.mxu0
          %v3311 = vadd.f32 0.0, %v3310
          %v3312 = vpop.f32.mrf.mxu0
          %v3313 = vadd.f32 0.0, %v3312
          %v3314 = vpop.f32.mrf.mxu0
          %v3315 = vadd.f32 0.0, %v3314
          %3316 = vmatprep.mubr.bf16.mxu0 0
          %3317 = vmatmul.mubr.bf16.gmra.mxu0 %v3240
          %v3318 = vpop.f32.mrf.mxu0
          %v3319 = vadd.f32 0.0, %v3318
          %v3320 = vpop.f32.mrf.mxu0
          %v3321 = vadd.f32 0.0, %v3320
          %v3322 = vpop.f32.mrf.mxu0
          %v3323 = vadd.f32 0.0, %v3322
          %v3324 = vpop.f32.mrf.mxu0
          %v3325 = vadd.f32 0.0, %v3324
          %3326 = vmatprep.mubr.bf16.mxu0 0
          %3327 = vmatmul.mubr.bf16.gmra.mxu0 %v3241
          %v3328 = vpop.f32.mrf.mxu0
          %v3329 = vadd.f32 0.0, %v3328
          %v3330 = vpop.f32.mrf.mxu0
          %v3331 = vadd.f32 0.0, %v3330
          %v3332 = vpop.f32.mrf.mxu0
          %v3333 = vadd.f32 0.0, %v3332
          %v3334 = vpop.f32.mrf.mxu0
          %v3335 = vadd.f32 0.0, %v3334
          %3336 = vmatprep.mubr.bf16.mxu0 0
          %3337 = vmatmul.mubr.bf16.gmra.mxu0 %v3242
          %v3338 = vpop.f32.mrf.mxu0
          %v3339 = vadd.f32 0.0, %v3338
          %v3340 = vpop.f32.mrf.mxu0
          %v3341 = vadd.f32 0.0, %v3340
          %v3342 = vpop.f32.mrf.mxu0
          %v3343 = vadd.f32 0.0, %v3342
          %v3344 = vpop.f32.mrf.mxu0
          %v3345 = vadd.f32 0.0, %v3344
          %3346 = vmatprep.mubr.bf16.mxu0 0
          %3347 = vmatmul.mubr.bf16.gmra.mxu0 %v3243
          %v3348 = vpop.f32.mrf.mxu0
          %v3349 = vadd.f32 0.0, %v3348
          %v3350 = vpop.f32.mrf.mxu0
          %v3351 = vadd.f32 0.0, %v3350
          %v3352 = vpop.f32.mrf.mxu0
          %v3353 = vadd.f32 0.0, %v3352
          %v3354 = vpop.f32.mrf.mxu0
          %v3355 = vadd.f32 0.0, %v3354
          %3356 = vdwg.mxu0
          %v3357 = vpack.c.bf16 %v3283, %v3279
          %v3358 = vpack.c.bf16 %v3285, %v3281
          %v3359 = vpack.c.bf16 %v3293, %v3289
          %v3360 = vpack.c.bf16 %v3295, %v3291
          %v3361 = vpack.c.bf16 %v3303, %v3299
          %v3362 = vpack.c.bf16 %v3305, %v3301
          %v3363 = vpack.c.bf16 %v3313, %v3309
          %v3364 = vpack.c.bf16 %v3315, %v3311
          %v3365 = vpack.c.bf16 %v3323, %v3319
          %v3366 = vpack.c.bf16 %v3325, %v3321
          %v3367 = vpack.c.bf16 %v3333, %v3329
          %v3368 = vpack.c.bf16 %v3335, %v3331
          %v3369 = vpack.c.bf16 %v3343, %v3339
          %v3370 = vpack.c.bf16 %v3345, %v3341
          %v3371 = vpack.c.bf16 %v3353, %v3349
          %v3372 = vpack.c.bf16 %v3355, %v3351
          %v3437 = vunpack.c.l.b16 %v2658
          %v3438 = vunpack.c.h.b16 %v2658
          %v3439 = vunpack.c.l.b16 %v2659
          %v3440 = vunpack.c.l.b16 %v2660
          %v3441 = vunpack.c.h.b16 %v2660
          %v3442 = vunpack.c.l.b16 %v2661
          %v3443 = vunpack.c.l.b16 %v2662
          %v3444 = vunpack.c.h.b16 %v2662
          %v3445 = vunpack.c.l.b16 %v2663
          %v3446 = vunpack.c.l.b16 %v2664
          %v3447 = vunpack.c.h.b16 %v2664
          %v3448 = vunpack.c.l.b16 %v2665
          %v3449 = vunpack.c.l.b16 %v2666
          %v3450 = vunpack.c.h.b16 %v2666
          %v3451 = vunpack.c.l.b16 %v2667
          %v3452 = vunpack.c.l.b16 %v2668
          %v3453 = vunpack.c.h.b16 %v2668
          %v3454 = vunpack.c.l.b16 %v2669
          %v3455 = vunpack.c.l.b16 %v2670
          %v3456 = vunpack.c.h.b16 %v2670
          %v3457 = vunpack.c.l.b16 %v2671
          %v3458 = vunpack.c.l.b16 %v2672
          %v3459 = vunpack.c.h.b16 %v2672
          %v3460 = vunpack.c.l.b16 %v2673
          %v3461 = vunpack.c.l.b16 %v2674
          %v3462 = vunpack.c.h.b16 %v2674
          %v3463 = vunpack.c.l.b16 %v2675
          %v3464 = vunpack.c.l.b16 %v2676
          %v3465 = vunpack.c.h.b16 %v2676
          %v3466 = vunpack.c.l.b16 %v2677
          %v3467 = vunpack.c.l.b16 %v2678
          %v3468 = vunpack.c.h.b16 %v2678
          %v3469 = vunpack.c.l.b16 %v2679
          %v3470 = vunpack.c.l.b16 %v2680
          %v3471 = vunpack.c.h.b16 %v2680
          %v3472 = vunpack.c.l.b16 %v2681
          %v3473 = vunpack.c.l.b16 %v2682
          %v3474 = vunpack.c.h.b16 %v2682
          %v3475 = vunpack.c.l.b16 %v2683
          %v3476 = vunpack.c.l.b16 %v2684
          %v3477 = vunpack.c.h.b16 %v2684
          %v3478 = vunpack.c.l.b16 %v2685
          %v3479 = vunpack.c.l.b16 %v2686
          %v3480 = vunpack.c.h.b16 %v2686
          %v3481 = vunpack.c.l.b16 %v2687
          %v3482 = vunpack.c.l.b16 %v2688
          %v3483 = vunpack.c.h.b16 %v2688
          %v3484 = vunpack.c.l.b16 %v2689
          %v3485 = vunpack.c.l.b16 %v2690
          %v3486 = vunpack.c.h.b16 %v2690
          %v3487 = vunpack.c.l.b16 %v2691
          %v3488 = vunpack.c.l.b16 %v2692
          %v3489 = vunpack.c.h.b16 %v2692
          %v3490 = vunpack.c.l.b16 %v2693
          %v3491 = vunpack.c.l.b16 %v2694
          %v3492 = vunpack.c.h.b16 %v2694
          %v3493 = vunpack.c.l.b16 %v2695
          %v3494 = vunpack.c.l.b16 %v2696
          %v3495 = vunpack.c.h.b16 %v2696
          %v3496 = vunpack.c.l.b16 %v2697
          %v3497 = vunpack.c.l.b16 %v2698
          %v3498 = vunpack.c.h.b16 %v2698
          %v3499 = vunpack.c.l.b16 %v2699
          %v3500 = vunpack.c.l.b16 %v2700
          %v3501 = vunpack.c.h.b16 %v2700
          %v3502 = vunpack.c.l.b16 %v2701
          %v3503 = vunpack.c.l.b16 %v2702
          %v3504 = vunpack.c.h.b16 %v2702
          %v3505 = vunpack.c.l.b16 %v2703
          %v3506 = vunpack.c.l.b16 %v2704
          %v3507 = vunpack.c.h.b16 %v2704
          %v3508 = vunpack.c.l.b16 %v2705
          %v3509 = vunpack.c.l.b16 %v2706
          %v3510 = vunpack.c.h.b16 %v2706
          %v3511 = vunpack.c.l.b16 %v2707
          %v3512 = vunpack.c.l.b16 %v2708
          %v3513 = vunpack.c.h.b16 %v2708
          %v3514 = vunpack.c.l.b16 %v2709
          %v3515 = vunpack.c.l.b16 %v2710
          %v3516 = vunpack.c.h.b16 %v2710
          %v3517 = vunpack.c.l.b16 %v2711
          %v3518 = vunpack.c.l.b16 %v2712
          %v3519 = vunpack.c.h.b16 %v2712
          %v3520 = vunpack.c.l.b16 %v2713
          %v3521 = vunpack.c.l.b16 %v2714
          %v3522 = vunpack.c.h.b16 %v2714
          %v3523 = vunpack.c.l.b16 %v2715
          %v3524 = vunpack.c.l.b16 %v2716
          %v3525 = vunpack.c.h.b16 %v2716
          %v3526 = vunpack.c.l.b16 %v2717
          %v3527 = vunpack.c.l.b16 %v2718
          %v3528 = vunpack.c.h.b16 %v2718
          %v3529 = vunpack.c.l.b16 %v2719
          %v3530 = vunpack.c.l.b16 %v2720
          %v3531 = vunpack.c.h.b16 %v2720
          %v3532 = vunpack.c.l.b16 %v2721
          %v3533 = vpack.c.b16 %v3440, %v3437
          %v3534 = vpack.c.b16 %v3441, %v3438
          %v3535 = vpack.c.b16 %v3442, %v3439
          %v3536 = vpack.c.b16 %v3446, %v3443
          %v3537 = vpack.c.b16 %v3447, %v3444
          %v3538 = vpack.c.b16 %v3448, %v3445
          %v3539 = vpack.c.b16 %v3452, %v3449
          %v3540 = vpack.c.b16 %v3453, %v3450
          %v3541 = vpack.c.b16 %v3454, %v3451
          %v3542 = vpack.c.b16 %v3458, %v3455
          %v3543 = vpack.c.b16 %v3459, %v3456
          %v3544 = vpack.c.b16 %v3460, %v3457
          %v3545 = vpack.c.b16 %v3464, %v3461
          %v3546 = vpack.c.b16 %v3465, %v3462
          %v3547 = vpack.c.b16 %v3466, %v3463
          %v3548 = vpack.c.b16 %v3470, %v3467
          %v3549 = vpack.c.b16 %v3471, %v3468
          %v3550 = vpack.c.b16 %v3472, %v3469
          %v3551 = vpack.c.b16 %v3476, %v3473
          %v3552 = vpack.c.b16 %v3477, %v3474
          %v3553 = vpack.c.b16 %v3478, %v3475
          %v3554 = vpack.c.b16 %v3482, %v3479
          %v3555 = vpack.c.b16 %v3483, %v3480
          %v3556 = vpack.c.b16 %v3484, %v3481
          %v3557 = vpack.c.b16 %v3488, %v3485
          %v3558 = vpack.c.b16 %v3489, %v3486
          %v3559 = vpack.c.b16 %v3490, %v3487
          %v3560 = vpack.c.b16 %v3494, %v3491
          %v3561 = vpack.c.b16 %v3495, %v3492
          %v3562 = vpack.c.b16 %v3496, %v3493
          %v3563 = vpack.c.b16 %v3500, %v3497
          %v3564 = vpack.c.b16 %v3501, %v3498
          %v3565 = vpack.c.b16 %v3502, %v3499
          %v3566 = vpack.c.b16 %v3506, %v3503
          %v3567 = vpack.c.b16 %v3507, %v3504
          %v3568 = vpack.c.b16 %v3508, %v3505
          %v3569 = vpack.c.b16 %v3512, %v3509
          %v3570 = vpack.c.b16 %v3513, %v3510
          %v3571 = vpack.c.b16 %v3514, %v3511
          %v3572 = vpack.c.b16 %v3518, %v3515
          %v3573 = vpack.c.b16 %v3519, %v3516
          %v3574 = vpack.c.b16 %v3520, %v3517
          %v3575 = vpack.c.b16 %v3524, %v3521
          %v3576 = vpack.c.b16 %v3525, %v3522
          %v3577 = vpack.c.b16 %v3526, %v3523
          %v3578 = vpack.c.b16 %v3530, %v3527
          %v3579 = vpack.c.b16 %v3531, %v3528
          %v3580 = vpack.c.b16 %v3532, %v3529
          %3629 = vmatprep.subr.bf16.mxu0 %v3555
          %3630 = vmatpush1.bf16.msra.mxu0 %v3554
          %3631 = vmatprep.subr.bf16.mxu0 %v3552
          %3632 = vmatpush1.bf16.msra.mxu0 %v3551
          %3633 = vmatprep.subr.bf16.mxu0 %v3549
          %3634 = vmatpush1.bf16.msra.mxu0 %v3548
          %3635 = vmatprep.subr.bf16.mxu0 %v3546
          %3636 = vmatpush1.bf16.msra.mxu0 %v3545
          %3637 = vmatprep.subr.bf16.mxu0 %v3543
          %3638 = vmatpush1.bf16.msra.mxu0 %v3542
          %3639 = vmatprep.subr.bf16.mxu0 %v3540
          %3640 = vmatpush1.bf16.msra.mxu0 %v3539
          %3641 = vmatprep.subr.bf16.mxu0 %v3537
          %3642 = vmatpush1.bf16.msra.mxu0 %v3536
          %3643 = vmatprep.subr.bf16.mxu0 %v3534
          %3644 = vmatpush1.bf16.msra.mxu0 %v3533
          %3645 = vmatprep.subr.bf16.mxu0 %v3579
          %3646 = vmatpush2.bf16.msra.mxu0 %v3578
          %3647 = vmatprep.subr.bf16.mxu0 %v3576
          %3648 = vmatpush2.bf16.msra.mxu0 %v3575
          %3649 = vmatprep.subr.bf16.mxu0 %v3573
          %3650 = vmatpush2.bf16.msra.mxu0 %v3572
          %3651 = vmatprep.subr.bf16.mxu0 %v3570
          %3652 = vmatpush2.bf16.msra.mxu0 %v3569
          %3653 = vmatprep.subr.bf16.mxu0 %v3567
          %3654 = vmatpush2.bf16.msra.mxu0 %v3566
          %3655 = vmatprep.subr.bf16.mxu0 %v3564
          %3656 = vmatpush2.bf16.msra.mxu0 %v3563
          %3657 = vmatprep.subr.bf16.mxu0 %v3561
          %3658 = vmatpush2.bf16.msra.mxu0 %v3560
          %3659 = vmatprep.subr.bf16.mxu0 %v3558
          %3660 = vmatpush2.bf16.msra.mxu0 %v3557
          %3661 = vmatprep.mubr.bf16.mxu0 %v3358
          %3662 = vmatmul.mubr.bf16.gmra.mxu0 %v3357
          %v3663 = vpop.f32.mrf.mxu0
          %v3664 = vadd.f32 0.0, %v3663
          %v3665 = vpop.f32.mrf.mxu0
          %v3666 = vadd.f32 0.0, %v3665
          %v3667 = vpop.f32.mrf.mxu0
          %v3668 = vadd.f32 0.0, %v3667
          %v3669 = vpop.f32.mrf.mxu0
          %v3670 = vadd.f32 0.0, %v3669
          %3671 = vmatprep.mubr.bf16.mxu0 %v3360
          %3672 = vmatmul.mubr.bf16.gmra.mxu0 %v3359
          %v3673 = vpop.f32.mrf.mxu0
          %v3674 = vadd.f32 0.0, %v3673
          %v3675 = vpop.f32.mrf.mxu0
          %v3676 = vadd.f32 0.0, %v3675
          %v3677 = vpop.f32.mrf.mxu0
          %v3678 = vadd.f32 0.0, %v3677
          %v3679 = vpop.f32.mrf.mxu0
          %v3680 = vadd.f32 0.0, %v3679
          %3681 = vmatprep.mubr.bf16.mxu0 %v3362
          %3682 = vmatmul.mubr.bf16.gmra.mxu0 %v3361
          %v3683 = vpop.f32.mrf.mxu0
          %v3684 = vadd.f32 0.0, %v3683
          %v3685 = vpop.f32.mrf.mxu0
          %v3686 = vadd.f32 0.0, %v3685
          %v3687 = vpop.f32.mrf.mxu0
          %v3688 = vadd.f32 0.0, %v3687
          %v3689 = vpop.f32.mrf.mxu0
          %v3690 = vadd.f32 0.0, %v3689
          %3691 = vmatprep.mubr.bf16.mxu0 %v3364
          %3692 = vmatmul.mubr.bf16.gmra.mxu0 %v3363
          %v3693 = vpop.f32.mrf.mxu0
          %v3694 = vadd.f32 0.0, %v3693
          %v3695 = vpop.f32.mrf.mxu0
          %v3696 = vadd.f32 0.0, %v3695
          %v3697 = vpop.f32.mrf.mxu0
          %v3698 = vadd.f32 0.0, %v3697
          %v3699 = vpop.f32.mrf.mxu0
          %v3700 = vadd.f32 0.0, %v3699
          %3701 = vmatprep.mubr.bf16.mxu0 %v3366
          %3702 = vmatmul.mubr.bf16.gmra.mxu0 %v3365
          %v3703 = vpop.f32.mrf.mxu0
          %v3704 = vadd.f32 0.0, %v3703
          %v3705 = vpop.f32.mrf.mxu0
          %v3706 = vadd.f32 0.0, %v3705
          %v3707 = vpop.f32.mrf.mxu0
          %v3708 = vadd.f32 0.0, %v3707
          %v3709 = vpop.f32.mrf.mxu0
          %v3710 = vadd.f32 0.0, %v3709
          %3711 = vmatprep.mubr.bf16.mxu0 %v3368
          %3712 = vmatmul.mubr.bf16.gmra.mxu0 %v3367
          %v3713 = vpop.f32.mrf.mxu0
          %v3714 = vadd.f32 0.0, %v3713
          %v3715 = vpop.f32.mrf.mxu0
          %v3716 = vadd.f32 0.0, %v3715
          %v3717 = vpop.f32.mrf.mxu0
          %v3718 = vadd.f32 0.0, %v3717
          %v3719 = vpop.f32.mrf.mxu0
          %v3720 = vadd.f32 0.0, %v3719
          %3721 = vmatprep.mubr.bf16.mxu0 %v3370
          %3722 = vmatmul.mubr.bf16.gmra.mxu0 %v3369
          %v3723 = vpop.f32.mrf.mxu0
          %v3724 = vadd.f32 0.0, %v3723
          %v3725 = vpop.f32.mrf.mxu0
          %v3726 = vadd.f32 0.0, %v3725
          %v3727 = vpop.f32.mrf.mxu0
          %v3728 = vadd.f32 0.0, %v3727
          %v3729 = vpop.f32.mrf.mxu0
          %v3730 = vadd.f32 0.0, %v3729
          %3731 = vmatprep.mubr.bf16.mxu0 %v3372
          %3732 = vmatmul.mubr.bf16.gmra.mxu0 %v3371
          %v3733 = vpop.f32.mrf.mxu0
          %v3734 = vadd.f32 0.0, %v3733
          %v3735 = vpop.f32.mrf.mxu0
          %v3736 = vadd.f32 0.0, %v3735
          %v3737 = vpop.f32.mrf.mxu0
          %v3738 = vadd.f32 0.0, %v3737
          %v3739 = vpop.f32.mrf.mxu0
          %v3740 = vadd.f32 0.0, %v3739
          %3741 = vdwg.mxu0
          %3742 = vmatprep.subr.bf16.mxu0 0
          %3743 = vmatpush1.bf16.msra.mxu0 %v3556
          %3744 = vmatprep.subr.bf16.mxu0 0
          %3745 = vmatpush1.bf16.msra.mxu0 %v3553
          %3746 = vmatprep.subr.bf16.mxu0 0
          %3747 = vmatpush1.bf16.msra.mxu0 %v3550
          %3748 = vmatprep.subr.bf16.mxu0 0
          %3749 = vmatpush1.bf16.msra.mxu0 %v3547
          %3750 = vmatprep.subr.bf16.mxu0 0
          %3751 = vmatpush1.bf16.msra.mxu0 %v3544
          %3752 = vmatprep.subr.bf16.mxu0 0
          %3753 = vmatpush1.bf16.msra.mxu0 %v3541
          %3754 = vmatprep.subr.bf16.mxu0 0
          %3755 = vmatpush1.bf16.msra.mxu0 %v3538
          %3756 = vmatprep.subr.bf16.mxu0 0
          %3757 = vmatpush1.bf16.msra.mxu0 %v3535
          %3758 = vmatprep.subr.bf16.mxu0 0
          %3759 = vmatpush2.bf16.msra.mxu0 %v3580
          %3760 = vmatprep.subr.bf16.mxu0 0
          %3761 = vmatpush2.bf16.msra.mxu0 %v3577
          %3762 = vmatprep.subr.bf16.mxu0 0
          %3763 = vmatpush2.bf16.msra.mxu0 %v3574
          %3764 = vmatprep.subr.bf16.mxu0 0
          %3765 = vmatpush2.bf16.msra.mxu0 %v3571
          %3766 = vmatprep.subr.bf16.mxu0 0
          %3767 = vmatpush2.bf16.msra.mxu0 %v3568
          %3768 = vmatprep.subr.bf16.mxu0 0
          %3769 = vmatpush2.bf16.msra.mxu0 %v3565
          %3770 = vmatprep.subr.bf16.mxu0 0
          %3771 = vmatpush2.bf16.msra.mxu0 %v3562
          %3772 = vmatprep.subr.bf16.mxu0 0
          %3773 = vmatpush2.bf16.msra.mxu0 %v3559
          %3774 = vmatprep.mubr.bf16.mxu0 %v3358
          %3775 = vmatmul.mubr.bf16.gmra.mxu0 %v3357
          %v3776 = vpop.f32.mrf.mxu0
          %v3777 = vadd.f32 0.0, %v3776
          %v3778 = vpop.f32.mrf.mxu0
          %v3779 = vpop.f32.mrf.mxu0
          %v3780 = vadd.f32 0.0, %v3779
          %v3781 = vpop.f32.mrf.mxu0
          %3782 = vmatprep.mubr.bf16.mxu0 %v3360
          %3783 = vmatmul.mubr.bf16.gmra.mxu0 %v3359
          %v3784 = vpop.f32.mrf.mxu0
          %v3785 = vadd.f32 0.0, %v3784
          %v3786 = vpop.f32.mrf.mxu0
          %v3787 = vpop.f32.mrf.mxu0
          %v3788 = vadd.f32 0.0, %v3787
          %v3789 = vpop.f32.mrf.mxu0
          %3790 = vmatprep.mubr.bf16.mxu0 %v3362
          %3791 = vmatmul.mubr.bf16.gmra.mxu0 %v3361
          %v3792 = vpop.f32.mrf.mxu0
          %v3793 = vadd.f32 0.0, %v3792
          %v3794 = vpop.f32.mrf.mxu0
          %v3795 = vpop.f32.mrf.mxu0
          %v3796 = vadd.f32 0.0, %v3795
          %v3797 = vpop.f32.mrf.mxu0
          %3798 = vmatprep.mubr.bf16.mxu0 %v3364
          %3799 = vmatmul.mubr.bf16.gmra.mxu0 %v3363
          %v3800 = vpop.f32.mrf.mxu0
          %v3801 = vadd.f32 0.0, %v3800
          %v3802 = vpop.f32.mrf.mxu0
          %v3803 = vpop.f32.mrf.mxu0
          %v3804 = vadd.f32 0.0, %v3803
          %v3805 = vpop.f32.mrf.mxu0
          %3806 = vmatprep.mubr.bf16.mxu0 %v3366
          %3807 = vmatmul.mubr.bf16.gmra.mxu0 %v3365
          %v3808 = vpop.f32.mrf.mxu0
          %v3809 = vadd.f32 0.0, %v3808
          %v3810 = vpop.f32.mrf.mxu0
          %v3811 = vpop.f32.mrf.mxu0
          %v3812 = vadd.f32 0.0, %v3811
          %v3813 = vpop.f32.mrf.mxu0
          %3814 = vmatprep.mubr.bf16.mxu0 %v3368
          %3815 = vmatmul.mubr.bf16.gmra.mxu0 %v3367
          %v3816 = vpop.f32.mrf.mxu0
          %v3817 = vadd.f32 0.0, %v3816
          %v3818 = vpop.f32.mrf.mxu0
          %v3819 = vpop.f32.mrf.mxu0
          %v3820 = vadd.f32 0.0, %v3819
          %v3821 = vpop.f32.mrf.mxu0
          %3822 = vmatprep.mubr.bf16.mxu0 %v3370
          %3823 = vmatmul.mubr.bf16.gmra.mxu0 %v3369
          %v3824 = vpop.f32.mrf.mxu0
          %v3825 = vadd.f32 0.0, %v3824
          %v3826 = vpop.f32.mrf.mxu0
          %v3827 = vpop.f32.mrf.mxu0
          %v3828 = vadd.f32 0.0, %v3827
          %v3829 = vpop.f32.mrf.mxu0
          %3830 = vmatprep.mubr.bf16.mxu0 %v3372
          %3831 = vmatmul.mubr.bf16.gmra.mxu0 %v3371
          %v3832 = vpop.f32.mrf.mxu0
          %v3833 = vadd.f32 0.0, %v3832
          %v3834 = vpop.f32.mrf.mxu0
          %v3835 = vpop.f32.mrf.mxu0
          %v3836 = vadd.f32 0.0, %v3835
          %v3837 = vpop.f32.mrf.mxu0
          %3838 = vdwg.mxu0
          %v3839 = vadd.f32 %v2580, %v3664
          %v3840 = vadd.f32 %v2581, %v3666
          %v3841 = vadd.f32 %v2582, %v3777
          %v3842 = vadd.f32 %v2583, %v3668
          %v3843 = vadd.f32 %v2584, %v3670
          %v3844 = vadd.f32 %v2585, %v3780
          %v3845 = vadd.f32 %v2586, %v3674
          %v3846 = vadd.f32 %v2587, %v3676
          %v3847 = vadd.f32 %v2588, %v3785
          %v3848 = vadd.f32 %v2589, %v3678
          %v3849 = vadd.f32 %v2590, %v3680
          %v3850 = vadd.f32 %v2591, %v3788
          %v3851 = vadd.f32 %v2592, %v3684
          %v3852 = vadd.f32 %v2593, %v3686
          %v3853 = vadd.f32 %v2594, %v3793
          %v3854 = vadd.f32 %v2595, %v3688
          %v3855 = vadd.f32 %v2596, %v3690
          %v3856 = vadd.f32 %v2597, %v3796
          %v3857 = vadd.f32 %v2598, %v3694
          %v3858 = vadd.f32 %v2599, %v3696
          %v3859 = vadd.f32 %v2600, %v3801
          %v3860 = vadd.f32 %v2601, %v3698
          %v3861 = vadd.f32 %v2602, %v3700
          %v3862 = vadd.f32 %v2603, %v3804
          %v3863 = vadd.f32 %v2604, %v3704
          %v3864 = vadd.f32 %v2605, %v3706
          %v3865 = vadd.f32 %v2606, %v3809
          %v3866 = vadd.f32 %v2607, %v3708
          %v3867 = vadd.f32 %v2608, %v3710
          %v3868 = vadd.f32 %v2609, %v3812
          %v3869 = vadd.f32 %v2610, %v3714
          %v3870 = vadd.f32 %v2611, %v3716
          %v3871 = vadd.f32 %v2612, %v3817
          %v3872 = vadd.f32 %v2613, %v3718
          %v3873 = vadd.f32 %v2614, %v3720
          %v3874 = vadd.f32 %v2615, %v3820
          %v3875 = vadd.f32 %v2616, %v3724
          %v3876 = vadd.f32 %v2617, %v3726
          %v3877 = vadd.f32 %v2618, %v3825
          %v3878 = vadd.f32 %v2619, %v3728
          %v3879 = vadd.f32 %v2620, %v3730
          %v3880 = vadd.f32 %v2621, %v3828
          %v3881 = vadd.f32 %v2622, %v3734
          %v3882 = vadd.f32 %v2623, %v3736
          %v3883 = vadd.f32 %v2624, %v3833
          %v3884 = vadd.f32 %v2625, %v3738
          %v3885 = vadd.f32 %v2626, %v3740
          %v3886 = vadd.f32 %v2627, %v3836
        $region93: #{tpu_custom_call.1} parent=55 // loop_footer
          %s2579 = sadd.s32 1, %s2575
        $region94: #{tpu_custom_call.1} parent=55 // loop_footer_branch
          %2574 = sbr.rel target = $region90
        $region95: #{tpu_custom_call.1} parent=55 // loop_exit
          _
        %3887 = vst [vmem:[%s475] sm:$0xff] %v2580
        %3888 = vst [vmem:[%s475 + $0x8] sm:$0xff] %v2581
        %3889 = vst [vmem:[%s475 + $0x10] sm:$0xff] %v2582
        %3890 = vst [vmem:[%s475 + $0x18] sm:$0xff] %v2583
        %3891 = vst [vmem:[%s475 + $0x20] sm:$0xff] %v2584
        %3892 = vst [vmem:[%s475 + $0x28] sm:$0xff] %v2585
        %3893 = vst [vmem:[%s475 + $0x30] sm:$0xff] %v2586
        %3894 = vst [vmem:[%s475 + $0x38] sm:$0xff] %v2587
        %3895 = vst [vmem:[%s475 + $0x40] sm:$0xff] %v2588
        %3896 = vst [vmem:[%s475 + $0x48] sm:$0xff] %v2589
        %3897 = vst [vmem:[%s475 + $0x50] sm:$0xff] %v2590
        %3898 = vst [vmem:[%s475 + $0x58] sm:$0xff] %v2591
        %3899 = vst [vmem:[%s475 + $0x60] sm:$0xff] %v2592
        %3900 = vst [vmem:[%s475 + $0x68] sm:$0xff] %v2593
        %3901 = vst [vmem:[%s475 + $0x70] sm:$0xff] %v2594
        %3902 = vst [vmem:[%s475 + $0x78] sm:$0xff] %v2595
        %3903 = vst [vmem:[%s475 + $0x80] sm:$0xff] %v2596
        %3904 = vst [vmem:[%s475 + $0x88] sm:$0xff] %v2597
        %3905 = vst [vmem:[%s475 + $0x90] sm:$0xff] %v2598
        %3906 = vst [vmem:[%s475 + $0x98] sm:$0xff] %v2599
        %3907 = vst [vmem:[%s475 + $0xa0] sm:$0xff] %v2600
        %3908 = vst [vmem:[%s475 + $0xa8] sm:$0xff] %v2601
        %3909 = vst [vmem:[%s475 + $0xb0] sm:$0xff] %v2602
        %3910 = vst [vmem:[%s475 + $0xb8] sm:$0xff] %v2603
        %3911 = vst [vmem:[%s475 + $0xc0] sm:$0xff] %v2604
        %3912 = vst [vmem:[%s475 + $0xc8] sm:$0xff] %v2605
        %3913 = vst [vmem:[%s475 + $0xd0] sm:$0xff] %v2606
        %3914 = vst [vmem:[%s475 + $0xd8] sm:$0xff] %v2607
        %3915 = vst [vmem:[%s475 + $0xe0] sm:$0xff] %v2608
        %3916 = vst [vmem:[%s475 + $0xe8] sm:$0xff] %v2609
        %3917 = vst [vmem:[%s475 + $0xf0] sm:$0xff] %v2610
        %3918 = vst [vmem:[%s475 + $0xf8] sm:$0xff] %v2611
        %3919 = vst [vmem:[%s475 + $0x100] sm:$0xff] %v2612
        %3920 = vst [vmem:[%s475 + $0x108] sm:$0xff] %v2613
        %3921 = vst [vmem:[%s475 + $0x110] sm:$0xff] %v2614
        %3922 = vst [vmem:[%s475 + $0x118] sm:$0xff] %v2615
        %3923 = vst [vmem:[%s475 + $0x120] sm:$0xff] %v2616
        %3924 = vst [vmem:[%s475 + $0x128] sm:$0xff] %v2617
        %3925 = vst [vmem:[%s475 + $0x130] sm:$0xff] %v2618
        %3926 = vst [vmem:[%s475 + $0x138] sm:$0xff] %v2619
        %3927 = vst [vmem:[%s475 + $0x140] sm:$0xff] %v2620
        %3928 = vst [vmem:[%s475 + $0x148] sm:$0xff] %v2621
        %3929 = vst [vmem:[%s475 + $0x150] sm:$0xff] %v2622
        %3930 = vst [vmem:[%s475 + $0x158] sm:$0xff] %v2623
        %3931 = vst [vmem:[%s475 + $0x160] sm:$0xff] %v2624
        %3932 = vst [vmem:[%s475 + $0x168] sm:$0xff] %v2625
        %3933 = vst [vmem:[%s475 + $0x170] sm:$0xff] %v2626
        %3934 = vst [vmem:[%s475 + $0x178] sm:$0xff] %v2627
        %s3935 = sand.u32 %s237, 1
        %s3936 = scalar_lea.sflag [#allocation4], %s3935
        %s3937 = sand.u32 %s237, 1
        %s3938 = smul.addr %s3937, 384
        %s3939 = scalar_lea.vmem [#allocation16], %s3938
        %s3940 = sand.u32 %s263, 1
        %s3941 = scalar_lea.sflag [#allocation18], %s3940
        %s3942 = sand.u32 %s263, 1
        %s3943 = smul.addr %s3942, 128
        %s3944 = scalar_lea.vmem [#allocation17], %s3943
        // Predicated region
        $region96: #{tpu_custom_call.1} parent=55 // pred_check
          %p3945 = pneg %p247
        $region97: #{tpu_custom_call.1} parent=55 // pred_check_branch
          %3947 = sbr.rel (%p3945) target = $region99
        $region98: #{tpu_custom_call.1} parent=55 // pred_region
          %s3949 = ssub.s32 6144, 6144
          %3950 = vsyncadd %s3936, %s3949
          %s3951 = smul.addr %s35, 48
          %s3952 = smul.addr %s3951, 128
          %s3953 = scalar_lea.hbm %s9, %s3952
          %s3954 = sshll.u32 %s3939, 4
          %s3955 = int_to_ptr.vmem [resolvable:$true] %s3954
          %3960 = dma.vmem_to_hbm [thread:$0]  %s3955, 6144, %s3953, %s3936, 384, 384, 24
        $region99: #{tpu_custom_call.1} parent=55 // pred_fallthru
          _
        // Predicated region
        $region100: #{tpu_custom_call.1} parent=55 // pred_check
          %p3961 = pneg %p273
        $region101: #{tpu_custom_call.1} parent=55 // pred_check_branch
          %3963 = sbr.rel (%p3961) target = $region103
        $region102: #{tpu_custom_call.1} parent=55 // pred_region
          %s3965 = ssub.s32 2048, 2048
          %3966 = vsyncadd %s3941, %s3965
          %s3967 = smul.addr %s35, 32
          %s3968 = smul.addr %s3967, 64
          %s3969 = scalar_lea.hbm %s10, %s3968
          %s3970 = sshll.u32 %s3944, 4
          %s3971 = int_to_ptr.vmem [resolvable:$true] %s3970
          %3976 = dma.vmem_to_hbm [thread:$0]  %s3971, 2048, %s3969, %s3941, 128, 128, 8
        $region103: #{tpu_custom_call.1} parent=55 // pred_fallthru
          _
      $region56: #{tpu_custom_call.1} parent=5 // pred_fallthru
        _
      %p3977 = scmp.le.s32.totalorder 2, %s30
      // Predicated region
      $region104: #{tpu_custom_call.1} parent=5 // pred_check
        %p3978 = pneg %p3977
      $region105: #{tpu_custom_call.1} parent=5 // pred_check_branch
        %3980 = sbr.rel (%p3978) target = $region107
      $region106: #{tpu_custom_call.1} parent=5 // pred_region
        %s3981 = ssub.s32 %s30, 2
        // Predicated region
        $region108: #{tpu_custom_call.1} parent=106 // pred_check
          %p3982 = pneg %p253
        $region109: #{tpu_custom_call.1} parent=106 // pred_check_branch
          %3984 = sbr.rel (%p3982) target = $region111
        $region110: #{tpu_custom_call.1} parent=106 // pred_region
          %s3985 = sand.u32 %s238, 1
          %s3986 = scalar_lea.sflag [#allocation4], %s3985
          %s3987 = sand.u32 %s238, 1
          %s3988 = smul.addr %s3987, 384
          %s3989 = scalar_lea.vmem [#allocation16], %s3988
          %3990 = dma.done %s3986, 6144
        $region111: #{tpu_custom_call.1} parent=106 // pred_fallthru
          _
        // Predicated region
        $region112: #{tpu_custom_call.1} parent=106 // pred_check
          %p3991 = pneg %p279
        $region113: #{tpu_custom_call.1} parent=106 // pred_check_branch
          %3993 = sbr.rel (%p3991) target = $region115
        $region114: #{tpu_custom_call.1} parent=106 // pred_region
          %s3994 = sand.u32 %s264, 1
          %s3995 = scalar_lea.sflag [#allocation18], %s3994
          %s3996 = sand.u32 %s264, 1
          %s3997 = smul.addr %s3996, 128
          %s3998 = scalar_lea.vmem [#allocation17], %s3997
          %3999 = dma.done %s3995, 2048
        $region115: #{tpu_custom_call.1} parent=106 // pred_fallthru
          _
      $region107: #{tpu_custom_call.1} parent=5 // pred_fallthru
        _
    $region6: #{tpu_custom_call.1} parent=1 // loop_footer
      %s34 = sadd.s32 1, %s30
    $region7: #{tpu_custom_call.1} parent=1 // loop_footer_branch
      %29 = sbr.rel target = $region3
    $region8: #{tpu_custom_call.1} parent=1 // loop_exit
      _
    %4000 = vsyncpa [#allocation3], 1
    %s4001 = scalar_lea.sflag [#allocation3], 1
    %4002 = vsyncpa %s4001, 1
    %4003 = vsyncpa [#allocation6], 1
    %4004 = vsyncpa [#allocation9], 1
    %4005 = vsyncpa [#allocation12], 1
    %4006 = vsyncpa [#allocation15], 1
    %4007 = vsyncpa [#allocation4], 1
    %s4008 = scalar_lea.sflag [#allocation4], 1
    %4009 = vsyncpa %s4008, 1
    %4010 = vsyncpa [#allocation18], 1
    %s4011 = scalar_lea.sflag [#allocation18], 1
    %4012 = vsyncpa %s4011, 1

</llo_original>
